<compile_context>
chip_gen: v7x
topology: tpu7x:2x2x1
jax: 0.10.0
libtpu: 0.0.40
codegen_flags: <defaults>
</compile_context>

<pallas_src>
import numpy as np
import jax
import jax.numpy as jnp
from jax.experimental import pallas as pl
from jax.experimental.pallas import tpu as pltpu


# ----------------------------------------------------------------------------
# Bicubic resize (PyTorch semantics) as separable matmuls
# ----------------------------------------------------------------------------
def _cubic_weight(t, a=-0.75):
    t = np.abs(np.asarray(t, dtype=np.float64))
    w1 = (a + 2.0) * t**3 - (a + 3.0) * t**2 + 1.0
    w2 = a * t**3 - 5.0 * a * t**2 + 8.0 * a * t - 4.0 * a
    return np.where(t <= 1.0, w1, np.where(t < 2.0, w2, 0.0))


def bicubic_matrix(in_size, out_size):
    # Matches torch F.interpolate(mode='bicubic', align_corners=False, antialias=False):
    # src = (i + 0.5) * (in/out) - 0.5, 4-tap Keys kernel with a=-0.75,
    # border handled by clamping source indices.
    scale = in_size / out_size
    A = np.zeros((out_size, in_size), dtype=np.float64)
    for i in range(out_size):
        src = (i + 0.5) * scale - 0.5
        i0 = int(np.floor(src))
        t = src - i0
        taps = [i0 - 1, i0, i0 + 1, i0 + 2]
        wts = [_cubic_weight(1.0 + t), _cubic_weight(t),
               _cubic_weight(1.0 - t), _cubic_weight(2.0 - t)]
        for idx, w in zip(taps, wts):
            A[i, min(max(idx, 0), in_size - 1)] += float(w)
    return jnp.asarray(A, dtype=jnp.float32)


def _resize_kernel(ah_ref, awt_ref, x_ref, o_ref):
    # Whole (sub-)batch resident in VMEM for this grid step: one batched W-pass
    # matmul and one batched H-pass matmul on the MXU, then clamp(0,1).
    x = x_ref[...]                                                  # (bb, H, W)
    bb = x.shape[0]
    awt = jnp.broadcast_to(awt_ref[...], (bb,) + tuple(awt_ref.shape))  # (bb, W, S)
    ah = jnp.broadcast_to(ah_ref[...], (bb,) + tuple(ah_ref.shape))     # (bb, S, H)
    t = jnp.einsum('bhw,bws->bhs', x, awt,
                   preferred_element_type=jnp.float32)              # (bb, H, S)
    y = jnp.einsum('bsh,bht->bst', ah, t,
                   preferred_element_type=jnp.float32)              # (bb, S, S)
    o_ref[...] = jnp.clip(y, 0.0, 1.0)


def bicubic_resize_clamp(video, size):
    """video: (N, C, H, W) f32 -> (N, C, size, size); bicubic + clamp(0, 1)."""
    N, C, H, W = video.shape
    B = N * C
    x = video.reshape(B, H, W).astype(jnp.float32)     # pure reshape, no copy
    ah = bicubic_matrix(H, size)                       # (S, H)
    awt = bicubic_matrix(W, size).T                    # (W, S) pre-transposed on host
    # One grid step for the whole batch when it fits comfortably in VMEM
    # (toy payload ~100 KB); chunk the leading dim only for very large batches.
    bytes_per_img = 4 * (H * W + size * size + H * size)
    bb = int(min(B, max(1, (16 * 1024 * 1024) // bytes_per_img)))
    grid = (pl.cdiv(B, bb),)                           # boundary block (if any) is clipped
    out = pl.pallas_call(
        _resize_kernel,
        out_shape=jax.ShapeDtypeStruct((B, size, size), jnp.float32),
        grid_spec=pltpu.PrefetchScalarGridSpec(
            num_scalar_prefetch=0,
            grid=grid,
            in_specs=[
                pl.BlockSpec((size, H), lambda i: (0, 0)),
                pl.BlockSpec((W, size), lambda i: (0, 0)),
                pl.BlockSpec((bb, H, W), lambda i: (i, 0, 0)),
            ],
            out_specs=pl.BlockSpec((bb, size, size), lambda i: (i, 0, 0)),
        ),
        compiler_params=pltpu.CompilerParams(dimension_semantics=("parallel",)),
    )(ah, awt, x)
    return out.reshape(N, C, size, size)


# ----------------------------------------------------------------------------
# Masked cosine-similarity reward reduction (lane-dense, vector accumulators)
# ----------------------------------------------------------------------------
def _make_reward_kernel(m_total, tm):
    eps = 1e-8

    def kernel(a_ref, b_ref, v_ref, o_ref, sum_acc, cnt_acc):
        i = pl.program_id(0)

        @pl.when(i == 0)
        def _():
            sum_acc[...] = jnp.zeros_like(sum_acc)
            cnt_acc[...] = jnp.zeros_like(cnt_acc)

        a = a_ref[...]                                   # (C, tm): rows on the lane axis
        b = b_ref[...]                                   # (C, tm)
        dot = jnp.sum(a * b, axis=0, keepdims=True)      # (1, tm) cheap sublane reduce
        sa = jnp.sum(a * a, axis=0, keepdims=True)
        sb = jnp.sum(b * b, axis=0, keepdims=True)
        # torch F.cosine_similarity clamps each norm separately:
        #   cos = dot / (max(||a||, eps) * max(||b||, eps))  ==  dot * rsqrt * rsqrt
        inv = (jax.lax.rsqrt(jnp.maximum(sa, eps * eps)) *
               jax.lax.rsqrt(jnp.maximum(sb, eps * eps)))
        cos = jnp.maximum(dot * inv, 0.0)                # .clamp(min=0)
        # Mask out dynamic-object rows AND the out-of-bounds tail of the last tile.
        col = jax.lax.broadcasted_iota(jnp.int32, (1, tm), 1) + i * tm
        w = jnp.where(col < m_total, v_ref[...], 0.0)    # 1.0 where the row is kept
        # where() is a select, so garbage/NaN in the OOB tail cannot leak in.
        sum_acc[...] += jnp.where(w > 0.5, cos, 0.0)     # lane-vector accumulate
        cnt_acc[...] += w

        @pl.when(i == pl.num_programs(0) - 1)
        def _():
            # Single cross-lane reduce + divide, done once.
            o_ref[0, 0] = (jnp.sum(sum_acc[...]) /
                           jnp.maximum(jnp.sum(cnt_acc[...]), 1.0))

    return kernel


def masked_cosine_reward(tgt_feats, rendered_feats, tgt_masks, tm=2048):
    """reward = cosine_similarity(tgt_feats[~mask], rendered_feats[~mask]).clamp(0).mean()"""
    M, C = tgt_feats.shape
    # Lane-dense layout: put the long row axis M on the 128-lane dimension.
    a_t = tgt_feats.astype(jnp.float32).T                 # (C, M)
    b_t = rendered_feats.astype(jnp.float32).T            # (C, M)
    valid = (~tgt_masks).astype(jnp.float32).reshape(1, M)
    # tm=2048 keeps 2 inputs x 2 pipeline buffers well under the scoped-VMEM limit
    # even on v7x / with large C; shrink to the lane-aligned extent for small M.
    tm = int(min(tm, pl.cdiv(M, 128) * 128))
    grid = (pl.cdiv(M, tm),)                              # ragged tail masked in-kernel
    out = pl.pallas_call(
        _make_reward_kernel(M, tm),
        out_shape=jax.ShapeDtypeStruct((1, 1), jnp.float32),
        grid_spec=pltpu.PrefetchScalarGridSpec(
            num_scalar_prefetch=0,
            grid=grid,
            in_specs=[
                pl.BlockSpec((C, tm), lambda i: (0, i)),
                pl.BlockSpec((C, tm), lambda i: (0, i)),
                pl.BlockSpec((1, tm), lambda i: (0, i)),
            ],
            out_specs=pl.BlockSpec((1, 1), lambda i: (0, 0)),
            scratch_shapes=[pltpu.VMEM((1, tm), jnp.float32),
                            pltpu.VMEM((1, tm), jnp.float32)],
        ),
        # Sequential accumulation into scratch -> must stay "arbitrary"; for a
        # multi-TensorCore split, emit per-core partials instead of sharing scratch.
        compiler_params=pltpu.CompilerParams(dimension_semantics=("arbitrary",)),
    )(a_t, b_t, valid)
    return out[0, 0]


# ----------------------------------------------------------------------------
# GeometryReward.forward (kernel-backed pieces; model stages are synthetic)
# ----------------------------------------------------------------------------
def geometry_reward_forward(video, tgt_feats, rendered_feats, tgt_masks, size=32):
    # 1) original_video = F.interpolate(video, (size,size), 'bicubic').clamp(0,1)
    original_video = bicubic_resize_clamp(video, size)
    # 2) video = original_video * 2 - 1   (glue, fed to MonST3R pairs in the original)
    video_norm = original_video * 2.0 - 1.0
    # TODO(synk): MonST3R inference, global alignment (300-iter optimizer), FeatUp
    # upsampling and PyTorch3D point rendering have no Pallas equivalent; the feature
    # tensors / masks they produce are provided as synthetic inputs here.
    # 3) reward = cosine_similarity(tgt_feats[~m], rendered_feats[~m]).clamp(0).mean()
    reward = masked_cosine_reward(tgt_feats, rendered_feats, tgt_masks)
    return reward, video_norm


if __name__ == "__main__":
    key = jax.random.PRNGKey(0)
    k1, k2, k3, k4 = jax.random.split(key, 4)

    # Small shapes consistent with the module's forward.
    n_frames, chans, H, W = 6, 3, 16, 16
    size = 32
    feat_c = 32

    video = jax.random.uniform(k1, (n_frames, chans, H, W), dtype=jnp.float32)

    # src/tgt frame split exactly as in the module
    src_indices = np.linspace(0, n_frames - 1, n_frames // 2 + 1, dtype=np.int64)
    tgt_indices = np.delete(np.arange(n_frames), src_indices)
    n_tgt = len(tgt_indices)
    M = n_tgt * size * size

    tgt_feats = jax.random.normal(k2, (M, feat_c), dtype=jnp.float32)
    rendered_feats = jax.random.normal(k3, (M, feat_c), dtype=jnp.float32)
    tgt_masks = jax.random.uniform(k4, (M,)) < 0.05  # dynamic-object mask

    reward, video_norm = geometry_reward_forward(
        video, tgt_feats, rendered_feats, tgt_masks, size=size)
    reward = jax.block_until_ready(reward)
    video_norm = jax.block_until_ready(video_norm)

    # ---- reference checks (plain JAX) ----
    ah = bicubic_matrix(H, size)
    aw = bicubic_matrix(W, size)
    ref_resize = jnp.clip(
        jnp.einsum('oh,nchw,pw->ncop', ah, video, aw), 0.0, 1.0) * 2.0 - 1.0
    np.testing.assert_allclose(np.asarray(video_norm), np.asarray(ref_resize),
                               rtol=1e-4, atol=1e-5)

    eps = 1e-8
    dot = jnp.sum(tgt_feats * rendered_feats, axis=-1)
    na = jnp.linalg.norm(tgt_feats, axis=-1)
    nb = jnp.linalg.norm(rendered_feats, axis=-1)
    # torch F.cosine_similarity clamps each norm separately (max(||x||, eps)).
    cos = jnp.maximum(dot / (jnp.maximum(na, eps) * jnp.maximum(nb, eps)), 0.0)
    valid = (~tgt_masks).astype(jnp.float32)
    ref_reward = jnp.sum(cos * valid) / jnp.maximum(jnp.sum(valid), 1.0)
    np.testing.assert_allclose(float(reward), float(ref_reward), rtol=1e-4, atol=1e-5)

    print("KERNEL_OK")
</pallas_src>

<mosaic_0001>
module attributes {stable_mosaic.version = 11 : i64} {
  func.func @_resize_kernel(%arg0: i32, %arg1: memref<32x16xf32, #tpu.memory_space<vmem>>, %arg2: memref<16x32xf32, #tpu.memory_space<vmem>>, %arg3: memref<18x16x16xf32, #tpu.memory_space<vmem>>, %arg4: memref<18x32x32xf32, #tpu.memory_space<vmem>>) attributes {dimension_semantics = [#tpu.dimension_semantics<parallel>], iteration_bounds = array<i64: 1>, scalar_prefetch = 0 : i64, scratch_operands = 0 : i64, tpu.core_type = #tpu.core_type<tc>, window_params = [{pipeline_mode = #tpu.pipeline_mode<synchronous>, transform_indices = @transform_0, window_bounds = array<i64: 32, 16>}, {pipeline_mode = #tpu.pipeline_mode<synchronous>, transform_indices = @transform_1, window_bounds = array<i64: 16, 32>}, {transform_indices = @transform_2, window_bounds = array<i64: 18, 16, 16>}, {transform_indices = @transform_3, window_bounds = array<i64: 18, 32, 32>}]} {
    %c0 = arith.constant 0 : index
    %c0_0 = arith.constant 0 : index
    %c0_1 = arith.constant 0 : index
    %0 = vector.load %arg3[%c0, %c0_0, %c0_1] : memref<18x16x16xf32, #tpu.memory_space<vmem>>, vector<18x16x16xf32>
    %c0_2 = arith.constant 0 : index
    %c0_3 = arith.constant 0 : index
    %1 = vector.load %arg2[%c0_2, %c0_3] : memref<16x32xf32, #tpu.memory_space<vmem>>, vector<16x32xf32>
    %2 = vector.shape_cast %1 : vector<16x32xf32> to vector<1x16x32xf32>
    %3 = vector.broadcast %2 : vector<1x16x32xf32> to vector<18x16x32xf32>
    %c0_4 = arith.constant 0 : index
    %c0_5 = arith.constant 0 : index
    %4 = vector.load %arg1[%c0_4, %c0_5] : memref<32x16xf32, #tpu.memory_space<vmem>>, vector<32x16xf32>
    %5 = vector.shape_cast %4 : vector<32x16xf32> to vector<1x32x16xf32>
    %6 = vector.broadcast %5 : vector<1x32x16xf32> to vector<18x32x16xf32>
    "tpu.trace_start"() <{level = 10 : i32, message = "bhw,bws->bhs"}> : () -> ()
    %cst = arith.constant dense<0.000000e+00> : vector<18x16x32xf32>
    %7 = tpu.matmul %0, %3, %cst {dimension_numbers = #tpu.dot_dimension_numbers<[2], [1], [1], [2], [0, 0, 0, 1, 1, 2], [0], [0]>} : vector<18x16x16xf32>, vector<18x16x32xf32>, vector<18x16x32xf32> -> vector<18x16x32xf32>
    "tpu.trace_stop"() : () -> ()
    "tpu.trace_start"() <{level = 10 : i32, message = "bsh,bht->bst"}> : () -> ()
    %cst_6 = arith.constant dense<0.000000e+00> : vector<18x32x32xf32>
    %8 = tpu.matmul %6, %7, %cst_6 {dimension_numbers = #tpu.dot_dimension_numbers<[2], [1], [1], [2], [0, 0, 0, 1, 1, 2], [0], [0]>} : vector<18x32x16xf32>, vector<18x16x32xf32>, vector<18x32x32xf32> -> vector<18x32x32xf32>
    %cst_7 = arith.constant 0.000000e+00 : f32
    %cst_8 = arith.constant 1.000000e+00 : f32
    "tpu.trace_stop"() : () -> ()
    %9 = vector.broadcast %cst_7 : f32 to vector<18x32x32xf32>
    %10 = arith.maximumf %9, %8 : vector<18x32x32xf32>
    %11 = vector.broadcast %cst_8 : f32 to vector<18x32x32xf32>
    %12 = arith.minimumf %11, %10 : vector<18x32x32xf32>
    %c0_9 = arith.constant 0 : index
    %c0_10 = arith.constant 0 : index
    %c0_11 = arith.constant 0 : index
    %13 = vector.load %arg4[%c0_9, %c0_10, %c0_11] : memref<18x32x32xf32, #tpu.memory_space<vmem>>, vector<18x32x32xf32>
    tpu.vector_store %arg4[%c0_9, %c0_10, %c0_11], %12 {strides = array<i32>} : memref<18x32x32xf32, #tpu.memory_space<vmem>>, vector<18x32x32xf32>,
    return
  }
  func.func @transform_0(%arg0: i32) -> (i32, i32) {
    %c0_i32 = arith.constant 0 : i32
    %c0_i32_0 = arith.constant 0 : i32
    %c0_i32_1 = arith.constant 0 : i32
    return %c0_i32, %c0_i32_0 : i32, i32
  }
  func.func @transform_1(%arg0: i32) -> (i32, i32) {
    %c0_i32 = arith.constant 0 : i32
    %c0_i32_0 = arith.constant 0 : i32
    %c0_i32_1 = arith.constant 0 : i32
    return %c0_i32, %c0_i32_0 : i32, i32
  }
  func.func @transform_2(%arg0: i32) -> (i32, i32, i32) {
    %c0_i32 = arith.constant 0 : i32
    %c0_i32_0 = arith.constant 0 : i32
    %c0_i32_1 = arith.constant 0 : i32
    return %arg0, %c0_i32, %c0_i32_0 : i32, i32, i32
  }
  func.func @transform_3(%arg0: i32) -> (i32, i32, i32) {
    %c0_i32 = arith.constant 0 : i32
    %c0_i32_0 = arith.constant 0 : i32
    %c0_i32_1 = arith.constant 0 : i32
    return %arg0, %c0_i32, %c0_i32_0 : i32, i32, i32
  }
}

</mosaic_0001>

<llo_original>
// kernel: tpu_custom_call.1
$region0: #{tpu_custom_call.1}
  #allocation0 [shape = 'u32[]', space=smem, size = 0x4, offset = 0x4, fixed_abs, tag = 'smem constant byte address 0x4 - core index']
  #allocation1 [shape = 'u32[144,128]{1,0:T(1,128)}', space=vmem, size = 0x12000, scoped, tag = 'internal scratch']
  %s0 = inlined_call_operand.vmem [shape: f32[32,16], index: 0, kind: input, shape index: {}]
  %s1 = inlined_call_operand.vmem [shape: f32[16,32], index: 1, kind: input, shape index: {}]
  %s2 = inlined_call_operand.vmem [shape: f32[18,16,16], index: 2, kind: input, shape index: {}]
  %s3 = inlined_call_operand.hbm [shape: f32[18,32,32], index: 3, kind: output, shape index: {}]
  %s4 = sld [smem:[#allocation0]]
  $region22: #{tpu_custom_call.1} parent=0
    _
  %s6 = ssub.s32 1, %s4
  %s7 = scalar_select 0, %s6, %s4
  $region1: #{tpu_custom_call.1} parent=0
    #allocation2 [shape = 'u8[294912]{0}', space=vmem, size = 0x48000, scoped, tag = 'output window, operand 0, single buffered']
    #allocation3 [shape = 's32[1]{0}', space=sflag, size = 0x4, scoped, tag = 'scoped memory for tpu_custom_call.1']
    %8 = vsyncpa [#allocation3], 0
    // Predicated region
    $region2: #{tpu_custom_call.1} parent=1 // pred_check
      _
    $region3: #{tpu_custom_call.1} parent=1 // pred_check_branch
      %10 = sbr.rel (0) target = $region5
    $region4: #{tpu_custom_call.1} parent=1 // pred_region
      _
    $region5: #{tpu_custom_call.1} parent=1 // pred_fallthru
      _
    // Predicated region
    $region6: #{tpu_custom_call.1} parent=1 // pred_check
      _
    $region7: #{tpu_custom_call.1} parent=1 // pred_check_branch
      %12 = sbr.rel (0) target = $region9
    $region8: #{tpu_custom_call.1} parent=1 // pred_region
      _
    $region9: #{tpu_custom_call.1} parent=1 // pred_fallthru
      _
    // Predicated region
    $region10: #{tpu_custom_call.1} parent=1 // pred_check
      _
    $region11: #{tpu_custom_call.1} parent=1 // pred_check_branch
      %14 = sbr.rel (0) target = $region13
    $region12: #{tpu_custom_call.1} parent=1 // pred_region
      _
    $region13: #{tpu_custom_call.1} parent=1 // pred_fallthru
      _
    %v15 = vld [vmem:[%s2] sm:$0xff]
    %v16 = vld [vmem:[%s2 + $0x8] sm:$0xff]
    %v17 = vld [vmem:[%s2 + $0x10] sm:$0xff]
    %v18 = vld [vmem:[%s2 + $0x18] sm:$0xff]
    %v19 = vld [vmem:[%s2 + $0x20] sm:$0xff]
    %v20 = vld [vmem:[%s2 + $0x28] sm:$0xff]
    %v21 = vld [vmem:[%s2 + $0x30] sm:$0xff]
    %v22 = vld [vmem:[%s2 + $0x38] sm:$0xff]
    %v23 = vld [vmem:[%s2 + $0x40] sm:$0xff]
    %v24 = vld [vmem:[%s2 + $0x48] sm:$0xff]
    %v25 = vld [vmem:[%s2 + $0x50] sm:$0xff]
    %v26 = vld [vmem:[%s2 + $0x58] sm:$0xff]
    %v27 = vld [vmem:[%s2 + $0x60] sm:$0xff]
    %v28 = vld [vmem:[%s2 + $0x68] sm:$0xff]
    %v29 = vld [vmem:[%s2 + $0x70] sm:$0xff]
    %v30 = vld [vmem:[%s2 + $0x78] sm:$0xff]
    %v31 = vld [vmem:[%s2 + $0x80] sm:$0xff]
    %v32 = vld [vmem:[%s2 + $0x88] sm:$0xff]
    %v33 = vld [vmem:[%s2 + $0x90] sm:$0xff]
    %v34 = vld [vmem:[%s2 + $0x98] sm:$0xff]
    %v35 = vld [vmem:[%s2 + $0xa0] sm:$0xff]
    %v36 = vld [vmem:[%s2 + $0xa8] sm:$0xff]
    %v37 = vld [vmem:[%s2 + $0xb0] sm:$0xff]
    %v38 = vld [vmem:[%s2 + $0xb8] sm:$0xff]
    %v39 = vld [vmem:[%s2 + $0xc0] sm:$0xff]
    %v40 = vld [vmem:[%s2 + $0xc8] sm:$0xff]
    %v41 = vld [vmem:[%s2 + $0xd0] sm:$0xff]
    %v42 = vld [vmem:[%s2 + $0xd8] sm:$0xff]
    %v43 = vld [vmem:[%s2 + $0xe0] sm:$0xff]
    %v44 = vld [vmem:[%s2 + $0xe8] sm:$0xff]
    %v45 = vld [vmem:[%s2 + $0xf0] sm:$0xff]
    %v46 = vld [vmem:[%s2 + $0xf8] sm:$0xff]
    %v47 = vld [vmem:[%s2 + $0x100] sm:$0xff]
    %v48 = vld [vmem:[%s2 + $0x108] sm:$0xff]
    %v49 = vld [vmem:[%s2 + $0x110] sm:$0xff]
    %v50 = vld [vmem:[%s2 + $0x118] sm:$0xff]
    %v51 = vld [vmem:[%s1] sm:$0xff]
    %v52 = vld [vmem:[%s1 + $0x8] sm:$0xff]
    %v53 = vld [vmem:[%s0] sm:$0xff]
    %v54 = vld [vmem:[%s0 + $0x8] sm:$0xff]
    %v55 = vld [vmem:[%s0 + $0x10] sm:$0xff]
    %v56 = vld [vmem:[%s0 + $0x18] sm:$0xff]
    %vm57 = vcmask 130048
    %v59 = vsel %vm57, %v15, 0
    %v62 = vsel %vm57, %v16, 0
    %64 = vmatprep.subr.mxu0 0.0
    %65 = vmatpush1.msra.mxu0 %v51
    %66 = vmatprep.subr.mxu0 0.0
    %67 = vmatpush1.msra.mxu0 %v52
    %68 = vmatprep.subr.mxu0 0.0
    %69 = vmatpush1.msra.mxu0 0.0
    %70 = vmatprep.subr.mxu0 0.0
    %71 = vmatpush1.msra.mxu0 0.0
    %72 = vmatprep.subr.mxu0 0.0
    %73 = vmatpush1.msra.mxu0 0.0
    %74 = vmatprep.subr.mxu0 0.0
    %75 = vmatpush1.msra.mxu0 0.0
    %76 = vmatprep.subr.mxu0 0.0
    %77 = vmatpush1.msra.mxu0 0.0
    %78 = vmatprep.subr.mxu0 0.0
    %79 = vmatpush1.msra.mxu0 0.0
    %80 = vmatprep.subr.mxu0 0.0
    %81 = vmatpush1.msra.mxu0 0.0
    %82 = vmatprep.subr.mxu0 0.0
    %83 = vmatpush1.msra.mxu0 0.0
    %84 = vmatprep.subr.mxu0 0.0
    %85 = vmatpush1.msra.mxu0 0.0
    %86 = vmatprep.subr.mxu0 0.0
    %87 = vmatpush1.msra.mxu0 0.0
    %88 = vmatprep.subr.mxu0 0.0
    %89 = vmatpush1.msra.mxu0 0.0
    %90 = vmatprep.subr.mxu0 0.0
    %91 = vmatpush1.msra.mxu0 0.0
    %92 = vmatprep.subr.mxu0 0.0
    %93 = vmatpush1.msra.mxu0 0.0
    %94 = vmatprep.subr.mxu0 0.0
    %95 = vmatpush1.msra.mxu0 0.0
    %96 = vmatprep.subr.mxu0 0.0
    %97 = vmatpush1.msra.mxu0 0.0
    %98 = vmatprep.subr.mxu0 0.0
    %99 = vmatpush1.msra.mxu0 0.0
    %100 = vmatprep.subr.mxu0 0.0
    %101 = vmatpush1.msra.mxu0 0.0
    %102 = vmatprep.subr.mxu0 0.0
    %103 = vmatpush1.msra.mxu0 0.0
    %104 = vmatprep.subr.mxu0 0.0
    %105 = vmatpush1.msra.mxu0 0.0
    %106 = vmatprep.subr.mxu0 0.0
    %107 = vmatpush1.msra.mxu0 0.0
    %108 = vmatprep.subr.mxu0 0.0
    %109 = vmatpush1.msra.mxu0 0.0
    %110 = vmatprep.subr.mxu0 0.0
    %111 = vmatpush1.msra.mxu0 0.0
    %112 = vmatprep.subr.mxu0 0.0
    %113 = vmatpush1.msra.mxu0 0.0
    %114 = vmatprep.subr.mxu0 0.0
    %115 = vmatpush1.msra.mxu0 0.0
    %116 = vmatprep.subr.mxu0 0.0
    %117 = vmatpush1.msra.mxu0 0.0
    %118 = vmatprep.subr.mxu0 0.0
    %119 = vmatpush1.msra.mxu0 0.0
    %120 = vmatprep.subr.mxu0 0.0
    %121 = vmatpush1.msra.mxu0 0.0
    %122 = vmatprep.subr.mxu0 0.0
    %123 = vmatpush1.msra.mxu0 0.0
    %124 = vmatprep.subr.mxu0 0.0
    %125 = vmatpush1.msra.mxu0 0.0
    %126 = vmatprep.subr.mxu0 0.0
    %127 = vmatpush1.msra.mxu0 0.0
    %128 = vmatprep.mubr.f32.mxu0 0.0
    %129 = vmatmul.mubr.f32.gmra.mrb[0].mxu0 %v59
    %v130 = vpop.f32.mrb[0].mxu0
    %v131 = vadd.f32 0.0, %v130
    %v132 = vpop.f32.mrb[0].mxu0
    %133 = vmatprep.mubr.f32.mxu0 0.0
    %134 = vmatmul.mubr.f32.gmra.mrb[0].mxu0 %v62
    %v135 = vpop.f32.mrb[0].mxu0
    %v136 = vadd.f32 0.0, %v135
    %v137 = vpop.f32.mrb[0].mxu0
    %138 = vdwg.mxu0
    %v140 = vsel %vm57, %v17, 0
    %v143 = vsel %vm57, %v18, 0
    %145 = vmatprep.subr.mxu0 0.0
    %146 = vmatpush1.msra.mxu0 %v51
    %147 = vmatprep.subr.mxu0 0.0
    %148 = vmatpush1.msra.mxu0 %v52
    %149 = vmatprep.subr.mxu0 0.0
    %150 = vmatpush1.msra.mxu0 0.0
    %151 = vmatprep.subr.mxu0 0.0
    %152 = vmatpush1.msra.mxu0 0.0
    %153 = vmatprep.subr.mxu0 0.0
    %154 = vmatpush1.msra.mxu0 0.0
    %155 = vmatprep.subr.mxu0 0.0
    %156 = vmatpush1.msra.mxu0 0.0
    %157 = vmatprep.subr.mxu0 0.0
    %158 = vmatpush1.msra.mxu0 0.0
    %159 = vmatprep.subr.mxu0 0.0
    %160 = vmatpush1.msra.mxu0 0.0
    %161 = vmatprep.subr.mxu0 0.0
    %162 = vmatpush1.msra.mxu0 0.0
    %163 = vmatprep.subr.mxu0 0.0
    %164 = vmatpush1.msra.mxu0 0.0
    %165 = vmatprep.subr.mxu0 0.0
    %166 = vmatpush1.msra.mxu0 0.0
    %167 = vmatprep.subr.mxu0 0.0
    %168 = vmatpush1.msra.mxu0 0.0
    %169 = vmatprep.subr.mxu0 0.0
    %170 = vmatpush1.msra.mxu0 0.0
    %171 = vmatprep.subr.mxu0 0.0
    %172 = vmatpush1.msra.mxu0 0.0
    %173 = vmatprep.subr.mxu0 0.0
    %174 = vmatpush1.msra.mxu0 0.0
    %175 = vmatprep.subr.mxu0 0.0
    %176 = vmatpush1.msra.mxu0 0.0
    %177 = vmatprep.subr.mxu0 0.0
    %178 = vmatpush1.msra.mxu0 0.0
    %179 = vmatprep.subr.mxu0 0.0
    %180 = vmatpush1.msra.mxu0 0.0
    %181 = vmatprep.subr.mxu0 0.0
    %182 = vmatpush1.msra.mxu0 0.0
    %183 = vmatprep.subr.mxu0 0.0
    %184 = vmatpush1.msra.mxu0 0.0
    %185 = vmatprep.subr.mxu0 0.0
    %186 = vmatpush1.msra.mxu0 0.0
    %187 = vmatprep.subr.mxu0 0.0
    %188 = vmatpush1.msra.mxu0 0.0
    %189 = vmatprep.subr.mxu0 0.0
    %190 = vmatpush1.msra.mxu0 0.0
    %191 = vmatprep.subr.mxu0 0.0
    %192 = vmatpush1.msra.mxu0 0.0
    %193 = vmatprep.subr.mxu0 0.0
    %194 = vmatpush1.msra.mxu0 0.0
    %195 = vmatprep.subr.mxu0 0.0
    %196 = vmatpush1.msra.mxu0 0.0
    %197 = vmatprep.subr.mxu0 0.0
    %198 = vmatpush1.msra.mxu0 0.0
    %199 = vmatprep.subr.mxu0 0.0
    %200 = vmatpush1.msra.mxu0 0.0
    %201 = vmatprep.subr.mxu0 0.0
    %202 = vmatpush1.msra.mxu0 0.0
    %203 = vmatprep.subr.mxu0 0.0
    %204 = vmatpush1.msra.mxu0 0.0
    %205 = vmatprep.subr.mxu0 0.0
    %206 = vmatpush1.msra.mxu0 0.0
    %207 = vmatprep.subr.mxu0 0.0
    %208 = vmatpush1.msra.mxu0 0.0
    %209 = vmatprep.mubr.f32.mxu0 0.0
    %210 = vmatmul.mubr.f32.gmra.mrb[0].mxu0 %v140
    %v211 = vpop.f32.mrb[0].mxu0
    %v212 = vadd.f32 0.0, %v211
    %v213 = vpop.f32.mrb[0].mxu0
    %214 = vmatprep.mubr.f32.mxu0 0.0
    %215 = vmatmul.mubr.f32.gmra.mrb[0].mxu0 %v143
    %v216 = vpop.f32.mrb[0].mxu0
    %v217 = vadd.f32 0.0, %v216
    %v218 = vpop.f32.mrb[0].mxu0
    %219 = vdwg.mxu0
    %v221 = vsel %vm57, %v19, 0
    %v224 = vsel %vm57, %v20, 0
    %226 = vmatprep.subr.mxu0 0.0
    %227 = vmatpush1.msra.mxu0 %v51
    %228 = vmatprep.subr.mxu0 0.0
    %229 = vmatpush1.msra.mxu0 %v52
    %230 = vmatprep.subr.mxu0 0.0
    %231 = vmatpush1.msra.mxu0 0.0
    %232 = vmatprep.subr.mxu0 0.0
    %233 = vmatpush1.msra.mxu0 0.0
    %234 = vmatprep.subr.mxu0 0.0
    %235 = vmatpush1.msra.mxu0 0.0
    %236 = vmatprep.subr.mxu0 0.0
    %237 = vmatpush1.msra.mxu0 0.0
    %238 = vmatprep.subr.mxu0 0.0
    %239 = vmatpush1.msra.mxu0 0.0
    %240 = vmatprep.subr.mxu0 0.0
    %241 = vmatpush1.msra.mxu0 0.0
    %242 = vmatprep.subr.mxu0 0.0
    %243 = vmatpush1.msra.mxu0 0.0
    %244 = vmatprep.subr.mxu0 0.0
    %245 = vmatpush1.msra.mxu0 0.0
    %246 = vmatprep.subr.mxu0 0.0
    %247 = vmatpush1.msra.mxu0 0.0
    %248 = vmatprep.subr.mxu0 0.0
    %249 = vmatpush1.msra.mxu0 0.0
    %250 = vmatprep.subr.mxu0 0.0
    %251 = vmatpush1.msra.mxu0 0.0
    %252 = vmatprep.subr.mxu0 0.0
    %253 = vmatpush1.msra.mxu0 0.0
    %254 = vmatprep.subr.mxu0 0.0
    %255 = vmatpush1.msra.mxu0 0.0
    %256 = vmatprep.subr.mxu0 0.0
    %257 = vmatpush1.msra.mxu0 0.0
    %258 = vmatprep.subr.mxu0 0.0
    %259 = vmatpush1.msra.mxu0 0.0
    %260 = vmatprep.subr.mxu0 0.0
    %261 = vmatpush1.msra.mxu0 0.0
    %262 = vmatprep.subr.mxu0 0.0
    %263 = vmatpush1.msra.mxu0 0.0
    %264 = vmatprep.subr.mxu0 0.0
    %265 = vmatpush1.msra.mxu0 0.0
    %266 = vmatprep.subr.mxu0 0.0
    %267 = vmatpush1.msra.mxu0 0.0
    %268 = vmatprep.subr.mxu0 0.0
    %269 = vmatpush1.msra.mxu0 0.0
    %270 = vmatprep.subr.mxu0 0.0
    %271 = vmatpush1.msra.mxu0 0.0
    %272 = vmatprep.subr.mxu0 0.0
    %273 = vmatpush1.msra.mxu0 0.0
    %274 = vmatprep.subr.mxu0 0.0
    %275 = vmatpush1.msra.mxu0 0.0
    %276 = vmatprep.subr.mxu0 0.0
    %277 = vmatpush1.msra.mxu0 0.0
    %278 = vmatprep.subr.mxu0 0.0
    %279 = vmatpush1.msra.mxu0 0.0
    %280 = vmatprep.subr.mxu0 0.0
    %281 = vmatpush1.msra.mxu0 0.0
    %282 = vmatprep.subr.mxu0 0.0
    %283 = vmatpush1.msra.mxu0 0.0
    %284 = vmatprep.subr.mxu0 0.0
    %285 = vmatpush1.msra.mxu0 0.0
    %286 = vmatprep.subr.mxu0 0.0
    %287 = vmatpush1.msra.mxu0 0.0
    %288 = vmatprep.subr.mxu0 0.0
    %289 = vmatpush1.msra.mxu0 0.0
    %290 = vmatprep.mubr.f32.mxu0 0.0
    %291 = vmatmul.mubr.f32.gmra.mrb[0].mxu0 %v221
    %v292 = vpop.f32.mrb[0].mxu0
    %v293 = vadd.f32 0.0, %v292
    %v294 = vpop.f32.mrb[0].mxu0
    %295 = vmatprep.mubr.f32.mxu0 0.0
    %296 = vmatmul.mubr.f32.gmra.mrb[0].mxu0 %v224
    %v297 = vpop.f32.mrb[0].mxu0
    %v298 = vadd.f32 0.0, %v297
    %v299 = vpop.f32.mrb[0].mxu0
    %300 = vdwg.mxu0
    %v302 = vsel %vm57, %v21, 0
    %v305 = vsel %vm57, %v22, 0
    %307 = vmatprep.subr.mxu0 0.0
    %308 = vmatpush1.msra.mxu0 %v51
    %309 = vmatprep.subr.mxu0 0.0
    %310 = vmatpush1.msra.mxu0 %v52
    %311 = vmatprep.subr.mxu0 0.0
    %312 = vmatpush1.msra.mxu0 0.0
    %313 = vmatprep.subr.mxu0 0.0
    %314 = vmatpush1.msra.mxu0 0.0
    %315 = vmatprep.subr.mxu0 0.0
    %316 = vmatpush1.msra.mxu0 0.0
    %317 = vmatprep.subr.mxu0 0.0
    %318 = vmatpush1.msra.mxu0 0.0
    %319 = vmatprep.subr.mxu0 0.0
    %320 = vmatpush1.msra.mxu0 0.0
    %321 = vmatprep.subr.mxu0 0.0
    %322 = vmatpush1.msra.mxu0 0.0
    %323 = vmatprep.subr.mxu0 0.0
    %324 = vmatpush1.msra.mxu0 0.0
    %325 = vmatprep.subr.mxu0 0.0
    %326 = vmatpush1.msra.mxu0 0.0
    %327 = vmatprep.subr.mxu0 0.0
    %328 = vmatpush1.msra.mxu0 0.0
    %329 = vmatprep.subr.mxu0 0.0
    %330 = vmatpush1.msra.mxu0 0.0
    %331 = vmatprep.subr.mxu0 0.0
    %332 = vmatpush1.msra.mxu0 0.0
    %333 = vmatprep.subr.mxu0 0.0
    %334 = vmatpush1.msra.mxu0 0.0
    %335 = vmatprep.subr.mxu0 0.0
    %336 = vmatpush1.msra.mxu0 0.0
    %337 = vmatprep.subr.mxu0 0.0
    %338 = vmatpush1.msra.mxu0 0.0
    %339 = vmatprep.subr.mxu0 0.0
    %340 = vmatpush1.msra.mxu0 0.0
    %341 = vmatprep.subr.mxu0 0.0
    %342 = vmatpush1.msra.mxu0 0.0
    %343 = vmatprep.subr.mxu0 0.0
    %344 = vmatpush1.msra.mxu0 0.0
    %345 = vmatprep.subr.mxu0 0.0
    %346 = vmatpush1.msra.mxu0 0.0
    %347 = vmatprep.subr.mxu0 0.0
    %348 = vmatpush1.msra.mxu0 0.0
    %349 = vmatprep.subr.mxu0 0.0
    %350 = vmatpush1.msra.mxu0 0.0
    %351 = vmatprep.subr.mxu0 0.0
    %352 = vmatpush1.msra.mxu0 0.0
    %353 = vmatprep.subr.mxu0 0.0
    %354 = vmatpush1.msra.mxu0 0.0
    %355 = vmatprep.subr.mxu0 0.0
    %356 = vmatpush1.msra.mxu0 0.0
    %357 = vmatprep.subr.mxu0 0.0
    %358 = vmatpush1.msra.mxu0 0.0
    %359 = vmatprep.subr.mxu0 0.0
    %360 = vmatpush1.msra.mxu0 0.0
    %361 = vmatprep.subr.mxu0 0.0
    %362 = vmatpush1.msra.mxu0 0.0
    %363 = vmatprep.subr.mxu0 0.0
    %364 = vmatpush1.msra.mxu0 0.0
    %365 = vmatprep.subr.mxu0 0.0
    %366 = vmatpush1.msra.mxu0 0.0
    %367 = vmatprep.subr.mxu0 0.0
    %368 = vmatpush1.msra.mxu0 0.0
    %369 = vmatprep.subr.mxu0 0.0
    %370 = vmatpush1.msra.mxu0 0.0
    %371 = vmatprep.mubr.f32.mxu0 0.0
    %372 = vmatmul.mubr.f32.gmra.mrb[0].mxu0 %v302
    %v373 = vpop.f32.mrb[0].mxu0
    %v374 = vadd.f32 0.0, %v373
    %v375 = vpop.f32.mrb[0].mxu0
    %376 = vmatprep.mubr.f32.mxu0 0.0
    %377 = vmatmul.mubr.f32.gmra.mrb[0].mxu0 %v305
    %v378 = vpop.f32.mrb[0].mxu0
    %v379 = vadd.f32 0.0, %v378
    %v380 = vpop.f32.mrb[0].mxu0
    %381 = vdwg.mxu0
    %v383 = vsel %vm57, %v23, 0
    %v386 = vsel %vm57, %v24, 0
    %388 = vmatprep.subr.mxu0 0.0
    %389 = vmatpush1.msra.mxu0 %v51
    %390 = vmatprep.subr.mxu0 0.0
    %391 = vmatpush1.msra.mxu0 %v52
    %392 = vmatprep.subr.mxu0 0.0
    %393 = vmatpush1.msra.mxu0 0.0
    %394 = vmatprep.subr.mxu0 0.0
    %395 = vmatpush1.msra.mxu0 0.0
    %396 = vmatprep.subr.mxu0 0.0
    %397 = vmatpush1.msra.mxu0 0.0
    %398 = vmatprep.subr.mxu0 0.0
    %399 = vmatpush1.msra.mxu0 0.0
    %400 = vmatprep.subr.mxu0 0.0
    %401 = vmatpush1.msra.mxu0 0.0
    %402 = vmatprep.subr.mxu0 0.0
    %403 = vmatpush1.msra.mxu0 0.0
    %404 = vmatprep.subr.mxu0 0.0
    %405 = vmatpush1.msra.mxu0 0.0
    %406 = vmatprep.subr.mxu0 0.0
    %407 = vmatpush1.msra.mxu0 0.0
    %408 = vmatprep.subr.mxu0 0.0
    %409 = vmatpush1.msra.mxu0 0.0
    %410 = vmatprep.subr.mxu0 0.0
    %411 = vmatpush1.msra.mxu0 0.0
    %412 = vmatprep.subr.mxu0 0.0
    %413 = vmatpush1.msra.mxu0 0.0
    %414 = vmatprep.subr.mxu0 0.0
    %415 = vmatpush1.msra.mxu0 0.0
    %416 = vmatprep.subr.mxu0 0.0
    %417 = vmatpush1.msra.mxu0 0.0
    %418 = vmatprep.subr.mxu0 0.0
    %419 = vmatpush1.msra.mxu0 0.0
    %420 = vmatprep.subr.mxu0 0.0
    %421 = vmatpush1.msra.mxu0 0.0
    %422 = vmatprep.subr.mxu0 0.0
    %423 = vmatpush1.msra.mxu0 0.0
    %424 = vmatprep.subr.mxu0 0.0
    %425 = vmatpush1.msra.mxu0 0.0
    %426 = vmatprep.subr.mxu0 0.0
    %427 = vmatpush1.msra.mxu0 0.0
    %428 = vmatprep.subr.mxu0 0.0
    %429 = vmatpush1.msra.mxu0 0.0
    %430 = vmatprep.subr.mxu0 0.0
    %431 = vmatpush1.msra.mxu0 0.0
    %432 = vmatprep.subr.mxu0 0.0
    %433 = vmatpush1.msra.mxu0 0.0
    %434 = vmatprep.subr.mxu0 0.0
    %435 = vmatpush1.msra.mxu0 0.0
    %436 = vmatprep.subr.mxu0 0.0
    %437 = vmatpush1.msra.mxu0 0.0
    %438 = vmatprep.subr.mxu0 0.0
    %439 = vmatpush1.msra.mxu0 0.0
    %440 = vmatprep.subr.mxu0 0.0
    %441 = vmatpush1.msra.mxu0 0.0
    %442 = vmatprep.subr.mxu0 0.0
    %443 = vmatpush1.msra.mxu0 0.0
    %444 = vmatprep.subr.mxu0 0.0
    %445 = vmatpush1.msra.mxu0 0.0
    %446 = vmatprep.subr.mxu0 0.0
    %447 = vmatpush1.msra.mxu0 0.0
    %448 = vmatprep.subr.mxu0 0.0
    %449 = vmatpush1.msra.mxu0 0.0
    %450 = vmatprep.subr.mxu0 0.0
    %451 = vmatpush1.msra.mxu0 0.0
    %452 = vmatprep.mubr.f32.mxu0 0.0
    %453 = vmatmul.mubr.f32.gmra.mrb[0].mxu0 %v383
    %v454 = vpop.f32.mrb[0].mxu0
    %v455 = vadd.f32 0.0, %v454
    %v456 = vpop.f32.mrb[0].mxu0
    %457 = vmatprep.mubr.f32.mxu0 0.0
    %458 = vmatmul.mubr.f32.gmra.mrb[0].mxu0 %v386
    %v459 = vpop.f32.mrb[0].mxu0
    %v460 = vadd.f32 0.0, %v459
    %v461 = vpop.f32.mrb[0].mxu0
    %462 = vdwg.mxu0
    %v464 = vsel %vm57, %v25, 0
    %v467 = vsel %vm57, %v26, 0
    %469 = vmatprep.subr.mxu0 0.0
    %470 = vmatpush1.msra.mxu0 %v51
    %471 = vmatprep.subr.mxu0 0.0
    %472 = vmatpush1.msra.mxu0 %v52
    %473 = vmatprep.subr.mxu0 0.0
    %474 = vmatpush1.msra.mxu0 0.0
    %475 = vmatprep.subr.mxu0 0.0
    %476 = vmatpush1.msra.mxu0 0.0
    %477 = vmatprep.subr.mxu0 0.0
    %478 = vmatpush1.msra.mxu0 0.0
    %479 = vmatprep.subr.mxu0 0.0
    %480 = vmatpush1.msra.mxu0 0.0
    %481 = vmatprep.subr.mxu0 0.0
    %482 = vmatpush1.msra.mxu0 0.0
    %483 = vmatprep.subr.mxu0 0.0
    %484 = vmatpush1.msra.mxu0 0.0
    %485 = vmatprep.subr.mxu0 0.0
    %486 = vmatpush1.msra.mxu0 0.0
    %487 = vmatprep.subr.mxu0 0.0
    %488 = vmatpush1.msra.mxu0 0.0
    %489 = vmatprep.subr.mxu0 0.0
    %490 = vmatpush1.msra.mxu0 0.0
    %491 = vmatprep.subr.mxu0 0.0
    %492 = vmatpush1.msra.mxu0 0.0
    %493 = vmatprep.subr.mxu0 0.0
    %494 = vmatpush1.msra.mxu0 0.0
    %495 = vmatprep.subr.mxu0 0.0
    %496 = vmatpush1.msra.mxu0 0.0
    %497 = vmatprep.subr.mxu0 0.0
    %498 = vmatpush1.msra.mxu0 0.0
    %499 = vmatprep.subr.mxu0 0.0
    %500 = vmatpush1.msra.mxu0 0.0
    %501 = vmatprep.subr.mxu0 0.0
    %502 = vmatpush1.msra.mxu0 0.0
    %503 = vmatprep.subr.mxu0 0.0
    %504 = vmatpush1.msra.mxu0 0.0
    %505 = vmatprep.subr.mxu0 0.0
    %506 = vmatpush1.msra.mxu0 0.0
    %507 = vmatprep.subr.mxu0 0.0
    %508 = vmatpush1.msra.mxu0 0.0
    %509 = vmatprep.subr.mxu0 0.0
    %510 = vmatpush1.msra.mxu0 0.0
    %511 = vmatprep.subr.mxu0 0.0
    %512 = vmatpush1.msra.mxu0 0.0
    %513 = vmatprep.subr.mxu0 0.0
    %514 = vmatpush1.msra.mxu0 0.0
    %515 = vmatprep.subr.mxu0 0.0
    %516 = vmatpush1.msra.mxu0 0.0
    %517 = vmatprep.subr.mxu0 0.0
    %518 = vmatpush1.msra.mxu0 0.0
    %519 = vmatprep.subr.mxu0 0.0
    %520 = vmatpush1.msra.mxu0 0.0
    %521 = vmatprep.subr.mxu0 0.0
    %522 = vmatpush1.msra.mxu0 0.0
    %523 = vmatprep.subr.mxu0 0.0
    %524 = vmatpush1.msra.mxu0 0.0
    %525 = vmatprep.subr.mxu0 0.0
    %526 = vmatpush1.msra.mxu0 0.0
    %527 = vmatprep.subr.mxu0 0.0
    %528 = vmatpush1.msra.mxu0 0.0
    %529 = vmatprep.subr.mxu0 0.0
    %530 = vmatpush1.msra.mxu0 0.0
    %531 = vmatprep.subr.mxu0 0.0
    %532 = vmatpush1.msra.mxu0 0.0
    %533 = vmatprep.mubr.f32.mxu0 0.0
    %534 = vmatmul.mubr.f32.gmra.mrb[0].mxu0 %v464
    %v535 = vpop.f32.mrb[0].mxu0
    %v536 = vadd.f32 0.0, %v535
    %v537 = vpop.f32.mrb[0].mxu0
    %538 = vmatprep.mubr.f32.mxu0 0.0
    %539 = vmatmul.mubr.f32.gmra.mrb[0].mxu0 %v467
    %v540 = vpop.f32.mrb[0].mxu0
    %v541 = vadd.f32 0.0, %v540
    %v542 = vpop.f32.mrb[0].mxu0
    %543 = vdwg.mxu0
    %v545 = vsel %vm57, %v27, 0
    %v548 = vsel %vm57, %v28, 0
    %550 = vmatprep.subr.mxu0 0.0
    %551 = vmatpush1.msra.mxu0 %v51
    %552 = vmatprep.subr.mxu0 0.0
    %553 = vmatpush1.msra.mxu0 %v52
    %554 = vmatprep.subr.mxu0 0.0
    %555 = vmatpush1.msra.mxu0 0.0
    %556 = vmatprep.subr.mxu0 0.0
    %557 = vmatpush1.msra.mxu0 0.0
    %558 = vmatprep.subr.mxu0 0.0
    %559 = vmatpush1.msra.mxu0 0.0
    %560 = vmatprep.subr.mxu0 0.0
    %561 = vmatpush1.msra.mxu0 0.0
    %562 = vmatprep.subr.mxu0 0.0
    %563 = vmatpush1.msra.mxu0 0.0
    %564 = vmatprep.subr.mxu0 0.0
    %565 = vmatpush1.msra.mxu0 0.0
    %566 = vmatprep.subr.mxu0 0.0
    %567 = vmatpush1.msra.mxu0 0.0
    %568 = vmatprep.subr.mxu0 0.0
    %569 = vmatpush1.msra.mxu0 0.0
    %570 = vmatprep.subr.mxu0 0.0
    %571 = vmatpush1.msra.mxu0 0.0
    %572 = vmatprep.subr.mxu0 0.0
    %573 = vmatpush1.msra.mxu0 0.0
    %574 = vmatprep.subr.mxu0 0.0
    %575 = vmatpush1.msra.mxu0 0.0
    %576 = vmatprep.subr.mxu0 0.0
    %577 = vmatpush1.msra.mxu0 0.0
    %578 = vmatprep.subr.mxu0 0.0
    %579 = vmatpush1.msra.mxu0 0.0
    %580 = vmatprep.subr.mxu0 0.0
    %581 = vmatpush1.msra.mxu0 0.0
    %582 = vmatprep.subr.mxu0 0.0
    %583 = vmatpush1.msra.mxu0 0.0
    %584 = vmatprep.subr.mxu0 0.0
    %585 = vmatpush1.msra.mxu0 0.0
    %586 = vmatprep.subr.mxu0 0.0
    %587 = vmatpush1.msra.mxu0 0.0
    %588 = vmatprep.subr.mxu0 0.0
    %589 = vmatpush1.msra.mxu0 0.0
    %590 = vmatprep.subr.mxu0 0.0
    %591 = vmatpush1.msra.mxu0 0.0
    %592 = vmatprep.subr.mxu0 0.0
    %593 = vmatpush1.msra.mxu0 0.0
    %594 = vmatprep.subr.mxu0 0.0
    %595 = vmatpush1.msra.mxu0 0.0
    %596 = vmatprep.subr.mxu0 0.0
    %597 = vmatpush1.msra.mxu0 0.0
    %598 = vmatprep.subr.mxu0 0.0
    %599 = vmatpush1.msra.mxu0 0.0
    %600 = vmatprep.subr.mxu0 0.0
    %601 = vmatpush1.msra.mxu0 0.0
    %602 = vmatprep.subr.mxu0 0.0
    %603 = vmatpush1.msra.mxu0 0.0
    %604 = vmatprep.subr.mxu0 0.0
    %605 = vmatpush1.msra.mxu0 0.0
    %606 = vmatprep.subr.mxu0 0.0
    %607 = vmatpush1.msra.mxu0 0.0
    %608 = vmatprep.subr.mxu0 0.0
    %609 = vmatpush1.msra.mxu0 0.0
    %610 = vmatprep.subr.mxu0 0.0
    %611 = vmatpush1.msra.mxu0 0.0
    %612 = vmatprep.subr.mxu0 0.0
    %613 = vmatpush1.msra.mxu0 0.0
    %614 = vmatprep.mubr.f32.mxu0 0.0
    %615 = vmatmul.mubr.f32.gmra.mrb[0].mxu0 %v545
    %v616 = vpop.f32.mrb[0].mxu0
    %v617 = vadd.f32 0.0, %v616
    %v618 = vpop.f32.mrb[0].mxu0
    %619 = vmatprep.mubr.f32.mxu0 0.0
    %620 = vmatmul.mubr.f32.gmra.mrb[0].mxu0 %v548
    %v621 = vpop.f32.mrb[0].mxu0
    %v622 = vadd.f32 0.0, %v621
    %v623 = vpop.f32.mrb[0].mxu0
    %624 = vdwg.mxu0
    %v626 = vsel %vm57, %v29, 0
    %v629 = vsel %vm57, %v30, 0
    %631 = vmatprep.subr.mxu0 0.0
    %632 = vmatpush1.msra.mxu0 %v51
    %633 = vmatprep.subr.mxu0 0.0
    %634 = vmatpush1.msra.mxu0 %v52
    %635 = vmatprep.subr.mxu0 0.0
    %636 = vmatpush1.msra.mxu0 0.0
    %637 = vmatprep.subr.mxu0 0.0
    %638 = vmatpush1.msra.mxu0 0.0
    %639 = vmatprep.subr.mxu0 0.0
    %640 = vmatpush1.msra.mxu0 0.0
    %641 = vmatprep.subr.mxu0 0.0
    %642 = vmatpush1.msra.mxu0 0.0
    %643 = vmatprep.subr.mxu0 0.0
    %644 = vmatpush1.msra.mxu0 0.0
    %645 = vmatprep.subr.mxu0 0.0
    %646 = vmatpush1.msra.mxu0 0.0
    %647 = vmatprep.subr.mxu0 0.0
    %648 = vmatpush1.msra.mxu0 0.0
    %649 = vmatprep.subr.mxu0 0.0
    %650 = vmatpush1.msra.mxu0 0.0
    %651 = vmatprep.subr.mxu0 0.0
    %652 = vmatpush1.msra.mxu0 0.0
    %653 = vmatprep.subr.mxu0 0.0
    %654 = vmatpush1.msra.mxu0 0.0
    %655 = vmatprep.subr.mxu0 0.0
    %656 = vmatpush1.msra.mxu0 0.0
    %657 = vmatprep.subr.mxu0 0.0
    %658 = vmatpush1.msra.mxu0 0.0
    %659 = vmatprep.subr.mxu0 0.0
    %660 = vmatpush1.msra.mxu0 0.0
    %661 = vmatprep.subr.mxu0 0.0
    %662 = vmatpush1.msra.mxu0 0.0
    %663 = vmatprep.subr.mxu0 0.0
    %664 = vmatpush1.msra.mxu0 0.0
    %665 = vmatprep.subr.mxu0 0.0
    %666 = vmatpush1.msra.mxu0 0.0
    %667 = vmatprep.subr.mxu0 0.0
    %668 = vmatpush1.msra.mxu0 0.0
    %669 = vmatprep.subr.mxu0 0.0
    %670 = vmatpush1.msra.mxu0 0.0
    %671 = vmatprep.subr.mxu0 0.0
    %672 = vmatpush1.msra.mxu0 0.0
    %673 = vmatprep.subr.mxu0 0.0
    %674 = vmatpush1.msra.mxu0 0.0
    %675 = vmatprep.subr.mxu0 0.0
    %676 = vmatpush1.msra.mxu0 0.0
    %677 = vmatprep.subr.mxu0 0.0
    %678 = vmatpush1.msra.mxu0 0.0
    %679 = vmatprep.subr.mxu0 0.0
    %680 = vmatpush1.msra.mxu0 0.0
    %681 = vmatprep.subr.mxu0 0.0
    %682 = vmatpush1.msra.mxu0 0.0
    %683 = vmatprep.subr.mxu0 0.0
    %684 = vmatpush1.msra.mxu0 0.0
    %685 = vmatprep.subr.mxu0 0.0
    %686 = vmatpush1.msra.mxu0 0.0
    %687 = vmatprep.subr.mxu0 0.0
    %688 = vmatpush1.msra.mxu0 0.0
    %689 = vmatprep.subr.mxu0 0.0
    %690 = vmatpush1.msra.mxu0 0.0
    %691 = vmatprep.subr.mxu0 0.0
    %692 = vmatpush1.msra.mxu0 0.0
    %693 = vmatprep.subr.mxu0 0.0
    %694 = vmatpush1.msra.mxu0 0.0
    %695 = vmatprep.mubr.f32.mxu0 0.0
    %696 = vmatmul.mubr.f32.gmra.mrb[0].mxu0 %v626
    %v697 = vpop.f32.mrb[0].mxu0
    %v698 = vadd.f32 0.0, %v697
    %v699 = vpop.f32.mrb[0].mxu0
    %700 = vmatprep.mubr.f32.mxu0 0.0
    %701 = vmatmul.mubr.f32.gmra.mrb[0].mxu0 %v629
    %v702 = vpop.f32.mrb[0].mxu0
    %v703 = vadd.f32 0.0, %v702
    %v704 = vpop.f32.mrb[0].mxu0
    %705 = vdwg.mxu0
    %v707 = vsel %vm57, %v31, 0
    %v710 = vsel %vm57, %v32, 0
    %712 = vmatprep.subr.mxu0 0.0
    %713 = vmatpush1.msra.mxu0 %v51
    %714 = vmatprep.subr.mxu0 0.0
    %715 = vmatpush1.msra.mxu0 %v52
    %716 = vmatprep.subr.mxu0 0.0
    %717 = vmatpush1.msra.mxu0 0.0
    %718 = vmatprep.subr.mxu0 0.0
    %719 = vmatpush1.msra.mxu0 0.0
    %720 = vmatprep.subr.mxu0 0.0
    %721 = vmatpush1.msra.mxu0 0.0
    %722 = vmatprep.subr.mxu0 0.0
    %723 = vmatpush1.msra.mxu0 0.0
    %724 = vmatprep.subr.mxu0 0.0
    %725 = vmatpush1.msra.mxu0 0.0
    %726 = vmatprep.subr.mxu0 0.0
    %727 = vmatpush1.msra.mxu0 0.0
    %728 = vmatprep.subr.mxu0 0.0
    %729 = vmatpush1.msra.mxu0 0.0
    %730 = vmatprep.subr.mxu0 0.0
    %731 = vmatpush1.msra.mxu0 0.0
    %732 = vmatprep.subr.mxu0 0.0
    %733 = vmatpush1.msra.mxu0 0.0
    %734 = vmatprep.subr.mxu0 0.0
    %735 = vmatpush1.msra.mxu0 0.0
    %736 = vmatprep.subr.mxu0 0.0
    %737 = vmatpush1.msra.mxu0 0.0
    %738 = vmatprep.subr.mxu0 0.0
    %739 = vmatpush1.msra.mxu0 0.0
    %740 = vmatprep.subr.mxu0 0.0
    %741 = vmatpush1.msra.mxu0 0.0
    %742 = vmatprep.subr.mxu0 0.0
    %743 = vmatpush1.msra.mxu0 0.0
    %744 = vmatprep.subr.mxu0 0.0
    %745 = vmatpush1.msra.mxu0 0.0
    %746 = vmatprep.subr.mxu0 0.0
    %747 = vmatpush1.msra.mxu0 0.0
    %748 = vmatprep.subr.mxu0 0.0
    %749 = vmatpush1.msra.mxu0 0.0
    %750 = vmatprep.subr.mxu0 0.0
    %751 = vmatpush1.msra.mxu0 0.0
    %752 = vmatprep.subr.mxu0 0.0
    %753 = vmatpush1.msra.mxu0 0.0
    %754 = vmatprep.subr.mxu0 0.0
    %755 = vmatpush1.msra.mxu0 0.0
    %756 = vmatprep.subr.mxu0 0.0
    %757 = vmatpush1.msra.mxu0 0.0
    %758 = vmatprep.subr.mxu0 0.0
    %759 = vmatpush1.msra.mxu0 0.0
    %760 = vmatprep.subr.mxu0 0.0
    %761 = vmatpush1.msra.mxu0 0.0
    %762 = vmatprep.subr.mxu0 0.0
    %763 = vmatpush1.msra.mxu0 0.0
    %764 = vmatprep.subr.mxu0 0.0
    %765 = vmatpush1.msra.mxu0 0.0
    %766 = vmatprep.subr.mxu0 0.0
    %767 = vmatpush1.msra.mxu0 0.0
    %768 = vmatprep.subr.mxu0 0.0
    %769 = vmatpush1.msra.mxu0 0.0
    %770 = vmatprep.subr.mxu0 0.0
    %771 = vmatpush1.msra.mxu0 0.0
    %772 = vmatprep.subr.mxu0 0.0
    %773 = vmatpush1.msra.mxu0 0.0
    %774 = vmatprep.subr.mxu0 0.0
    %775 = vmatpush1.msra.mxu0 0.0
    %776 = vmatprep.mubr.f32.mxu0 0.0
    %777 = vmatmul.mubr.f32.gmra.mrb[0].mxu0 %v707
    %v778 = vpop.f32.mrb[0].mxu0
    %v779 = vadd.f32 0.0, %v778
    %v780 = vpop.f32.mrb[0].mxu0
    %781 = vmatprep.mubr.f32.mxu0 0.0
    %782 = vmatmul.mubr.f32.gmra.mrb[0].mxu0 %v710
    %v783 = vpop.f32.mrb[0].mxu0
    %v784 = vadd.f32 0.0, %v783
    %v785 = vpop.f32.mrb[0].mxu0
    %786 = vdwg.mxu0
    %v788 = vsel %vm57, %v33, 0
    %v791 = vsel %vm57, %v34, 0
    %793 = vmatprep.subr.mxu0 0.0
    %794 = vmatpush1.msra.mxu0 %v51
    %795 = vmatprep.subr.mxu0 0.0
    %796 = vmatpush1.msra.mxu0 %v52
    %797 = vmatprep.subr.mxu0 0.0
    %798 = vmatpush1.msra.mxu0 0.0
    %799 = vmatprep.subr.mxu0 0.0
    %800 = vmatpush1.msra.mxu0 0.0
    %801 = vmatprep.subr.mxu0 0.0
    %802 = vmatpush1.msra.mxu0 0.0
    %803 = vmatprep.subr.mxu0 0.0
    %804 = vmatpush1.msra.mxu0 0.0
    %805 = vmatprep.subr.mxu0 0.0
    %806 = vmatpush1.msra.mxu0 0.0
    %807 = vmatprep.subr.mxu0 0.0
    %808 = vmatpush1.msra.mxu0 0.0
    %809 = vmatprep.subr.mxu0 0.0
    %810 = vmatpush1.msra.mxu0 0.0
    %811 = vmatprep.subr.mxu0 0.0
    %812 = vmatpush1.msra.mxu0 0.0
    %813 = vmatprep.subr.mxu0 0.0
    %814 = vmatpush1.msra.mxu0 0.0
    %815 = vmatprep.subr.mxu0 0.0
    %816 = vmatpush1.msra.mxu0 0.0
    %817 = vmatprep.subr.mxu0 0.0
    %818 = vmatpush1.msra.mxu0 0.0
    %819 = vmatprep.subr.mxu0 0.0
    %820 = vmatpush1.msra.mxu0 0.0
    %821 = vmatprep.subr.mxu0 0.0
    %822 = vmatpush1.msra.mxu0 0.0
    %823 = vmatprep.subr.mxu0 0.0
    %824 = vmatpush1.msra.mxu0 0.0
    %825 = vmatprep.subr.mxu0 0.0
    %826 = vmatpush1.msra.mxu0 0.0
    %827 = vmatprep.subr.mxu0 0.0
    %828 = vmatpush1.msra.mxu0 0.0
    %829 = vmatprep.subr.mxu0 0.0
    %830 = vmatpush1.msra.mxu0 0.0
    %831 = vmatprep.subr.mxu0 0.0
    %832 = vmatpush1.msra.mxu0 0.0
    %833 = vmatprep.subr.mxu0 0.0
    %834 = vmatpush1.msra.mxu0 0.0
    %835 = vmatprep.subr.mxu0 0.0
    %836 = vmatpush1.msra.mxu0 0.0
    %837 = vmatprep.subr.mxu0 0.0
    %838 = vmatpush1.msra.mxu0 0.0
    %839 = vmatprep.subr.mxu0 0.0
    %840 = vmatpush1.msra.mxu0 0.0
    %841 = vmatprep.subr.mxu0 0.0
    %842 = vmatpush1.msra.mxu0 0.0
    %843 = vmatprep.subr.mxu0 0.0
    %844 = vmatpush1.msra.mxu0 0.0
    %845 = vmatprep.subr.mxu0 0.0
    %846 = vmatpush1.msra.mxu0 0.0
    %847 = vmatprep.subr.mxu0 0.0
    %848 = vmatpush1.msra.mxu0 0.0
    %849 = vmatprep.subr.mxu0 0.0
    %850 = vmatpush1.msra.mxu0 0.0
    %851 = vmatprep.subr.mxu0 0.0
    %852 = vmatpush1.msra.mxu0 0.0
    %853 = vmatprep.subr.mxu0 0.0
    %854 = vmatpush1.msra.mxu0 0.0
    %855 = vmatprep.subr.mxu0 0.0
    %856 = vmatpush1.msra.mxu0 0.0
    %857 = vmatprep.mubr.f32.mxu0 0.0
    %858 = vmatmul.mubr.f32.gmra.mrb[0].mxu0 %v788
    %v859 = vpop.f32.mrb[0].mxu0
    %v860 = vadd.f32 0.0, %v859
    %v861 = vpop.f32.mrb[0].mxu0
    %862 = vmatprep.mubr.f32.mxu0 0.0
    %863 = vmatmul.mubr.f32.gmra.mrb[0].mxu0 %v791
    %v864 = vpop.f32.mrb[0].mxu0
    %v865 = vadd.f32 0.0, %v864
    %v866 = vpop.f32.mrb[0].mxu0
    %867 = vdwg.mxu0
    %v869 = vsel %vm57, %v35, 0
    %v872 = vsel %vm57, %v36, 0
    %874 = vmatprep.subr.mxu0 0.0
    %875 = vmatpush1.msra.mxu0 %v51
    %876 = vmatprep.subr.mxu0 0.0
    %877 = vmatpush1.msra.mxu0 %v52
    %878 = vmatprep.subr.mxu0 0.0
    %879 = vmatpush1.msra.mxu0 0.0
    %880 = vmatprep.subr.mxu0 0.0
    %881 = vmatpush1.msra.mxu0 0.0
    %882 = vmatprep.subr.mxu0 0.0
    %883 = vmatpush1.msra.mxu0 0.0
    %884 = vmatprep.subr.mxu0 0.0
    %885 = vmatpush1.msra.mxu0 0.0
    %886 = vmatprep.subr.mxu0 0.0
    %887 = vmatpush1.msra.mxu0 0.0
    %888 = vmatprep.subr.mxu0 0.0
    %889 = vmatpush1.msra.mxu0 0.0
    %890 = vmatprep.subr.mxu0 0.0
    %891 = vmatpush1.msra.mxu0 0.0
    %892 = vmatprep.subr.mxu0 0.0
    %893 = vmatpush1.msra.mxu0 0.0
    %894 = vmatprep.subr.mxu0 0.0
    %895 = vmatpush1.msra.mxu0 0.0
    %896 = vmatprep.subr.mxu0 0.0
    %897 = vmatpush1.msra.mxu0 0.0
    %898 = vmatprep.subr.mxu0 0.0
    %899 = vmatpush1.msra.mxu0 0.0
    %900 = vmatprep.subr.mxu0 0.0
    %901 = vmatpush1.msra.mxu0 0.0
    %902 = vmatprep.subr.mxu0 0.0
    %903 = vmatpush1.msra.mxu0 0.0
    %904 = vmatprep.subr.mxu0 0.0
    %905 = vmatpush1.msra.mxu0 0.0
    %906 = vmatprep.subr.mxu0 0.0
    %907 = vmatpush1.msra.mxu0 0.0
    %908 = vmatprep.subr.mxu0 0.0
    %909 = vmatpush1.msra.mxu0 0.0
    %910 = vmatprep.subr.mxu0 0.0
    %911 = vmatpush1.msra.mxu0 0.0
    %912 = vmatprep.subr.mxu0 0.0
    %913 = vmatpush1.msra.mxu0 0.0
    %914 = vmatprep.subr.mxu0 0.0
    %915 = vmatpush1.msra.mxu0 0.0
    %916 = vmatprep.subr.mxu0 0.0
    %917 = vmatpush1.msra.mxu0 0.0
    %918 = vmatprep.subr.mxu0 0.0
    %919 = vmatpush1.msra.mxu0 0.0
    %920 = vmatprep.subr.mxu0 0.0
    %921 = vmatpush1.msra.mxu0 0.0
    %922 = vmatprep.subr.mxu0 0.0
    %923 = vmatpush1.msra.mxu0 0.0
    %924 = vmatprep.subr.mxu0 0.0
    %925 = vmatpush1.msra.mxu0 0.0
    %926 = vmatprep.subr.mxu0 0.0
    %927 = vmatpush1.msra.mxu0 0.0
    %928 = vmatprep.subr.mxu0 0.0
    %929 = vmatpush1.msra.mxu0 0.0
    %930 = vmatprep.subr.mxu0 0.0
    %931 = vmatpush1.msra.mxu0 0.0
    %932 = vmatprep.subr.mxu0 0.0
    %933 = vmatpush1.msra.mxu0 0.0
    %934 = vmatprep.subr.mxu0 0.0
    %935 = vmatpush1.msra.mxu0 0.0
    %936 = vmatprep.subr.mxu0 0.0
    %937 = vmatpush1.msra.mxu0 0.0
    %938 = vmatprep.mubr.f32.mxu0 0.0
    %939 = vmatmul.mubr.f32.gmra.mrb[0].mxu0 %v869
    %v940 = vpop.f32.mrb[0].mxu0
    %v941 = vadd.f32 0.0, %v940
    %v942 = vpop.f32.mrb[0].mxu0
    %943 = vmatprep.mubr.f32.mxu0 0.0
    %944 = vmatmul.mubr.f32.gmra.mrb[0].mxu0 %v872
    %v945 = vpop.f32.mrb[0].mxu0
    %v946 = vadd.f32 0.0, %v945
    %v947 = vpop.f32.mrb[0].mxu0
    %948 = vdwg.mxu0
    %v950 = vsel %vm57, %v37, 0
    %v953 = vsel %vm57, %v38, 0
    %955 = vmatprep.subr.mxu0 0.0
    %956 = vmatpush1.msra.mxu0 %v51
    %957 = vmatprep.subr.mxu0 0.0
    %958 = vmatpush1.msra.mxu0 %v52
    %959 = vmatprep.subr.mxu0 0.0
    %960 = vmatpush1.msra.mxu0 0.0
    %961 = vmatprep.subr.mxu0 0.0
    %962 = vmatpush1.msra.mxu0 0.0
    %963 = vmatprep.subr.mxu0 0.0
    %964 = vmatpush1.msra.mxu0 0.0
    %965 = vmatprep.subr.mxu0 0.0
    %966 = vmatpush1.msra.mxu0 0.0
    %967 = vmatprep.subr.mxu0 0.0
    %968 = vmatpush1.msra.mxu0 0.0
    %969 = vmatprep.subr.mxu0 0.0
    %970 = vmatpush1.msra.mxu0 0.0
    %971 = vmatprep.subr.mxu0 0.0
    %972 = vmatpush1.msra.mxu0 0.0
    %973 = vmatprep.subr.mxu0 0.0
    %974 = vmatpush1.msra.mxu0 0.0
    %975 = vmatprep.subr.mxu0 0.0
    %976 = vmatpush1.msra.mxu0 0.0
    %977 = vmatprep.subr.mxu0 0.0
    %978 = vmatpush1.msra.mxu0 0.0
    %979 = vmatprep.subr.mxu0 0.0
    %980 = vmatpush1.msra.mxu0 0.0
    %981 = vmatprep.subr.mxu0 0.0
    %982 = vmatpush1.msra.mxu0 0.0
    %983 = vmatprep.subr.mxu0 0.0
    %984 = vmatpush1.msra.mxu0 0.0
    %985 = vmatprep.subr.mxu0 0.0
    %986 = vmatpush1.msra.mxu0 0.0
    %987 = vmatprep.subr.mxu0 0.0
    %988 = vmatpush1.msra.mxu0 0.0
    %989 = vmatprep.subr.mxu0 0.0
    %990 = vmatpush1.msra.mxu0 0.0
    %991 = vmatprep.subr.mxu0 0.0
    %992 = vmatpush1.msra.mxu0 0.0
    %993 = vmatprep.subr.mxu0 0.0
    %994 = vmatpush1.msra.mxu0 0.0
    %995 = vmatprep.subr.mxu0 0.0
    %996 = vmatpush1.msra.mxu0 0.0
    %997 = vmatprep.subr.mxu0 0.0
    %998 = vmatpush1.msra.mxu0 0.0
    %999 = vmatprep.subr.mxu0 0.0
    %1000 = vmatpush1.msra.mxu0 0.0
    %1001 = vmatprep.subr.mxu0 0.0
    %1002 = vmatpush1.msra.mxu0 0.0
    %1003 = vmatprep.subr.mxu0 0.0
    %1004 = vmatpush1.msra.mxu0 0.0
    %1005 = vmatprep.subr.mxu0 0.0
    %1006 = vmatpush1.msra.mxu0 0.0
    %1007 = vmatprep.subr.mxu0 0.0
    %1008 = vmatpush1.msra.mxu0 0.0
    %1009 = vmatprep.subr.mxu0 0.0
    %1010 = vmatpush1.msra.mxu0 0.0
    %1011 = vmatprep.subr.mxu0 0.0
    %1012 = vmatpush1.msra.mxu0 0.0
    %1013 = vmatprep.subr.mxu0 0.0
    %1014 = vmatpush1.msra.mxu0 0.0
    %1015 = vmatprep.subr.mxu0 0.0
    %1016 = vmatpush1.msra.mxu0 0.0
    %1017 = vmatprep.subr.mxu0 0.0
    %1018 = vmatpush1.msra.mxu0 0.0
    %1019 = vmatprep.mubr.f32.mxu0 0.0
    %1020 = vmatmul.mubr.f32.gmra.mrb[0].mxu0 %v950
    %v1021 = vpop.f32.mrb[0].mxu0
    %v1022 = vadd.f32 0.0, %v1021
    %v1023 = vpop.f32.mrb[0].mxu0
    %1024 = vmatprep.mubr.f32.mxu0 0.0
    %1025 = vmatmul.mubr.f32.gmra.mrb[0].mxu0 %v953
    %v1026 = vpop.f32.mrb[0].mxu0
    %v1027 = vadd.f32 0.0, %v1026
    %v1028 = vpop.f32.mrb[0].mxu0
    %1029 = vdwg.mxu0
    %v1031 = vsel %vm57, %v39, 0
    %v1034 = vsel %vm57, %v40, 0
    %1036 = vmatprep.subr.mxu0 0.0
    %1037 = vmatpush1.msra.mxu0 %v51
    %1038 = vmatprep.subr.mxu0 0.0
    %1039 = vmatpush1.msra.mxu0 %v52
    %1040 = vmatprep.subr.mxu0 0.0
    %1041 = vmatpush1.msra.mxu0 0.0
    %1042 = vmatprep.subr.mxu0 0.0
    %1043 = vmatpush1.msra.mxu0 0.0
    %1044 = vmatprep.subr.mxu0 0.0
    %1045 = vmatpush1.msra.mxu0 0.0
    %1046 = vmatprep.subr.mxu0 0.0
    %1047 = vmatpush1.msra.mxu0 0.0
    %1048 = vmatprep.subr.mxu0 0.0
    %1049 = vmatpush1.msra.mxu0 0.0
    %1050 = vmatprep.subr.mxu0 0.0
    %1051 = vmatpush1.msra.mxu0 0.0
    %1052 = vmatprep.subr.mxu0 0.0
    %1053 = vmatpush1.msra.mxu0 0.0
    %1054 = vmatprep.subr.mxu0 0.0
    %1055 = vmatpush1.msra.mxu0 0.0
    %1056 = vmatprep.subr.mxu0 0.0
    %1057 = vmatpush1.msra.mxu0 0.0
    %1058 = vmatprep.subr.mxu0 0.0
    %1059 = vmatpush1.msra.mxu0 0.0
    %1060 = vmatprep.subr.mxu0 0.0
    %1061 = vmatpush1.msra.mxu0 0.0
    %1062 = vmatprep.subr.mxu0 0.0
    %1063 = vmatpush1.msra.mxu0 0.0
    %1064 = vmatprep.subr.mxu0 0.0
    %1065 = vmatpush1.msra.mxu0 0.0
    %1066 = vmatprep.subr.mxu0 0.0
    %1067 = vmatpush1.msra.mxu0 0.0
    %1068 = vmatprep.subr.mxu0 0.0
    %1069 = vmatpush1.msra.mxu0 0.0
    %1070 = vmatprep.subr.mxu0 0.0
    %1071 = vmatpush1.msra.mxu0 0.0
    %1072 = vmatprep.subr.mxu0 0.0
    %1073 = vmatpush1.msra.mxu0 0.0
    %1074 = vmatprep.subr.mxu0 0.0
    %1075 = vmatpush1.msra.mxu0 0.0
    %1076 = vmatprep.subr.mxu0 0.0
    %1077 = vmatpush1.msra.mxu0 0.0
    %1078 = vmatprep.subr.mxu0 0.0
    %1079 = vmatpush1.msra.mxu0 0.0
    %1080 = vmatprep.subr.mxu0 0.0
    %1081 = vmatpush1.msra.mxu0 0.0
    %1082 = vmatprep.subr.mxu0 0.0
    %1083 = vmatpush1.msra.mxu0 0.0
    %1084 = vmatprep.subr.mxu0 0.0
    %1085 = vmatpush1.msra.mxu0 0.0
    %1086 = vmatprep.subr.mxu0 0.0
    %1087 = vmatpush1.msra.mxu0 0.0
    %1088 = vmatprep.subr.mxu0 0.0
    %1089 = vmatpush1.msra.mxu0 0.0
    %1090 = vmatprep.subr.mxu0 0.0
    %1091 = vmatpush1.msra.mxu0 0.0
    %1092 = vmatprep.subr.mxu0 0.0
    %1093 = vmatpush1.msra.mxu0 0.0
    %1094 = vmatprep.subr.mxu0 0.0
    %1095 = vmatpush1.msra.mxu0 0.0
    %1096 = vmatprep.subr.mxu0 0.0
    %1097 = vmatpush1.msra.mxu0 0.0
    %1098 = vmatprep.subr.mxu0 0.0
    %1099 = vmatpush1.msra.mxu0 0.0
    %1100 = vmatprep.mubr.f32.mxu0 0.0
    %1101 = vmatmul.mubr.f32.gmra.mrb[0].mxu0 %v1031
    %v1102 = vpop.f32.mrb[0].mxu0
    %v1103 = vadd.f32 0.0, %v1102
    %v1104 = vpop.f32.mrb[0].mxu0
    %1105 = vmatprep.mubr.f32.mxu0 0.0
    %1106 = vmatmul.mubr.f32.gmra.mrb[0].mxu0 %v1034
    %v1107 = vpop.f32.mrb[0].mxu0
    %v1108 = vadd.f32 0.0, %v1107
    %v1109 = vpop.f32.mrb[0].mxu0
    %1110 = vdwg.mxu0
    %v1112 = vsel %vm57, %v41, 0
    %v1115 = vsel %vm57, %v42, 0
    %1117 = vmatprep.subr.mxu0 0.0
    %1118 = vmatpush1.msra.mxu0 %v51
    %1119 = vmatprep.subr.mxu0 0.0
    %1120 = vmatpush1.msra.mxu0 %v52
    %1121 = vmatprep.subr.mxu0 0.0
    %1122 = vmatpush1.msra.mxu0 0.0
    %1123 = vmatprep.subr.mxu0 0.0
    %1124 = vmatpush1.msra.mxu0 0.0
    %1125 = vmatprep.subr.mxu0 0.0
    %1126 = vmatpush1.msra.mxu0 0.0
    %1127 = vmatprep.subr.mxu0 0.0
    %1128 = vmatpush1.msra.mxu0 0.0
    %1129 = vmatprep.subr.mxu0 0.0
    %1130 = vmatpush1.msra.mxu0 0.0
    %1131 = vmatprep.subr.mxu0 0.0
    %1132 = vmatpush1.msra.mxu0 0.0
    %1133 = vmatprep.subr.mxu0 0.0
    %1134 = vmatpush1.msra.mxu0 0.0
    %1135 = vmatprep.subr.mxu0 0.0
    %1136 = vmatpush1.msra.mxu0 0.0
    %1137 = vmatprep.subr.mxu0 0.0
    %1138 = vmatpush1.msra.mxu0 0.0
    %1139 = vmatprep.subr.mxu0 0.0
    %1140 = vmatpush1.msra.mxu0 0.0
    %1141 = vmatprep.subr.mxu0 0.0
    %1142 = vmatpush1.msra.mxu0 0.0
    %1143 = vmatprep.subr.mxu0 0.0
    %1144 = vmatpush1.msra.mxu0 0.0
    %1145 = vmatprep.subr.mxu0 0.0
    %1146 = vmatpush1.msra.mxu0 0.0
    %1147 = vmatprep.subr.mxu0 0.0
    %1148 = vmatpush1.msra.mxu0 0.0
    %1149 = vmatprep.subr.mxu0 0.0
    %1150 = vmatpush1.msra.mxu0 0.0
    %1151 = vmatprep.subr.mxu0 0.0
    %1152 = vmatpush1.msra.mxu0 0.0
    %1153 = vmatprep.subr.mxu0 0.0
    %1154 = vmatpush1.msra.mxu0 0.0
    %1155 = vmatprep.subr.mxu0 0.0
    %1156 = vmatpush1.msra.mxu0 0.0
    %1157 = vmatprep.subr.mxu0 0.0
    %1158 = vmatpush1.msra.mxu0 0.0
    %1159 = vmatprep.subr.mxu0 0.0
    %1160 = vmatpush1.msra.mxu0 0.0
    %1161 = vmatprep.subr.mxu0 0.0
    %1162 = vmatpush1.msra.mxu0 0.0
    %1163 = vmatprep.subr.mxu0 0.0
    %1164 = vmatpush1.msra.mxu0 0.0
    %1165 = vmatprep.subr.mxu0 0.0
    %1166 = vmatpush1.msra.mxu0 0.0
    %1167 = vmatprep.subr.mxu0 0.0
    %1168 = vmatpush1.msra.mxu0 0.0
    %1169 = vmatprep.subr.mxu0 0.0
    %1170 = vmatpush1.msra.mxu0 0.0
    %1171 = vmatprep.subr.mxu0 0.0
    %1172 = vmatpush1.msra.mxu0 0.0
    %1173 = vmatprep.subr.mxu0 0.0
    %1174 = vmatpush1.msra.mxu0 0.0
    %1175 = vmatprep.subr.mxu0 0.0
    %1176 = vmatpush1.msra.mxu0 0.0
    %1177 = vmatprep.subr.mxu0 0.0
    %1178 = vmatpush1.msra.mxu0 0.0
    %1179 = vmatprep.subr.mxu0 0.0
    %1180 = vmatpush1.msra.mxu0 0.0
    %1181 = vmatprep.mubr.f32.mxu0 0.0
    %1182 = vmatmul.mubr.f32.gmra.mrb[0].mxu0 %v1112
    %v1183 = vpop.f32.mrb[0].mxu0
    %v1184 = vadd.f32 0.0, %v1183
    %v1185 = vpop.f32.mrb[0].mxu0
    %1186 = vmatprep.mubr.f32.mxu0 0.0
    %1187 = vmatmul.mubr.f32.gmra.mrb[0].mxu0 %v1115
    %v1188 = vpop.f32.mrb[0].mxu0
    %v1189 = vadd.f32 0.0, %v1188
    %v1190 = vpop.f32.mrb[0].mxu0
    %1191 = vdwg.mxu0
    %v1193 = vsel %vm57, %v43, 0
    %v1196 = vsel %vm57, %v44, 0
    %1198 = vmatprep.subr.mxu0 0.0
    %1199 = vmatpush1.msra.mxu0 %v51
    %1200 = vmatprep.subr.mxu0 0.0
    %1201 = vmatpush1.msra.mxu0 %v52
    %1202 = vmatprep.subr.mxu0 0.0
    %1203 = vmatpush1.msra.mxu0 0.0
    %1204 = vmatprep.subr.mxu0 0.0
    %1205 = vmatpush1.msra.mxu0 0.0
    %1206 = vmatprep.subr.mxu0 0.0
    %1207 = vmatpush1.msra.mxu0 0.0
    %1208 = vmatprep.subr.mxu0 0.0
    %1209 = vmatpush1.msra.mxu0 0.0
    %1210 = vmatprep.subr.mxu0 0.0
    %1211 = vmatpush1.msra.mxu0 0.0
    %1212 = vmatprep.subr.mxu0 0.0
    %1213 = vmatpush1.msra.mxu0 0.0
    %1214 = vmatprep.subr.mxu0 0.0
    %1215 = vmatpush1.msra.mxu0 0.0
    %1216 = vmatprep.subr.mxu0 0.0
    %1217 = vmatpush1.msra.mxu0 0.0
    %1218 = vmatprep.subr.mxu0 0.0
    %1219 = vmatpush1.msra.mxu0 0.0
    %1220 = vmatprep.subr.mxu0 0.0
    %1221 = vmatpush1.msra.mxu0 0.0
    %1222 = vmatprep.subr.mxu0 0.0
    %1223 = vmatpush1.msra.mxu0 0.0
    %1224 = vmatprep.subr.mxu0 0.0
    %1225 = vmatpush1.msra.mxu0 0.0
    %1226 = vmatprep.subr.mxu0 0.0
    %1227 = vmatpush1.msra.mxu0 0.0
    %1228 = vmatprep.subr.mxu0 0.0
    %1229 = vmatpush1.msra.mxu0 0.0
    %1230 = vmatprep.subr.mxu0 0.0
    %1231 = vmatpush1.msra.mxu0 0.0
    %1232 = vmatprep.subr.mxu0 0.0
    %1233 = vmatpush1.msra.mxu0 0.0
    %1234 = vmatprep.subr.mxu0 0.0
    %1235 = vmatpush1.msra.mxu0 0.0
    %1236 = vmatprep.subr.mxu0 0.0
    %1237 = vmatpush1.msra.mxu0 0.0
    %1238 = vmatprep.subr.mxu0 0.0
    %1239 = vmatpush1.msra.mxu0 0.0
    %1240 = vmatprep.subr.mxu0 0.0
    %1241 = vmatpush1.msra.mxu0 0.0
    %1242 = vmatprep.subr.mxu0 0.0
    %1243 = vmatpush1.msra.mxu0 0.0
    %1244 = vmatprep.subr.mxu0 0.0
    %1245 = vmatpush1.msra.mxu0 0.0
    %1246 = vmatprep.subr.mxu0 0.0
    %1247 = vmatpush1.msra.mxu0 0.0
    %1248 = vmatprep.subr.mxu0 0.0
    %1249 = vmatpush1.msra.mxu0 0.0
    %1250 = vmatprep.subr.mxu0 0.0
    %1251 = vmatpush1.msra.mxu0 0.0
    %1252 = vmatprep.subr.mxu0 0.0
    %1253 = vmatpush1.msra.mxu0 0.0
    %1254 = vmatprep.subr.mxu0 0.0
    %1255 = vmatpush1.msra.mxu0 0.0
    %1256 = vmatprep.subr.mxu0 0.0
    %1257 = vmatpush1.msra.mxu0 0.0
    %1258 = vmatprep.subr.mxu0 0.0
    %1259 = vmatpush1.msra.mxu0 0.0
    %1260 = vmatprep.subr.mxu0 0.0
    %1261 = vmatpush1.msra.mxu0 0.0
    %1262 = vmatprep.mubr.f32.mxu0 0.0
    %1263 = vmatmul.mubr.f32.gmra.mrb[0].mxu0 %v1193
    %v1264 = vpop.f32.mrb[0].mxu0
    %v1265 = vadd.f32 0.0, %v1264
    %v1266 = vpop.f32.mrb[0].mxu0
    %1267 = vmatprep.mubr.f32.mxu0 0.0
    %1268 = vmatmul.mubr.f32.gmra.mrb[0].mxu0 %v1196
    %v1269 = vpop.f32.mrb[0].mxu0
    %v1270 = vadd.f32 0.0, %v1269
    %v1271 = vpop.f32.mrb[0].mxu0
    %1272 = vdwg.mxu0
    %v1274 = vsel %vm57, %v45, 0
    %v1277 = vsel %vm57, %v46, 0
    %1279 = vmatprep.subr.mxu0 0.0
    %1280 = vmatpush1.msra.mxu0 %v51
    %1281 = vmatprep.subr.mxu0 0.0
    %1282 = vmatpush1.msra.mxu0 %v52
    %1283 = vmatprep.subr.mxu0 0.0
    %1284 = vmatpush1.msra.mxu0 0.0
    %1285 = vmatprep.subr.mxu0 0.0
    %1286 = vmatpush1.msra.mxu0 0.0
    %1287 = vmatprep.subr.mxu0 0.0
    %1288 = vmatpush1.msra.mxu0 0.0
    %1289 = vmatprep.subr.mxu0 0.0
    %1290 = vmatpush1.msra.mxu0 0.0
    %1291 = vmatprep.subr.mxu0 0.0
    %1292 = vmatpush1.msra.mxu0 0.0
    %1293 = vmatprep.subr.mxu0 0.0
    %1294 = vmatpush1.msra.mxu0 0.0
    %1295 = vmatprep.subr.mxu0 0.0
    %1296 = vmatpush1.msra.mxu0 0.0
    %1297 = vmatprep.subr.mxu0 0.0
    %1298 = vmatpush1.msra.mxu0 0.0
    %1299 = vmatprep.subr.mxu0 0.0
    %1300 = vmatpush1.msra.mxu0 0.0
    %1301 = vmatprep.subr.mxu0 0.0
    %1302 = vmatpush1.msra.mxu0 0.0
    %1303 = vmatprep.subr.mxu0 0.0
    %1304 = vmatpush1.msra.mxu0 0.0
    %1305 = vmatprep.subr.mxu0 0.0
    %1306 = vmatpush1.msra.mxu0 0.0
    %1307 = vmatprep.subr.mxu0 0.0
    %1308 = vmatpush1.msra.mxu0 0.0
    %1309 = vmatprep.subr.mxu0 0.0
    %1310 = vmatpush1.msra.mxu0 0.0
    %1311 = vmatprep.subr.mxu0 0.0
    %1312 = vmatpush1.msra.mxu0 0.0
    %1313 = vmatprep.subr.mxu0 0.0
    %1314 = vmatpush1.msra.mxu0 0.0
    %1315 = vmatprep.subr.mxu0 0.0
    %1316 = vmatpush1.msra.mxu0 0.0
    %1317 = vmatprep.subr.mxu0 0.0
    %1318 = vmatpush1.msra.mxu0 0.0
    %1319 = vmatprep.subr.mxu0 0.0
    %1320 = vmatpush1.msra.mxu0 0.0
    %1321 = vmatprep.subr.mxu0 0.0
    %1322 = vmatpush1.msra.mxu0 0.0
    %1323 = vmatprep.subr.mxu0 0.0
    %1324 = vmatpush1.msra.mxu0 0.0
    %1325 = vmatprep.subr.mxu0 0.0
    %1326 = vmatpush1.msra.mxu0 0.0
    %1327 = vmatprep.subr.mxu0 0.0
    %1328 = vmatpush1.msra.mxu0 0.0
    %1329 = vmatprep.subr.mxu0 0.0
    %1330 = vmatpush1.msra.mxu0 0.0
    %1331 = vmatprep.subr.mxu0 0.0
    %1332 = vmatpush1.msra.mxu0 0.0
    %1333 = vmatprep.subr.mxu0 0.0
    %1334 = vmatpush1.msra.mxu0 0.0
    %1335 = vmatprep.subr.mxu0 0.0
    %1336 = vmatpush1.msra.mxu0 0.0
    %1337 = vmatprep.subr.mxu0 0.0
    %1338 = vmatpush1.msra.mxu0 0.0
    %1339 = vmatprep.subr.mxu0 0.0
    %1340 = vmatpush1.msra.mxu0 0.0
    %1341 = vmatprep.subr.mxu0 0.0
    %1342 = vmatpush1.msra.mxu0 0.0
    %1343 = vmatprep.mubr.f32.mxu0 0.0
    %1344 = vmatmul.mubr.f32.gmra.mrb[0].mxu0 %v1274
    %v1345 = vpop.f32.mrb[0].mxu0
    %v1346 = vadd.f32 0.0, %v1345
    %v1347 = vpop.f32.mrb[0].mxu0
    %1348 = vmatprep.mubr.f32.mxu0 0.0
    %1349 = vmatmul.mubr.f32.gmra.mrb[0].mxu0 %v1277
    %v1350 = vpop.f32.mrb[0].mxu0
    %v1351 = vadd.f32 0.0, %v1350
    %v1352 = vpop.f32.mrb[0].mxu0
    %1353 = vdwg.mxu0
    %v1355 = vsel %vm57, %v47, 0
    %v1358 = vsel %vm57, %v48, 0
    %1360 = vmatprep.subr.mxu0 0.0
    %1361 = vmatpush1.msra.mxu0 %v51
    %1362 = vmatprep.subr.mxu0 0.0
    %1363 = vmatpush1.msra.mxu0 %v52
    %1364 = vmatprep.subr.mxu0 0.0
    %1365 = vmatpush1.msra.mxu0 0.0
    %1366 = vmatprep.subr.mxu0 0.0
    %1367 = vmatpush1.msra.mxu0 0.0
    %1368 = vmatprep.subr.mxu0 0.0
    %1369 = vmatpush1.msra.mxu0 0.0
    %1370 = vmatprep.subr.mxu0 0.0
    %1371 = vmatpush1.msra.mxu0 0.0
    %1372 = vmatprep.subr.mxu0 0.0
    %1373 = vmatpush1.msra.mxu0 0.0
    %1374 = vmatprep.subr.mxu0 0.0
    %1375 = vmatpush1.msra.mxu0 0.0
    %1376 = vmatprep.subr.mxu0 0.0
    %1377 = vmatpush1.msra.mxu0 0.0
    %1378 = vmatprep.subr.mxu0 0.0
    %1379 = vmatpush1.msra.mxu0 0.0
    %1380 = vmatprep.subr.mxu0 0.0
    %1381 = vmatpush1.msra.mxu0 0.0
    %1382 = vmatprep.subr.mxu0 0.0
    %1383 = vmatpush1.msra.mxu0 0.0
    %1384 = vmatprep.subr.mxu0 0.0
    %1385 = vmatpush1.msra.mxu0 0.0
    %1386 = vmatprep.subr.mxu0 0.0
    %1387 = vmatpush1.msra.mxu0 0.0
    %1388 = vmatprep.subr.mxu0 0.0
    %1389 = vmatpush1.msra.mxu0 0.0
    %1390 = vmatprep.subr.mxu0 0.0
    %1391 = vmatpush1.msra.mxu0 0.0
    %1392 = vmatprep.subr.mxu0 0.0
    %1393 = vmatpush1.msra.mxu0 0.0
    %1394 = vmatprep.subr.mxu0 0.0
    %1395 = vmatpush1.msra.mxu0 0.0
    %1396 = vmatprep.subr.mxu0 0.0
    %1397 = vmatpush1.msra.mxu0 0.0
    %1398 = vmatprep.subr.mxu0 0.0
    %1399 = vmatpush1.msra.mxu0 0.0
    %1400 = vmatprep.subr.mxu0 0.0
    %1401 = vmatpush1.msra.mxu0 0.0
    %1402 = vmatprep.subr.mxu0 0.0
    %1403 = vmatpush1.msra.mxu0 0.0
    %1404 = vmatprep.subr.mxu0 0.0
    %1405 = vmatpush1.msra.mxu0 0.0
    %1406 = vmatprep.subr.mxu0 0.0
    %1407 = vmatpush1.msra.mxu0 0.0
    %1408 = vmatprep.subr.mxu0 0.0
    %1409 = vmatpush1.msra.mxu0 0.0
    %1410 = vmatprep.subr.mxu0 0.0
    %1411 = vmatpush1.msra.mxu0 0.0
    %1412 = vmatprep.subr.mxu0 0.0
    %1413 = vmatpush1.msra.mxu0 0.0
    %1414 = vmatprep.subr.mxu0 0.0
    %1415 = vmatpush1.msra.mxu0 0.0
    %1416 = vmatprep.subr.mxu0 0.0
    %1417 = vmatpush1.msra.mxu0 0.0
    %1418 = vmatprep.subr.mxu0 0.0
    %1419 = vmatpush1.msra.mxu0 0.0
    %1420 = vmatprep.subr.mxu0 0.0
    %1421 = vmatpush1.msra.mxu0 0.0
    %1422 = vmatprep.subr.mxu0 0.0
    %1423 = vmatpush1.msra.mxu0 0.0
    %1424 = vmatprep.mubr.f32.mxu0 0.0
    %1425 = vmatmul.mubr.f32.gmra.mrb[0].mxu0 %v1355
    %v1426 = vpop.f32.mrb[0].mxu0
    %v1427 = vadd.f32 0.0, %v1426
    %v1428 = vpop.f32.mrb[0].mxu0
    %1429 = vmatprep.mubr.f32.mxu0 0.0
    %1430 = vmatmul.mubr.f32.gmra.mrb[0].mxu0 %v1358
    %v1431 = vpop.f32.mrb[0].mxu0
    %v1432 = vadd.f32 0.0, %v1431
    %v1433 = vpop.f32.mrb[0].mxu0
    %1434 = vdwg.mxu0
    %v1436 = vsel %vm57, %v49, 0
    %v1439 = vsel %vm57, %v50, 0
    %1441 = vmatprep.subr.mxu0 0.0
    %1442 = vmatpush1.msra.mxu0 %v51
    %1443 = vmatprep.subr.mxu0 0.0
    %1444 = vmatpush1.msra.mxu0 %v52
    %1445 = vmatprep.subr.mxu0 0.0
    %1446 = vmatpush1.msra.mxu0 0.0
    %1447 = vmatprep.subr.mxu0 0.0
    %1448 = vmatpush1.msra.mxu0 0.0
    %1449 = vmatprep.subr.mxu0 0.0
    %1450 = vmatpush1.msra.mxu0 0.0
    %1451 = vmatprep.subr.mxu0 0.0
    %1452 = vmatpush1.msra.mxu0 0.0
    %1453 = vmatprep.subr.mxu0 0.0
    %1454 = vmatpush1.msra.mxu0 0.0
    %1455 = vmatprep.subr.mxu0 0.0
    %1456 = vmatpush1.msra.mxu0 0.0
    %1457 = vmatprep.subr.mxu0 0.0
    %1458 = vmatpush1.msra.mxu0 0.0
    %1459 = vmatprep.subr.mxu0 0.0
    %1460 = vmatpush1.msra.mxu0 0.0
    %1461 = vmatprep.subr.mxu0 0.0
    %1462 = vmatpush1.msra.mxu0 0.0
    %1463 = vmatprep.subr.mxu0 0.0
    %1464 = vmatpush1.msra.mxu0 0.0
    %1465 = vmatprep.subr.mxu0 0.0
    %1466 = vmatpush1.msra.mxu0 0.0
    %1467 = vmatprep.subr.mxu0 0.0
    %1468 = vmatpush1.msra.mxu0 0.0
    %1469 = vmatprep.subr.mxu0 0.0
    %1470 = vmatpush1.msra.mxu0 0.0
    %1471 = vmatprep.subr.mxu0 0.0
    %1472 = vmatpush1.msra.mxu0 0.0
    %1473 = vmatprep.subr.mxu0 0.0
    %1474 = vmatpush1.msra.mxu0 0.0
    %1475 = vmatprep.subr.mxu0 0.0
    %1476 = vmatpush1.msra.mxu0 0.0
    %1477 = vmatprep.subr.mxu0 0.0
    %1478 = vmatpush1.msra.mxu0 0.0
    %1479 = vmatprep.subr.mxu0 0.0
    %1480 = vmatpush1.msra.mxu0 0.0
    %1481 = vmatprep.subr.mxu0 0.0
    %1482 = vmatpush1.msra.mxu0 0.0
    %1483 = vmatprep.subr.mxu0 0.0
    %1484 = vmatpush1.msra.mxu0 0.0
    %1485 = vmatprep.subr.mxu0 0.0
    %1486 = vmatpush1.msra.mxu0 0.0
    %1487 = vmatprep.subr.mxu0 0.0
    %1488 = vmatpush1.msra.mxu0 0.0
    %1489 = vmatprep.subr.mxu0 0.0
    %1490 = vmatpush1.msra.mxu0 0.0
    %1491 = vmatprep.subr.mxu0 0.0
    %1492 = vmatpush1.msra.mxu0 0.0
    %1493 = vmatprep.subr.mxu0 0.0
    %1494 = vmatpush1.msra.mxu0 0.0
    %1495 = vmatprep.subr.mxu0 0.0
    %1496 = vmatpush1.msra.mxu0 0.0
    %1497 = vmatprep.subr.mxu0 0.0
    %1498 = vmatpush1.msra.mxu0 0.0
    %1499 = vmatprep.subr.mxu0 0.0
    %1500 = vmatpush1.msra.mxu0 0.0
    %1501 = vmatprep.subr.mxu0 0.0
    %1502 = vmatpush1.msra.mxu0 0.0
    %1503 = vmatprep.subr.mxu0 0.0
    %1504 = vmatpush1.msra.mxu0 0.0
    %1505 = vmatprep.mubr.f32.mxu0 0.0
    %1506 = vmatmul.mubr.f32.gmra.mrb[0].mxu0 %v1436
    %v1507 = vpop.f32.mrb[0].mxu0
    %v1508 = vadd.f32 0.0, %v1507
    %v1509 = vpop.f32.mrb[0].mxu0
    %1510 = vmatprep.mubr.f32.mxu0 0.0
    %1511 = vmatmul.mubr.f32.gmra.mrb[0].mxu0 %v1439
    %v1512 = vpop.f32.mrb[0].mxu0
    %v1513 = vadd.f32 0.0, %v1512
    %v1514 = vpop.f32.mrb[0].mxu0
    %1515 = vdwg.mxu0
    %v1517 = vsel %vm57, %v53, 0
    %v1520 = vsel %vm57, %v54, 0
    %v1523 = vsel %vm57, %v55, 0
    %v1526 = vsel %vm57, %v56, 0
    %1528 = vmatprep.subr.mxu0 0.0
    %1529 = vmatpush1.msra.mxu0 %v131
    %1530 = vmatprep.subr.mxu0 0.0
    %1531 = vmatpush1.msra.mxu0 %v136
    %1532 = vmatprep.subr.mxu0 0.0
    %1533 = vmatpush1.msra.mxu0 0.0
    %1534 = vmatprep.subr.mxu0 0.0
    %1535 = vmatpush1.msra.mxu0 0.0
    %1536 = vmatprep.subr.mxu0 0.0
    %1537 = vmatpush1.msra.mxu0 0.0
    %1538 = vmatprep.subr.mxu0 0.0
    %1539 = vmatpush1.msra.mxu0 0.0
    %1540 = vmatprep.subr.mxu0 0.0
    %1541 = vmatpush1.msra.mxu0 0.0
    %1542 = vmatprep.subr.mxu0 0.0
    %1543 = vmatpush1.msra.mxu0 0.0
    %1544 = vmatprep.subr.mxu0 0.0
    %1545 = vmatpush1.msra.mxu0 0.0
    %1546 = vmatprep.subr.mxu0 0.0
    %1547 = vmatpush1.msra.mxu0 0.0
    %1548 = vmatprep.subr.mxu0 0.0
    %1549 = vmatpush1.msra.mxu0 0.0
    %1550 = vmatprep.subr.mxu0 0.0
    %1551 = vmatpush1.msra.mxu0 0.0
    %1552 = vmatprep.subr.mxu0 0.0
    %1553 = vmatpush1.msra.mxu0 0.0
    %1554 = vmatprep.subr.mxu0 0.0
    %1555 = vmatpush1.msra.mxu0 0.0
    %1556 = vmatprep.subr.mxu0 0.0
    %1557 = vmatpush1.msra.mxu0 0.0
    %1558 = vmatprep.subr.mxu0 0.0
    %1559 = vmatpush1.msra.mxu0 0.0
    %1560 = vmatprep.subr.mxu0 0.0
    %1561 = vmatpush1.msra.mxu0 0.0
    %1562 = vmatprep.subr.mxu0 0.0
    %1563 = vmatpush1.msra.mxu0 0.0
    %1564 = vmatprep.subr.mxu0 0.0
    %1565 = vmatpush1.msra.mxu0 0.0
    %1566 = vmatprep.subr.mxu0 0.0
    %1567 = vmatpush1.msra.mxu0 0.0
    %1568 = vmatprep.subr.mxu0 0.0
    %1569 = vmatpush1.msra.mxu0 0.0
    %1570 = vmatprep.subr.mxu0 0.0
    %1571 = vmatpush1.msra.mxu0 0.0
    %1572 = vmatprep.subr.mxu0 0.0
    %1573 = vmatpush1.msra.mxu0 0.0
    %1574 = vmatprep.subr.mxu0 0.0
    %1575 = vmatpush1.msra.mxu0 0.0
    %1576 = vmatprep.subr.mxu0 0.0
    %1577 = vmatpush1.msra.mxu0 0.0
    %1578 = vmatprep.subr.mxu0 0.0
    %1579 = vmatpush1.msra.mxu0 0.0
    %1580 = vmatprep.subr.mxu0 0.0
    %1581 = vmatpush1.msra.mxu0 0.0
    %1582 = vmatprep.subr.mxu0 0.0
    %1583 = vmatpush1.msra.mxu0 0.0
    %1584 = vmatprep.subr.mxu0 0.0
    %1585 = vmatpush1.msra.mxu0 0.0
    %1586 = vmatprep.subr.mxu0 0.0
    %1587 = vmatpush1.msra.mxu0 0.0
    %1588 = vmatprep.subr.mxu0 0.0
    %1589 = vmatpush1.msra.mxu0 0.0
    %1590 = vmatprep.subr.mxu0 0.0
    %1591 = vmatpush1.msra.mxu0 0.0
    %1592 = vmatprep.mubr.f32.mxu0 0.0
    %1593 = vmatmul.mubr.f32.gmra.mrb[0].mxu0 %v1517
    %v1594 = vpop.f32.mrb[0].mxu0
    %v1595 = vadd.f32 0.0, %v1594
    %v1596 = vpop.f32.mrb[0].mxu0
    %1597 = vmatprep.mubr.f32.mxu0 0.0
    %1598 = vmatmul.mubr.f32.gmra.mrb[0].mxu0 %v1520
    %v1599 = vpop.f32.mrb[0].mxu0
    %v1600 = vadd.f32 0.0, %v1599
    %v1601 = vpop.f32.mrb[0].mxu0
    %1602 = vmatprep.mubr.f32.mxu0 0.0
    %1603 = vmatmul.mubr.f32.gmra.mrb[0].mxu0 %v1523
    %v1604 = vpop.f32.mrb[0].mxu0
    %v1605 = vadd.f32 0.0, %v1604
    %v1606 = vpop.f32.mrb[0].mxu0
    %1607 = vmatprep.mubr.f32.mxu0 0.0
    %1608 = vmatmul.mubr.f32.gmra.mrb[0].mxu0 %v1526
    %v1609 = vpop.f32.mrb[0].mxu0
    %v1610 = vadd.f32 0.0, %v1609
    %v1611 = vpop.f32.mrb[0].mxu0
    %1612 = vdwg.mxu0
    %1613 = vmatprep.subr.mxu0 0.0
    %1614 = vmatpush1.msra.mxu0 %v212
    %1615 = vmatprep.subr.mxu0 0.0
    %1616 = vmatpush1.msra.mxu0 %v217
    %1617 = vmatprep.subr.mxu0 0.0
    %1618 = vmatpush1.msra.mxu0 0.0
    %1619 = vmatprep.subr.mxu0 0.0
    %1620 = vmatpush1.msra.mxu0 0.0
    %1621 = vmatprep.subr.mxu0 0.0
    %1622 = vmatpush1.msra.mxu0 0.0
    %1623 = vmatprep.subr.mxu0 0.0
    %1624 = vmatpush1.msra.mxu0 0.0
    %1625 = vmatprep.subr.mxu0 0.0
    %1626 = vmatpush1.msra.mxu0 0.0
    %1627 = vmatprep.subr.mxu0 0.0
    %1628 = vmatpush1.msra.mxu0 0.0
    %1629 = vmatprep.subr.mxu0 0.0
    %1630 = vmatpush1.msra.mxu0 0.0
    %1631 = vmatprep.subr.mxu0 0.0
    %1632 = vmatpush1.msra.mxu0 0.0
    %1633 = vmatprep.subr.mxu0 0.0
    %1634 = vmatpush1.msra.mxu0 0.0
    %1635 = vmatprep.subr.mxu0 0.0
    %1636 = vmatpush1.msra.mxu0 0.0
    %1637 = vmatprep.subr.mxu0 0.0
    %1638 = vmatpush1.msra.mxu0 0.0
    %1639 = vmatprep.subr.mxu0 0.0
    %1640 = vmatpush1.msra.mxu0 0.0
    %1641 = vmatprep.subr.mxu0 0.0
    %1642 = vmatpush1.msra.mxu0 0.0
    %1643 = vmatprep.subr.mxu0 0.0
    %1644 = vmatpush1.msra.mxu0 0.0
    %1645 = vmatprep.subr.mxu0 0.0
    %1646 = vmatpush1.msra.mxu0 0.0
    %1647 = vmatprep.subr.mxu0 0.0
    %1648 = vmatpush1.msra.mxu0 0.0
    %1649 = vmatprep.subr.mxu0 0.0
    %1650 = vmatpush1.msra.mxu0 0.0
    %1651 = vmatprep.subr.mxu0 0.0
    %1652 = vmatpush1.msra.mxu0 0.0
    %1653 = vmatprep.subr.mxu0 0.0
    %1654 = vmatpush1.msra.mxu0 0.0
    %1655 = vmatprep.subr.mxu0 0.0
    %1656 = vmatpush1.msra.mxu0 0.0
    %1657 = vmatprep.subr.mxu0 0.0
    %1658 = vmatpush1.msra.mxu0 0.0
    %1659 = vmatprep.subr.mxu0 0.0
    %1660 = vmatpush1.msra.mxu0 0.0
    %1661 = vmatprep.subr.mxu0 0.0
    %1662 = vmatpush1.msra.mxu0 0.0
    %1663 = vmatprep.subr.mxu0 0.0
    %1664 = vmatpush1.msra.mxu0 0.0
    %1665 = vmatprep.subr.mxu0 0.0
    %1666 = vmatpush1.msra.mxu0 0.0
    %1667 = vmatprep.subr.mxu0 0.0
    %1668 = vmatpush1.msra.mxu0 0.0
    %1669 = vmatprep.subr.mxu0 0.0
    %1670 = vmatpush1.msra.mxu0 0.0
    %1671 = vmatprep.subr.mxu0 0.0
    %1672 = vmatpush1.msra.mxu0 0.0
    %1673 = vmatprep.subr.mxu0 0.0
    %1674 = vmatpush1.msra.mxu0 0.0
    %1675 = vmatprep.subr.mxu0 0.0
    %1676 = vmatpush1.msra.mxu0 0.0
    %1677 = vmatprep.mubr.f32.mxu0 0.0
    %1678 = vmatmul.mubr.f32.gmra.mrb[0].mxu0 %v1517
    %v1679 = vpop.f32.mrb[0].mxu0
    %v1680 = vadd.f32 0.0, %v1679
    %v1681 = vpop.f32.mrb[0].mxu0
    %1682 = vmatprep.mubr.f32.mxu0 0.0
    %1683 = vmatmul.mubr.f32.gmra.mrb[0].mxu0 %v1520
    %v1684 = vpop.f32.mrb[0].mxu0
    %v1685 = vadd.f32 0.0, %v1684
    %v1686 = vpop.f32.mrb[0].mxu0
    %1687 = vmatprep.mubr.f32.mxu0 0.0
    %1688 = vmatmul.mubr.f32.gmra.mrb[0].mxu0 %v1523
    %v1689 = vpop.f32.mrb[0].mxu0
    %v1690 = vadd.f32 0.0, %v1689
    %v1691 = vpop.f32.mrb[0].mxu0
    %1692 = vmatprep.mubr.f32.mxu0 0.0
    %1693 = vmatmul.mubr.f32.gmra.mrb[0].mxu0 %v1526
    %v1694 = vpop.f32.mrb[0].mxu0
    %v1695 = vadd.f32 0.0, %v1694
    %v1696 = vpop.f32.mrb[0].mxu0
    %1697 = vdwg.mxu0
    %1698 = vmatprep.subr.mxu0 0.0
    %1699 = vmatpush1.msra.mxu0 %v293
    %1700 = vmatprep.subr.mxu0 0.0
    %1701 = vmatpush1.msra.mxu0 %v298
    %1702 = vmatprep.subr.mxu0 0.0
    %1703 = vmatpush1.msra.mxu0 0.0
    %1704 = vmatprep.subr.mxu0 0.0
    %1705 = vmatpush1.msra.mxu0 0.0
    %1706 = vmatprep.subr.mxu0 0.0
    %1707 = vmatpush1.msra.mxu0 0.0
    %1708 = vmatprep.subr.mxu0 0.0
    %1709 = vmatpush1.msra.mxu0 0.0
    %1710 = vmatprep.subr.mxu0 0.0
    %1711 = vmatpush1.msra.mxu0 0.0
    %1712 = vmatprep.subr.mxu0 0.0
    %1713 = vmatpush1.msra.mxu0 0.0
    %1714 = vmatprep.subr.mxu0 0.0
    %1715 = vmatpush1.msra.mxu0 0.0
    %1716 = vmatprep.subr.mxu0 0.0
    %1717 = vmatpush1.msra.mxu0 0.0
    %1718 = vmatprep.subr.mxu0 0.0
    %1719 = vmatpush1.msra.mxu0 0.0
    %1720 = vmatprep.subr.mxu0 0.0
    %1721 = vmatpush1.msra.mxu0 0.0
    %1722 = vmatprep.subr.mxu0 0.0
    %1723 = vmatpush1.msra.mxu0 0.0
    %1724 = vmatprep.subr.mxu0 0.0
    %1725 = vmatpush1.msra.mxu0 0.0
    %1726 = vmatprep.subr.mxu0 0.0
    %1727 = vmatpush1.msra.mxu0 0.0
    %1728 = vmatprep.subr.mxu0 0.0
    %1729 = vmatpush1.msra.mxu0 0.0
    %1730 = vmatprep.subr.mxu0 0.0
    %1731 = vmatpush1.msra.mxu0 0.0
    %1732 = vmatprep.subr.mxu0 0.0
    %1733 = vmatpush1.msra.mxu0 0.0
    %1734 = vmatprep.subr.mxu0 0.0
    %1735 = vmatpush1.msra.mxu0 0.0
    %1736 = vmatprep.subr.mxu0 0.0
    %1737 = vmatpush1.msra.mxu0 0.0
    %1738 = vmatprep.subr.mxu0 0.0
    %1739 = vmatpush1.msra.mxu0 0.0
    %1740 = vmatprep.subr.mxu0 0.0
    %1741 = vmatpush1.msra.mxu0 0.0
    %1742 = vmatprep.subr.mxu0 0.0
    %1743 = vmatpush1.msra.mxu0 0.0
    %1744 = vmatprep.subr.mxu0 0.0
    %1745 = vmatpush1.msra.mxu0 0.0
    %1746 = vmatprep.subr.mxu0 0.0
    %1747 = vmatpush1.msra.mxu0 0.0
    %1748 = vmatprep.subr.mxu0 0.0
    %1749 = vmatpush1.msra.mxu0 0.0
    %1750 = vmatprep.subr.mxu0 0.0
    %1751 = vmatpush1.msra.mxu0 0.0
    %1752 = vmatprep.subr.mxu0 0.0
    %1753 = vmatpush1.msra.mxu0 0.0
    %1754 = vmatprep.subr.mxu0 0.0
    %1755 = vmatpush1.msra.mxu0 0.0
    %1756 = vmatprep.subr.mxu0 0.0
    %1757 = vmatpush1.msra.mxu0 0.0
    %1758 = vmatprep.subr.mxu0 0.0
    %1759 = vmatpush1.msra.mxu0 0.0
    %1760 = vmatprep.subr.mxu0 0.0
    %1761 = vmatpush1.msra.mxu0 0.0
    %1762 = vmatprep.mubr.f32.mxu0 0.0
    %1763 = vmatmul.mubr.f32.gmra.mrb[0].mxu0 %v1517
    %v1764 = vpop.f32.mrb[0].mxu0
    %v1765 = vadd.f32 0.0, %v1764
    %v1766 = vpop.f32.mrb[0].mxu0
    %1767 = vmatprep.mubr.f32.mxu0 0.0
    %1768 = vmatmul.mubr.f32.gmra.mrb[0].mxu0 %v1520
    %v1769 = vpop.f32.mrb[0].mxu0
    %v1770 = vadd.f32 0.0, %v1769
    %v1771 = vpop.f32.mrb[0].mxu0
    %1772 = vmatprep.mubr.f32.mxu0 0.0
    %1773 = vmatmul.mubr.f32.gmra.mrb[0].mxu0 %v1523
    %v1774 = vpop.f32.mrb[0].mxu0
    %v1775 = vadd.f32 0.0, %v1774
    %v1776 = vpop.f32.mrb[0].mxu0
    %1777 = vmatprep.mubr.f32.mxu0 0.0
    %1778 = vmatmul.mubr.f32.gmra.mrb[0].mxu0 %v1526
    %v1779 = vpop.f32.mrb[0].mxu0
    %v1780 = vadd.f32 0.0, %v1779
    %v1781 = vpop.f32.mrb[0].mxu0
    %1782 = vdwg.mxu0
    %1783 = vmatprep.subr.mxu0 0.0
    %1784 = vmatpush1.msra.mxu0 %v374
    %1785 = vmatprep.subr.mxu0 0.0
    %1786 = vmatpush1.msra.mxu0 %v379
    %1787 = vmatprep.subr.mxu0 0.0
    %1788 = vmatpush1.msra.mxu0 0.0
    %1789 = vmatprep.subr.mxu0 0.0
    %1790 = vmatpush1.msra.mxu0 0.0
    %1791 = vmatprep.subr.mxu0 0.0
    %1792 = vmatpush1.msra.mxu0 0.0
    %1793 = vmatprep.subr.mxu0 0.0
    %1794 = vmatpush1.msra.mxu0 0.0
    %1795 = vmatprep.subr.mxu0 0.0
    %1796 = vmatpush1.msra.mxu0 0.0
    %1797 = vmatprep.subr.mxu0 0.0
    %1798 = vmatpush1.msra.mxu0 0.0
    %1799 = vmatprep.subr.mxu0 0.0
    %1800 = vmatpush1.msra.mxu0 0.0
    %1801 = vmatprep.subr.mxu0 0.0
    %1802 = vmatpush1.msra.mxu0 0.0
    %1803 = vmatprep.subr.mxu0 0.0
    %1804 = vmatpush1.msra.mxu0 0.0
    %1805 = vmatprep.subr.mxu0 0.0
    %1806 = vmatpush1.msra.mxu0 0.0
    %1807 = vmatprep.subr.mxu0 0.0
    %1808 = vmatpush1.msra.mxu0 0.0
    %1809 = vmatprep.subr.mxu0 0.0
    %1810 = vmatpush1.msra.mxu0 0.0
    %1811 = vmatprep.subr.mxu0 0.0
    %1812 = vmatpush1.msra.mxu0 0.0
    %1813 = vmatprep.subr.mxu0 0.0
    %1814 = vmatpush1.msra.mxu0 0.0
    %1815 = vmatprep.subr.mxu0 0.0
    %1816 = vmatpush1.msra.mxu0 0.0
    %1817 = vmatprep.subr.mxu0 0.0
    %1818 = vmatpush1.msra.mxu0 0.0
    %1819 = vmatprep.subr.mxu0 0.0
    %1820 = vmatpush1.msra.mxu0 0.0
    %1821 = vmatprep.subr.mxu0 0.0
    %1822 = vmatpush1.msra.mxu0 0.0
    %1823 = vmatprep.subr.mxu0 0.0
    %1824 = vmatpush1.msra.mxu0 0.0
    %1825 = vmatprep.subr.mxu0 0.0
    %1826 = vmatpush1.msra.mxu0 0.0
    %1827 = vmatprep.subr.mxu0 0.0
    %1828 = vmatpush1.msra.mxu0 0.0
    %1829 = vmatprep.subr.mxu0 0.0
    %1830 = vmatpush1.msra.mxu0 0.0
    %1831 = vmatprep.subr.mxu0 0.0
    %1832 = vmatpush1.msra.mxu0 0.0
    %1833 = vmatprep.subr.mxu0 0.0
    %1834 = vmatpush1.msra.mxu0 0.0
    %1835 = vmatprep.subr.mxu0 0.0
    %1836 = vmatpush1.msra.mxu0 0.0
    %1837 = vmatprep.subr.mxu0 0.0
    %1838 = vmatpush1.msra.mxu0 0.0
    %1839 = vmatprep.subr.mxu0 0.0
    %1840 = vmatpush1.msra.mxu0 0.0
    %1841 = vmatprep.subr.mxu0 0.0
    %1842 = vmatpush1.msra.mxu0 0.0
    %1843 = vmatprep.subr.mxu0 0.0
    %1844 = vmatpush1.msra.mxu0 0.0
    %1845 = vmatprep.subr.mxu0 0.0
    %1846 = vmatpush1.msra.mxu0 0.0
    %1847 = vmatprep.mubr.f32.mxu0 0.0
    %1848 = vmatmul.mubr.f32.gmra.mrb[0].mxu0 %v1517
    %v1849 = vpop.f32.mrb[0].mxu0
    %v1850 = vadd.f32 0.0, %v1849
    %v1851 = vpop.f32.mrb[0].mxu0
    %1852 = vmatprep.mubr.f32.mxu0 0.0
    %1853 = vmatmul.mubr.f32.gmra.mrb[0].mxu0 %v1520
    %v1854 = vpop.f32.mrb[0].mxu0
    %v1855 = vadd.f32 0.0, %v1854
    %v1856 = vpop.f32.mrb[0].mxu0
    %1857 = vmatprep.mubr.f32.mxu0 0.0
    %1858 = vmatmul.mubr.f32.gmra.mrb[0].mxu0 %v1523
    %v1859 = vpop.f32.mrb[0].mxu0
    %v1860 = vadd.f32 0.0, %v1859
    %v1861 = vpop.f32.mrb[0].mxu0
    %1862 = vmatprep.mubr.f32.mxu0 0.0
    %1863 = vmatmul.mubr.f32.gmra.mrb[0].mxu0 %v1526
    %v1864 = vpop.f32.mrb[0].mxu0
    %v1865 = vadd.f32 0.0, %v1864
    %v1866 = vpop.f32.mrb[0].mxu0
    %1867 = vdwg.mxu0
    %1868 = vmatprep.subr.mxu0 0.0
    %1869 = vmatpush1.msra.mxu0 %v455
    %1870 = vmatprep.subr.mxu0 0.0
    %1871 = vmatpush1.msra.mxu0 %v460
    %1872 = vmatprep.subr.mxu0 0.0
    %1873 = vmatpush1.msra.mxu0 0.0
    %1874 = vmatprep.subr.mxu0 0.0
    %1875 = vmatpush1.msra.mxu0 0.0
    %1876 = vmatprep.subr.mxu0 0.0
    %1877 = vmatpush1.msra.mxu0 0.0
    %1878 = vmatprep.subr.mxu0 0.0
    %1879 = vmatpush1.msra.mxu0 0.0
    %1880 = vmatprep.subr.mxu0 0.0
    %1881 = vmatpush1.msra.mxu0 0.0
    %1882 = vmatprep.subr.mxu0 0.0
    %1883 = vmatpush1.msra.mxu0 0.0
    %1884 = vmatprep.subr.mxu0 0.0
    %1885 = vmatpush1.msra.mxu0 0.0
    %1886 = vmatprep.subr.mxu0 0.0
    %1887 = vmatpush1.msra.mxu0 0.0
    %1888 = vmatprep.subr.mxu0 0.0
    %1889 = vmatpush1.msra.mxu0 0.0
    %1890 = vmatprep.subr.mxu0 0.0
    %1891 = vmatpush1.msra.mxu0 0.0
    %1892 = vmatprep.subr.mxu0 0.0
    %1893 = vmatpush1.msra.mxu0 0.0
    %1894 = vmatprep.subr.mxu0 0.0
    %1895 = vmatpush1.msra.mxu0 0.0
    %1896 = vmatprep.subr.mxu0 0.0
    %1897 = vmatpush1.msra.mxu0 0.0
    %1898 = vmatprep.subr.mxu0 0.0
    %1899 = vmatpush1.msra.mxu0 0.0
    %1900 = vmatprep.subr.mxu0 0.0
    %1901 = vmatpush1.msra.mxu0 0.0
    %1902 = vmatprep.subr.mxu0 0.0
    %1903 = vmatpush1.msra.mxu0 0.0
    %1904 = vmatprep.subr.mxu0 0.0
    %1905 = vmatpush1.msra.mxu0 0.0
    %1906 = vmatprep.subr.mxu0 0.0
    %1907 = vmatpush1.msra.mxu0 0.0
    %1908 = vmatprep.subr.mxu0 0.0
    %1909 = vmatpush1.msra.mxu0 0.0
    %1910 = vmatprep.subr.mxu0 0.0
    %1911 = vmatpush1.msra.mxu0 0.0
    %1912 = vmatprep.subr.mxu0 0.0
    %1913 = vmatpush1.msra.mxu0 0.0
    %1914 = vmatprep.subr.mxu0 0.0
    %1915 = vmatpush1.msra.mxu0 0.0
    %1916 = vmatprep.subr.mxu0 0.0
    %1917 = vmatpush1.msra.mxu0 0.0
    %1918 = vmatprep.subr.mxu0 0.0
    %1919 = vmatpush1.msra.mxu0 0.0
    %1920 = vmatprep.subr.mxu0 0.0
    %1921 = vmatpush1.msra.mxu0 0.0
    %1922 = vmatprep.subr.mxu0 0.0
    %1923 = vmatpush1.msra.mxu0 0.0
    %1924 = vmatprep.subr.mxu0 0.0
    %1925 = vmatpush1.msra.mxu0 0.0
    %1926 = vmatprep.subr.mxu0 0.0
    %1927 = vmatpush1.msra.mxu0 0.0
    %1928 = vmatprep.subr.mxu0 0.0
    %1929 = vmatpush1.msra.mxu0 0.0
    %1930 = vmatprep.subr.mxu0 0.0
    %1931 = vmatpush1.msra.mxu0 0.0
    %1932 = vmatprep.mubr.f32.mxu0 0.0
    %1933 = vmatmul.mubr.f32.gmra.mrb[0].mxu0 %v1517
    %v1934 = vpop.f32.mrb[0].mxu0
    %v1935 = vadd.f32 0.0, %v1934
    %v1936 = vpop.f32.mrb[0].mxu0
    %1937 = vmatprep.mubr.f32.mxu0 0.0
    %1938 = vmatmul.mubr.f32.gmra.mrb[0].mxu0 %v1520
    %v1939 = vpop.f32.mrb[0].mxu0
    %v1940 = vadd.f32 0.0, %v1939
    %v1941 = vpop.f32.mrb[0].mxu0
    %1942 = vmatprep.mubr.f32.mxu0 0.0
    %1943 = vmatmul.mubr.f32.gmra.mrb[0].mxu0 %v1523
    %v1944 = vpop.f32.mrb[0].mxu0
    %v1945 = vadd.f32 0.0, %v1944
    %v1946 = vpop.f32.mrb[0].mxu0
    %1947 = vmatprep.mubr.f32.mxu0 0.0
    %1948 = vmatmul.mubr.f32.gmra.mrb[0].mxu0 %v1526
    %v1949 = vpop.f32.mrb[0].mxu0
    %v1950 = vadd.f32 0.0, %v1949
    %v1951 = vpop.f32.mrb[0].mxu0
    %1952 = vdwg.mxu0
    %1953 = vmatprep.subr.mxu0 0.0
    %1954 = vmatpush1.msra.mxu0 %v536
    %1955 = vmatprep.subr.mxu0 0.0
    %1956 = vmatpush1.msra.mxu0 %v541
    %1957 = vmatprep.subr.mxu0 0.0
    %1958 = vmatpush1.msra.mxu0 0.0
    %1959 = vmatprep.subr.mxu0 0.0
    %1960 = vmatpush1.msra.mxu0 0.0
    %1961 = vmatprep.subr.mxu0 0.0
    %1962 = vmatpush1.msra.mxu0 0.0
    %1963 = vmatprep.subr.mxu0 0.0
    %1964 = vmatpush1.msra.mxu0 0.0
    %1965 = vmatprep.subr.mxu0 0.0
    %1966 = vmatpush1.msra.mxu0 0.0
    %1967 = vmatprep.subr.mxu0 0.0
    %1968 = vmatpush1.msra.mxu0 0.0
    %1969 = vmatprep.subr.mxu0 0.0
    %1970 = vmatpush1.msra.mxu0 0.0
    %1971 = vmatprep.subr.mxu0 0.0
    %1972 = vmatpush1.msra.mxu0 0.0
    %1973 = vmatprep.subr.mxu0 0.0
    %1974 = vmatpush1.msra.mxu0 0.0
    %1975 = vmatprep.subr.mxu0 0.0
    %1976 = vmatpush1.msra.mxu0 0.0
    %1977 = vmatprep.subr.mxu0 0.0
    %1978 = vmatpush1.msra.mxu0 0.0
    %1979 = vmatprep.subr.mxu0 0.0
    %1980 = vmatpush1.msra.mxu0 0.0
    %1981 = vmatprep.subr.mxu0 0.0
    %1982 = vmatpush1.msra.mxu0 0.0
    %1983 = vmatprep.subr.mxu0 0.0
    %1984 = vmatpush1.msra.mxu0 0.0
    %1985 = vmatprep.subr.mxu0 0.0
    %1986 = vmatpush1.msra.mxu0 0.0
    %1987 = vmatprep.subr.mxu0 0.0
    %1988 = vmatpush1.msra.mxu0 0.0
    %1989 = vmatprep.subr.mxu0 0.0
    %1990 = vmatpush1.msra.mxu0 0.0
    %1991 = vmatprep.subr.mxu0 0.0
    %1992 = vmatpush1.msra.mxu0 0.0
    %1993 = vmatprep.subr.mxu0 0.0
    %1994 = vmatpush1.msra.mxu0 0.0
    %1995 = vmatprep.subr.mxu0 0.0
    %1996 = vmatpush1.msra.mxu0 0.0
    %1997 = vmatprep.subr.mxu0 0.0
    %1998 = vmatpush1.msra.mxu0 0.0
    %1999 = vmatprep.subr.mxu0 0.0
    %2000 = vmatpush1.msra.mxu0 0.0
    %2001 = vmatprep.subr.mxu0 0.0
    %2002 = vmatpush1.msra.mxu0 0.0
    %2003 = vmatprep.subr.mxu0 0.0
    %2004 = vmatpush1.msra.mxu0 0.0
    %2005 = vmatprep.subr.mxu0 0.0
    %2006 = vmatpush1.msra.mxu0 0.0
    %2007 = vmatprep.subr.mxu0 0.0
    %2008 = vmatpush1.msra.mxu0 0.0
    %2009 = vmatprep.subr.mxu0 0.0
    %2010 = vmatpush1.msra.mxu0 0.0
    %2011 = vmatprep.subr.mxu0 0.0
    %2012 = vmatpush1.msra.mxu0 0.0
    %2013 = vmatprep.subr.mxu0 0.0
    %2014 = vmatpush1.msra.mxu0 0.0
    %2015 = vmatprep.subr.mxu0 0.0
    %2016 = vmatpush1.msra.mxu0 0.0
    %2017 = vmatprep.mubr.f32.mxu0 0.0
    %2018 = vmatmul.mubr.f32.gmra.mrb[0].mxu0 %v1517
    %v2019 = vpop.f32.mrb[0].mxu0
    %v2020 = vadd.f32 0.0, %v2019
    %v2021 = vpop.f32.mrb[0].mxu0
    %2022 = vmatprep.mubr.f32.mxu0 0.0
    %2023 = vmatmul.mubr.f32.gmra.mrb[0].mxu0 %v1520
    %v2024 = vpop.f32.mrb[0].mxu0
    %v2025 = vadd.f32 0.0, %v2024
    %v2026 = vpop.f32.mrb[0].mxu0
    %2027 = vmatprep.mubr.f32.mxu0 0.0
    %2028 = vmatmul.mubr.f32.gmra.mrb[0].mxu0 %v1523
    %v2029 = vpop.f32.mrb[0].mxu0
    %v2030 = vadd.f32 0.0, %v2029
    %v2031 = vpop.f32.mrb[0].mxu0
    %2032 = vmatprep.mubr.f32.mxu0 0.0
    %2033 = vmatmul.mubr.f32.gmra.mrb[0].mxu0 %v1526
    %v2034 = vpop.f32.mrb[0].mxu0
    %v2035 = vadd.f32 0.0, %v2034
    %v2036 = vpop.f32.mrb[0].mxu0
    %2037 = vdwg.mxu0
    %2038 = vmatprep.subr.mxu0 0.0
    %2039 = vmatpush1.msra.mxu0 %v617
    %2040 = vmatprep.subr.mxu0 0.0
    %2041 = vmatpush1.msra.mxu0 %v622
    %2042 = vmatprep.subr.mxu0 0.0
    %2043 = vmatpush1.msra.mxu0 0.0
    %2044 = vmatprep.subr.mxu0 0.0
    %2045 = vmatpush1.msra.mxu0 0.0
    %2046 = vmatprep.subr.mxu0 0.0
    %2047 = vmatpush1.msra.mxu0 0.0
    %2048 = vmatprep.subr.mxu0 0.0
    %2049 = vmatpush1.msra.mxu0 0.0
    %2050 = vmatprep.subr.mxu0 0.0
    %2051 = vmatpush1.msra.mxu0 0.0
    %2052 = vmatprep.subr.mxu0 0.0
    %2053 = vmatpush1.msra.mxu0 0.0
    %2054 = vmatprep.subr.mxu0 0.0
    %2055 = vmatpush1.msra.mxu0 0.0
    %2056 = vmatprep.subr.mxu0 0.0
    %2057 = vmatpush1.msra.mxu0 0.0
    %2058 = vmatprep.subr.mxu0 0.0
    %2059 = vmatpush1.msra.mxu0 0.0
    %2060 = vmatprep.subr.mxu0 0.0
    %2061 = vmatpush1.msra.mxu0 0.0
    %2062 = vmatprep.subr.mxu0 0.0
    %2063 = vmatpush1.msra.mxu0 0.0
    %2064 = vmatprep.subr.mxu0 0.0
    %2065 = vmatpush1.msra.mxu0 0.0
    %2066 = vmatprep.subr.mxu0 0.0
    %2067 = vmatpush1.msra.mxu0 0.0
    %2068 = vmatprep.subr.mxu0 0.0
    %2069 = vmatpush1.msra.mxu0 0.0
    %2070 = vmatprep.subr.mxu0 0.0
    %2071 = vmatpush1.msra.mxu0 0.0
    %2072 = vmatprep.subr.mxu0 0.0
    %2073 = vmatpush1.msra.mxu0 0.0
    %2074 = vmatprep.subr.mxu0 0.0
    %2075 = vmatpush1.msra.mxu0 0.0
    %2076 = vmatprep.subr.mxu0 0.0
    %2077 = vmatpush1.msra.mxu0 0.0
    %2078 = vmatprep.subr.mxu0 0.0
    %2079 = vmatpush1.msra.mxu0 0.0
    %2080 = vmatprep.subr.mxu0 0.0
    %2081 = vmatpush1.msra.mxu0 0.0
    %2082 = vmatprep.subr.mxu0 0.0
    %2083 = vmatpush1.msra.mxu0 0.0
    %2084 = vmatprep.subr.mxu0 0.0
    %2085 = vmatpush1.msra.mxu0 0.0
    %2086 = vmatprep.subr.mxu0 0.0
    %2087 = vmatpush1.msra.mxu0 0.0
    %2088 = vmatprep.subr.mxu0 0.0
    %2089 = vmatpush1.msra.mxu0 0.0
    %2090 = vmatprep.subr.mxu0 0.0
    %2091 = vmatpush1.msra.mxu0 0.0
    %2092 = vmatprep.subr.mxu0 0.0
    %2093 = vmatpush1.msra.mxu0 0.0
    %2094 = vmatprep.subr.mxu0 0.0
    %2095 = vmatpush1.msra.mxu0 0.0
    %2096 = vmatprep.subr.mxu0 0.0
    %2097 = vmatpush1.msra.mxu0 0.0
    %2098 = vmatprep.subr.mxu0 0.0
    %2099 = vmatpush1.msra.mxu0 0.0
    %2100 = vmatprep.subr.mxu0 0.0
    %2101 = vmatpush1.msra.mxu0 0.0
    %2102 = vmatprep.mubr.f32.mxu0 0.0
    %2103 = vmatmul.mubr.f32.gmra.mrb[0].mxu0 %v1517
    %v2104 = vpop.f32.mrb[0].mxu0
    %v2105 = vadd.f32 0.0, %v2104
    %v2106 = vpop.f32.mrb[0].mxu0
    %2107 = vmatprep.mubr.f32.mxu0 0.0
    %2108 = vmatmul.mubr.f32.gmra.mrb[0].mxu0 %v1520
    %v2109 = vpop.f32.mrb[0].mxu0
    %v2110 = vadd.f32 0.0, %v2109
    %v2111 = vpop.f32.mrb[0].mxu0
    %2112 = vmatprep.mubr.f32.mxu0 0.0
    %2113 = vmatmul.mubr.f32.gmra.mrb[0].mxu0 %v1523
    %v2114 = vpop.f32.mrb[0].mxu0
    %v2115 = vadd.f32 0.0, %v2114
    %v2116 = vpop.f32.mrb[0].mxu0
    %2117 = vmatprep.mubr.f32.mxu0 0.0
    %2118 = vmatmul.mubr.f32.gmra.mrb[0].mxu0 %v1526
    %v2119 = vpop.f32.mrb[0].mxu0
    %v2120 = vadd.f32 0.0, %v2119
    %v2121 = vpop.f32.mrb[0].mxu0
    %2122 = vdwg.mxu0
    %2123 = vmatprep.subr.mxu0 0.0
    %2124 = vmatpush1.msra.mxu0 %v698
    %2125 = vmatprep.subr.mxu0 0.0
    %2126 = vmatpush1.msra.mxu0 %v703
    %2127 = vmatprep.subr.mxu0 0.0
    %2128 = vmatpush1.msra.mxu0 0.0
    %2129 = vmatprep.subr.mxu0 0.0
    %2130 = vmatpush1.msra.mxu0 0.0
    %2131 = vmatprep.subr.mxu0 0.0
    %2132 = vmatpush1.msra.mxu0 0.0
    %2133 = vmatprep.subr.mxu0 0.0
    %2134 = vmatpush1.msra.mxu0 0.0
    %2135 = vmatprep.subr.mxu0 0.0
    %2136 = vmatpush1.msra.mxu0 0.0
    %2137 = vmatprep.subr.mxu0 0.0
    %2138 = vmatpush1.msra.mxu0 0.0
    %2139 = vmatprep.subr.mxu0 0.0
    %2140 = vmatpush1.msra.mxu0 0.0
    %2141 = vmatprep.subr.mxu0 0.0
    %2142 = vmatpush1.msra.mxu0 0.0
    %2143 = vmatprep.subr.mxu0 0.0
    %2144 = vmatpush1.msra.mxu0 0.0
    %2145 = vmatprep.subr.mxu0 0.0
    %2146 = vmatpush1.msra.mxu0 0.0
    %2147 = vmatprep.subr.mxu0 0.0
    %2148 = vmatpush1.msra.mxu0 0.0
    %2149 = vmatprep.subr.mxu0 0.0
    %2150 = vmatpush1.msra.mxu0 0.0
    %2151 = vmatprep.subr.mxu0 0.0
    %2152 = vmatpush1.msra.mxu0 0.0
    %2153 = vmatprep.subr.mxu0 0.0
    %2154 = vmatpush1.msra.mxu0 0.0
    %2155 = vmatprep.subr.mxu0 0.0
    %2156 = vmatpush1.msra.mxu0 0.0
    %2157 = vmatprep.subr.mxu0 0.0
    %2158 = vmatpush1.msra.mxu0 0.0
    %2159 = vmatprep.subr.mxu0 0.0
    %2160 = vmatpush1.msra.mxu0 0.0
    %2161 = vmatprep.subr.mxu0 0.0
    %2162 = vmatpush1.msra.mxu0 0.0
    %2163 = vmatprep.subr.mxu0 0.0
    %2164 = vmatpush1.msra.mxu0 0.0
    %2165 = vmatprep.subr.mxu0 0.0
    %2166 = vmatpush1.msra.mxu0 0.0
    %2167 = vmatprep.subr.mxu0 0.0
    %2168 = vmatpush1.msra.mxu0 0.0
    %2169 = vmatprep.subr.mxu0 0.0
    %2170 = vmatpush1.msra.mxu0 0.0
    %2171 = vmatprep.subr.mxu0 0.0
    %2172 = vmatpush1.msra.mxu0 0.0
    %2173 = vmatprep.subr.mxu0 0.0
    %2174 = vmatpush1.msra.mxu0 0.0
    %2175 = vmatprep.subr.mxu0 0.0
    %2176 = vmatpush1.msra.mxu0 0.0
    %2177 = vmatprep.subr.mxu0 0.0
    %2178 = vmatpush1.msra.mxu0 0.0
    %2179 = vmatprep.subr.mxu0 0.0
    %2180 = vmatpush1.msra.mxu0 0.0
    %2181 = vmatprep.subr.mxu0 0.0
    %2182 = vmatpush1.msra.mxu0 0.0
    %2183 = vmatprep.subr.mxu0 0.0
    %2184 = vmatpush1.msra.mxu0 0.0
    %2185 = vmatprep.subr.mxu0 0.0
    %2186 = vmatpush1.msra.mxu0 0.0
    %2187 = vmatprep.mubr.f32.mxu0 0.0
    %2188 = vmatmul.mubr.f32.gmra.mrb[0].mxu0 %v1517
    %v2189 = vpop.f32.mrb[0].mxu0
    %v2190 = vadd.f32 0.0, %v2189
    %v2191 = vpop.f32.mrb[0].mxu0
    %2192 = vmatprep.mubr.f32.mxu0 0.0
    %2193 = vmatmul.mubr.f32.gmra.mrb[0].mxu0 %v1520
    %v2194 = vpop.f32.mrb[0].mxu0
    %v2195 = vadd.f32 0.0, %v2194
    %v2196 = vpop.f32.mrb[0].mxu0
    %2197 = vmatprep.mubr.f32.mxu0 0.0
    %2198 = vmatmul.mubr.f32.gmra.mrb[0].mxu0 %v1523
    %v2199 = vpop.f32.mrb[0].mxu0
    %v2200 = vadd.f32 0.0, %v2199
    %v2201 = vpop.f32.mrb[0].mxu0
    %2202 = vmatprep.mubr.f32.mxu0 0.0
    %2203 = vmatmul.mubr.f32.gmra.mrb[0].mxu0 %v1526
    %v2204 = vpop.f32.mrb[0].mxu0
    %v2205 = vadd.f32 0.0, %v2204
    %v2206 = vpop.f32.mrb[0].mxu0
    %2207 = vdwg.mxu0
    %2208 = vmatprep.subr.mxu0 0.0
    %2209 = vmatpush1.msra.mxu0 %v779
    %2210 = vmatprep.subr.mxu0 0.0
    %2211 = vmatpush1.msra.mxu0 %v784
    %2212 = vmatprep.subr.mxu0 0.0
    %2213 = vmatpush1.msra.mxu0 0.0
    %2214 = vmatprep.subr.mxu0 0.0
    %2215 = vmatpush1.msra.mxu0 0.0
    %2216 = vmatprep.subr.mxu0 0.0
    %2217 = vmatpush1.msra.mxu0 0.0
    %2218 = vmatprep.subr.mxu0 0.0
    %2219 = vmatpush1.msra.mxu0 0.0
    %2220 = vmatprep.subr.mxu0 0.0
    %2221 = vmatpush1.msra.mxu0 0.0
    %2222 = vmatprep.subr.mxu0 0.0
    %2223 = vmatpush1.msra.mxu0 0.0
    %2224 = vmatprep.subr.mxu0 0.0
    %2225 = vmatpush1.msra.mxu0 0.0
    %2226 = vmatprep.subr.mxu0 0.0
    %2227 = vmatpush1.msra.mxu0 0.0
    %2228 = vmatprep.subr.mxu0 0.0
    %2229 = vmatpush1.msra.mxu0 0.0
    %2230 = vmatprep.subr.mxu0 0.0
    %2231 = vmatpush1.msra.mxu0 0.0
    %2232 = vmatprep.subr.mxu0 0.0
    %2233 = vmatpush1.msra.mxu0 0.0
    %2234 = vmatprep.subr.mxu0 0.0
    %2235 = vmatpush1.msra.mxu0 0.0
    %2236 = vmatprep.subr.mxu0 0.0
    %2237 = vmatpush1.msra.mxu0 0.0
    %2238 = vmatprep.subr.mxu0 0.0
    %2239 = vmatpush1.msra.mxu0 0.0
    %2240 = vmatprep.subr.mxu0 0.0
    %2241 = vmatpush1.msra.mxu0 0.0
    %2242 = vmatprep.subr.mxu0 0.0
    %2243 = vmatpush1.msra.mxu0 0.0
    %2244 = vmatprep.subr.mxu0 0.0
    %2245 = vmatpush1.msra.mxu0 0.0
    %2246 = vmatprep.subr.mxu0 0.0
    %2247 = vmatpush1.msra.mxu0 0.0
    %2248 = vmatprep.subr.mxu0 0.0
    %2249 = vmatpush1.msra.mxu0 0.0
    %2250 = vmatprep.subr.mxu0 0.0
    %2251 = vmatpush1.msra.mxu0 0.0
    %2252 = vmatprep.subr.mxu0 0.0
    %2253 = vmatpush1.msra.mxu0 0.0
    %2254 = vmatprep.subr.mxu0 0.0
    %2255 = vmatpush1.msra.mxu0 0.0
    %2256 = vmatprep.subr.mxu0 0.0
    %2257 = vmatpush1.msra.mxu0 0.0
    %2258 = vmatprep.subr.mxu0 0.0
    %2259 = vmatpush1.msra.mxu0 0.0
    %2260 = vmatprep.subr.mxu0 0.0
    %2261 = vmatpush1.msra.mxu0 0.0
    %2262 = vmatprep.subr.mxu0 0.0
    %2263 = vmatpush1.msra.mxu0 0.0
    %2264 = vmatprep.subr.mxu0 0.0
    %2265 = vmatpush1.msra.mxu0 0.0
    %2266 = vmatprep.subr.mxu0 0.0
    %2267 = vmatpush1.msra.mxu0 0.0
    %2268 = vmatprep.subr.mxu0 0.0
    %2269 = vmatpush1.msra.mxu0 0.0
    %2270 = vmatprep.subr.mxu0 0.0
    %2271 = vmatpush1.msra.mxu0 0.0
    %2272 = vmatprep.mubr.f32.mxu0 0.0
    %2273 = vmatmul.mubr.f32.gmra.mrb[0].mxu0 %v1517
    %v2274 = vpop.f32.mrb[0].mxu0
    %v2275 = vadd.f32 0.0, %v2274
    %v2276 = vpop.f32.mrb[0].mxu0
    %2277 = vmatprep.mubr.f32.mxu0 0.0
    %2278 = vmatmul.mubr.f32.gmra.mrb[0].mxu0 %v1520
    %v2279 = vpop.f32.mrb[0].mxu0
    %v2280 = vadd.f32 0.0, %v2279
    %v2281 = vpop.f32.mrb[0].mxu0
    %2282 = vmatprep.mubr.f32.mxu0 0.0
    %2283 = vmatmul.mubr.f32.gmra.mrb[0].mxu0 %v1523
    %v2284 = vpop.f32.mrb[0].mxu0
    %v2285 = vadd.f32 0.0, %v2284
    %v2286 = vpop.f32.mrb[0].mxu0
    %2287 = vmatprep.mubr.f32.mxu0 0.0
    %2288 = vmatmul.mubr.f32.gmra.mrb[0].mxu0 %v1526
    %v2289 = vpop.f32.mrb[0].mxu0
    %v2290 = vadd.f32 0.0, %v2289
    %v2291 = vpop.f32.mrb[0].mxu0
    %2292 = vdwg.mxu0
    %2293 = vmatprep.subr.mxu0 0.0
    %2294 = vmatpush1.msra.mxu0 %v860
    %2295 = vmatprep.subr.mxu0 0.0
    %2296 = vmatpush1.msra.mxu0 %v865
    %2297 = vmatprep.subr.mxu0 0.0
    %2298 = vmatpush1.msra.mxu0 0.0
    %2299 = vmatprep.subr.mxu0 0.0
    %2300 = vmatpush1.msra.mxu0 0.0
    %2301 = vmatprep.subr.mxu0 0.0
    %2302 = vmatpush1.msra.mxu0 0.0
    %2303 = vmatprep.subr.mxu0 0.0
    %2304 = vmatpush1.msra.mxu0 0.0
    %2305 = vmatprep.subr.mxu0 0.0
    %2306 = vmatpush1.msra.mxu0 0.0
    %2307 = vmatprep.subr.mxu0 0.0
    %2308 = vmatpush1.msra.mxu0 0.0
    %2309 = vmatprep.subr.mxu0 0.0
    %2310 = vmatpush1.msra.mxu0 0.0
    %2311 = vmatprep.subr.mxu0 0.0
    %2312 = vmatpush1.msra.mxu0 0.0
    %2313 = vmatprep.subr.mxu0 0.0
    %2314 = vmatpush1.msra.mxu0 0.0
    %2315 = vmatprep.subr.mxu0 0.0
    %2316 = vmatpush1.msra.mxu0 0.0
    %2317 = vmatprep.subr.mxu0 0.0
    %2318 = vmatpush1.msra.mxu0 0.0
    %2319 = vmatprep.subr.mxu0 0.0
    %2320 = vmatpush1.msra.mxu0 0.0
    %2321 = vmatprep.subr.mxu0 0.0
    %2322 = vmatpush1.msra.mxu0 0.0
    %2323 = vmatprep.subr.mxu0 0.0
    %2324 = vmatpush1.msra.mxu0 0.0
    %2325 = vmatprep.subr.mxu0 0.0
    %2326 = vmatpush1.msra.mxu0 0.0
    %2327 = vmatprep.subr.mxu0 0.0
    %2328 = vmatpush1.msra.mxu0 0.0
    %2329 = vmatprep.subr.mxu0 0.0
    %2330 = vmatpush1.msra.mxu0 0.0
    %2331 = vmatprep.subr.mxu0 0.0
    %2332 = vmatpush1.msra.mxu0 0.0
    %2333 = vmatprep.subr.mxu0 0.0
    %2334 = vmatpush1.msra.mxu0 0.0
    %2335 = vmatprep.subr.mxu0 0.0
    %2336 = vmatpush1.msra.mxu0 0.0
    %2337 = vmatprep.subr.mxu0 0.0
    %2338 = vmatpush1.msra.mxu0 0.0
    %2339 = vmatprep.subr.mxu0 0.0
    %2340 = vmatpush1.msra.mxu0 0.0
    %2341 = vmatprep.subr.mxu0 0.0
    %2342 = vmatpush1.msra.mxu0 0.0
    %2343 = vmatprep.subr.mxu0 0.0
    %2344 = vmatpush1.msra.mxu0 0.0
    %2345 = vmatprep.subr.mxu0 0.0
    %2346 = vmatpush1.msra.mxu0 0.0
    %2347 = vmatprep.subr.mxu0 0.0
    %2348 = vmatpush1.msra.mxu0 0.0
    %2349 = vmatprep.subr.mxu0 0.0
    %2350 = vmatpush1.msra.mxu0 0.0
    %2351 = vmatprep.subr.mxu0 0.0
    %2352 = vmatpush1.msra.mxu0 0.0
    %2353 = vmatprep.subr.mxu0 0.0
    %2354 = vmatpush1.msra.mxu0 0.0
    %2355 = vmatprep.subr.mxu0 0.0
    %2356 = vmatpush1.msra.mxu0 0.0
    %2357 = vmatprep.mubr.f32.mxu0 0.0
    %2358 = vmatmul.mubr.f32.gmra.mrb[0].mxu0 %v1517
    %v2359 = vpop.f32.mrb[0].mxu0
    %v2360 = vadd.f32 0.0, %v2359
    %v2361 = vpop.f32.mrb[0].mxu0
    %2362 = vmatprep.mubr.f32.mxu0 0.0
    %2363 = vmatmul.mubr.f32.gmra.mrb[0].mxu0 %v1520
    %v2364 = vpop.f32.mrb[0].mxu0
    %v2365 = vadd.f32 0.0, %v2364
    %v2366 = vpop.f32.mrb[0].mxu0
    %2367 = vmatprep.mubr.f32.mxu0 0.0
    %2368 = vmatmul.mubr.f32.gmra.mrb[0].mxu0 %v1523
    %v2369 = vpop.f32.mrb[0].mxu0
    %v2370 = vadd.f32 0.0, %v2369
    %v2371 = vpop.f32.mrb[0].mxu0
    %2372 = vmatprep.mubr.f32.mxu0 0.0
    %2373 = vmatmul.mubr.f32.gmra.mrb[0].mxu0 %v1526
    %v2374 = vpop.f32.mrb[0].mxu0
    %v2375 = vadd.f32 0.0, %v2374
    %v2376 = vpop.f32.mrb[0].mxu0
    %2377 = vdwg.mxu0
    %2378 = vmatprep.subr.mxu0 0.0
    %2379 = vmatpush1.msra.mxu0 %v941
    %2380 = vmatprep.subr.mxu0 0.0
    %2381 = vmatpush1.msra.mxu0 %v946
    %2382 = vmatprep.subr.mxu0 0.0
    %2383 = vmatpush1.msra.mxu0 0.0
    %2384 = vmatprep.subr.mxu0 0.0
    %2385 = vmatpush1.msra.mxu0 0.0
    %2386 = vmatprep.subr.mxu0 0.0
    %2387 = vmatpush1.msra.mxu0 0.0
    %2388 = vmatprep.subr.mxu0 0.0
    %2389 = vmatpush1.msra.mxu0 0.0
    %2390 = vmatprep.subr.mxu0 0.0
    %2391 = vmatpush1.msra.mxu0 0.0
    %2392 = vmatprep.subr.mxu0 0.0
    %2393 = vmatpush1.msra.mxu0 0.0
    %2394 = vmatprep.subr.mxu0 0.0
    %2395 = vmatpush1.msra.mxu0 0.0
    %2396 = vmatprep.subr.mxu0 0.0
    %2397 = vmatpush1.msra.mxu0 0.0
    %2398 = vmatprep.subr.mxu0 0.0
    %2399 = vmatpush1.msra.mxu0 0.0
    %2400 = vmatprep.subr.mxu0 0.0
    %2401 = vmatpush1.msra.mxu0 0.0
    %2402 = vmatprep.subr.mxu0 0.0
    %2403 = vmatpush1.msra.mxu0 0.0
    %2404 = vmatprep.subr.mxu0 0.0
    %2405 = vmatpush1.msra.mxu0 0.0
    %2406 = vmatprep.subr.mxu0 0.0
    %2407 = vmatpush1.msra.mxu0 0.0
    %2408 = vmatprep.subr.mxu0 0.0
    %2409 = vmatpush1.msra.mxu0 0.0
    %2410 = vmatprep.subr.mxu0 0.0
    %2411 = vmatpush1.msra.mxu0 0.0
    %2412 = vmatprep.subr.mxu0 0.0
    %2413 = vmatpush1.msra.mxu0 0.0
    %2414 = vmatprep.subr.mxu0 0.0
    %2415 = vmatpush1.msra.mxu0 0.0
    %2416 = vmatprep.subr.mxu0 0.0
    %2417 = vmatpush1.msra.mxu0 0.0
    %2418 = vmatprep.subr.mxu0 0.0
    %2419 = vmatpush1.msra.mxu0 0.0
    %2420 = vmatprep.subr.mxu0 0.0
    %2421 = vmatpush1.msra.mxu0 0.0
    %2422 = vmatprep.subr.mxu0 0.0
    %2423 = vmatpush1.msra.mxu0 0.0
    %2424 = vmatprep.subr.mxu0 0.0
    %2425 = vmatpush1.msra.mxu0 0.0
    %2426 = vmatprep.subr.mxu0 0.0
    %2427 = vmatpush1.msra.mxu0 0.0
    %2428 = vmatprep.subr.mxu0 0.0
    %2429 = vmatpush1.msra.mxu0 0.0
    %2430 = vmatprep.subr.mxu0 0.0
    %2431 = vmatpush1.msra.mxu0 0.0
    %2432 = vmatprep.subr.mxu0 0.0
    %2433 = vmatpush1.msra.mxu0 0.0
    %2434 = vmatprep.subr.mxu0 0.0
    %2435 = vmatpush1.msra.mxu0 0.0
    %2436 = vmatprep.subr.mxu0 0.0
    %2437 = vmatpush1.msra.mxu0 0.0
    %2438 = vmatprep.subr.mxu0 0.0
    %2439 = vmatpush1.msra.mxu0 0.0
    %2440 = vmatprep.subr.mxu0 0.0
    %2441 = vmatpush1.msra.mxu0 0.0
    %2442 = vmatprep.mubr.f32.mxu0 0.0
    %2443 = vmatmul.mubr.f32.gmra.mrb[0].mxu0 %v1517
    %v2444 = vpop.f32.mrb[0].mxu0
    %v2445 = vadd.f32 0.0, %v2444
    %v2446 = vpop.f32.mrb[0].mxu0
    %2447 = vmatprep.mubr.f32.mxu0 0.0
    %2448 = vmatmul.mubr.f32.gmra.mrb[0].mxu0 %v1520
    %v2449 = vpop.f32.mrb[0].mxu0
    %v2450 = vadd.f32 0.0, %v2449
    %v2451 = vpop.f32.mrb[0].mxu0
    %2452 = vmatprep.mubr.f32.mxu0 0.0
    %2453 = vmatmul.mubr.f32.gmra.mrb[0].mxu0 %v1523
    %v2454 = vpop.f32.mrb[0].mxu0
    %v2455 = vadd.f32 0.0, %v2454
    %v2456 = vpop.f32.mrb[0].mxu0
    %2457 = vmatprep.mubr.f32.mxu0 0.0
    %2458 = vmatmul.mubr.f32.gmra.mrb[0].mxu0 %v1526
    %v2459 = vpop.f32.mrb[0].mxu0
    %v2460 = vadd.f32 0.0, %v2459
    %v2461 = vpop.f32.mrb[0].mxu0
    %2462 = vdwg.mxu0
    %2463 = vmatprep.subr.mxu0 0.0
    %2464 = vmatpush1.msra.mxu0 %v1022
    %2465 = vmatprep.subr.mxu0 0.0
    %2466 = vmatpush1.msra.mxu0 %v1027
    %2467 = vmatprep.subr.mxu0 0.0
    %2468 = vmatpush1.msra.mxu0 0.0
    %2469 = vmatprep.subr.mxu0 0.0
    %2470 = vmatpush1.msra.mxu0 0.0
    %2471 = vmatprep.subr.mxu0 0.0
    %2472 = vmatpush1.msra.mxu0 0.0
    %2473 = vmatprep.subr.mxu0 0.0
    %2474 = vmatpush1.msra.mxu0 0.0
    %2475 = vmatprep.subr.mxu0 0.0
    %2476 = vmatpush1.msra.mxu0 0.0
    %2477 = vmatprep.subr.mxu0 0.0
    %2478 = vmatpush1.msra.mxu0 0.0
    %2479 = vmatprep.subr.mxu0 0.0
    %2480 = vmatpush1.msra.mxu0 0.0
    %2481 = vmatprep.subr.mxu0 0.0
    %2482 = vmatpush1.msra.mxu0 0.0
    %2483 = vmatprep.subr.mxu0 0.0
    %2484 = vmatpush1.msra.mxu0 0.0
    %2485 = vmatprep.subr.mxu0 0.0
    %2486 = vmatpush1.msra.mxu0 0.0
    %2487 = vmatprep.subr.mxu0 0.0
    %2488 = vmatpush1.msra.mxu0 0.0
    %2489 = vmatprep.subr.mxu0 0.0
    %2490 = vmatpush1.msra.mxu0 0.0
    %2491 = vmatprep.subr.mxu0 0.0
    %2492 = vmatpush1.msra.mxu0 0.0
    %2493 = vmatprep.subr.mxu0 0.0
    %2494 = vmatpush1.msra.mxu0 0.0
    %2495 = vmatprep.subr.mxu0 0.0
    %2496 = vmatpush1.msra.mxu0 0.0
    %2497 = vmatprep.subr.mxu0 0.0
    %2498 = vmatpush1.msra.mxu0 0.0
    %2499 = vmatprep.subr.mxu0 0.0
    %2500 = vmatpush1.msra.mxu0 0.0
    %2501 = vmatprep.subr.mxu0 0.0
    %2502 = vmatpush1.msra.mxu0 0.0
    %2503 = vmatprep.subr.mxu0 0.0
    %2504 = vmatpush1.msra.mxu0 0.0
    %2505 = vmatprep.subr.mxu0 0.0
    %2506 = vmatpush1.msra.mxu0 0.0
    %2507 = vmatprep.subr.mxu0 0.0
    %2508 = vmatpush1.msra.mxu0 0.0
    %2509 = vmatprep.subr.mxu0 0.0
    %2510 = vmatpush1.msra.mxu0 0.0
    %2511 = vmatprep.subr.mxu0 0.0
    %2512 = vmatpush1.msra.mxu0 0.0
    %2513 = vmatprep.subr.mxu0 0.0
    %2514 = vmatpush1.msra.mxu0 0.0
    %2515 = vmatprep.subr.mxu0 0.0
    %2516 = vmatpush1.msra.mxu0 0.0
    %2517 = vmatprep.subr.mxu0 0.0
    %2518 = vmatpush1.msra.mxu0 0.0
    %2519 = vmatprep.subr.mxu0 0.0
    %2520 = vmatpush1.msra.mxu0 0.0
    %2521 = vmatprep.subr.mxu0 0.0
    %2522 = vmatpush1.msra.mxu0 0.0
    %2523 = vmatprep.subr.mxu0 0.0
    %2524 = vmatpush1.msra.mxu0 0.0
    %2525 = vmatprep.subr.mxu0 0.0
    %2526 = vmatpush1.msra.mxu0 0.0
    %2527 = vmatprep.mubr.f32.mxu0 0.0
    %2528 = vmatmul.mubr.f32.gmra.mrb[0].mxu0 %v1517
    %v2529 = vpop.f32.mrb[0].mxu0
    %v2530 = vadd.f32 0.0, %v2529
    %v2531 = vpop.f32.mrb[0].mxu0
    %2532 = vmatprep.mubr.f32.mxu0 0.0
    %2533 = vmatmul.mubr.f32.gmra.mrb[0].mxu0 %v1520
    %v2534 = vpop.f32.mrb[0].mxu0
    %v2535 = vadd.f32 0.0, %v2534
    %v2536 = vpop.f32.mrb[0].mxu0
    %2537 = vmatprep.mubr.f32.mxu0 0.0
    %2538 = vmatmul.mubr.f32.gmra.mrb[0].mxu0 %v1523
    %v2539 = vpop.f32.mrb[0].mxu0
    %v2540 = vadd.f32 0.0, %v2539
    %v2541 = vpop.f32.mrb[0].mxu0
    %2542 = vmatprep.mubr.f32.mxu0 0.0
    %2543 = vmatmul.mubr.f32.gmra.mrb[0].mxu0 %v1526
    %v2544 = vpop.f32.mrb[0].mxu0
    %v2545 = vadd.f32 0.0, %v2544
    %v2546 = vpop.f32.mrb[0].mxu0
    %2547 = vdwg.mxu0
    %2548 = vmatprep.subr.mxu0 0.0
    %2549 = vmatpush1.msra.mxu0 %v1103
    %2550 = vmatprep.subr.mxu0 0.0
    %2551 = vmatpush1.msra.mxu0 %v1108
    %2552 = vmatprep.subr.mxu0 0.0
    %2553 = vmatpush1.msra.mxu0 0.0
    %2554 = vmatprep.subr.mxu0 0.0
    %2555 = vmatpush1.msra.mxu0 0.0
    %2556 = vmatprep.subr.mxu0 0.0
    %2557 = vmatpush1.msra.mxu0 0.0
    %2558 = vmatprep.subr.mxu0 0.0
    %2559 = vmatpush1.msra.mxu0 0.0
    %2560 = vmatprep.subr.mxu0 0.0
    %2561 = vmatpush1.msra.mxu0 0.0
    %2562 = vmatprep.subr.mxu0 0.0
    %2563 = vmatpush1.msra.mxu0 0.0
    %2564 = vmatprep.subr.mxu0 0.0
    %2565 = vmatpush1.msra.mxu0 0.0
    %2566 = vmatprep.subr.mxu0 0.0
    %2567 = vmatpush1.msra.mxu0 0.0
    %2568 = vmatprep.subr.mxu0 0.0
    %2569 = vmatpush1.msra.mxu0 0.0
    %2570 = vmatprep.subr.mxu0 0.0
    %2571 = vmatpush1.msra.mxu0 0.0
    %2572 = vmatprep.subr.mxu0 0.0
    %2573 = vmatpush1.msra.mxu0 0.0
    %2574 = vmatprep.subr.mxu0 0.0
    %2575 = vmatpush1.msra.mxu0 0.0
    %2576 = vmatprep.subr.mxu0 0.0
    %2577 = vmatpush1.msra.mxu0 0.0
    %2578 = vmatprep.subr.mxu0 0.0
    %2579 = vmatpush1.msra.mxu0 0.0
    %2580 = vmatprep.subr.mxu0 0.0
    %2581 = vmatpush1.msra.mxu0 0.0
    %2582 = vmatprep.subr.mxu0 0.0
    %2583 = vmatpush1.msra.mxu0 0.0
    %2584 = vmatprep.subr.mxu0 0.0
    %2585 = vmatpush1.msra.mxu0 0.0
    %2586 = vmatprep.subr.mxu0 0.0
    %2587 = vmatpush1.msra.mxu0 0.0
    %2588 = vmatprep.subr.mxu0 0.0
    %2589 = vmatpush1.msra.mxu0 0.0
    %2590 = vmatprep.subr.mxu0 0.0
    %2591 = vmatpush1.msra.mxu0 0.0
    %2592 = vmatprep.subr.mxu0 0.0
    %2593 = vmatpush1.msra.mxu0 0.0
    %2594 = vmatprep.subr.mxu0 0.0
    %2595 = vmatpush1.msra.mxu0 0.0
    %2596 = vmatprep.subr.mxu0 0.0
    %2597 = vmatpush1.msra.mxu0 0.0
    %2598 = vmatprep.subr.mxu0 0.0
    %2599 = vmatpush1.msra.mxu0 0.0
    %2600 = vmatprep.subr.mxu0 0.0
    %2601 = vmatpush1.msra.mxu0 0.0
    %2602 = vmatprep.subr.mxu0 0.0
    %2603 = vmatpush1.msra.mxu0 0.0
    %2604 = vmatprep.subr.mxu0 0.0
    %2605 = vmatpush1.msra.mxu0 0.0
    %2606 = vmatprep.subr.mxu0 0.0
    %2607 = vmatpush1.msra.mxu0 0.0
    %2608 = vmatprep.subr.mxu0 0.0
    %2609 = vmatpush1.msra.mxu0 0.0
    %2610 = vmatprep.subr.mxu0 0.0
    %2611 = vmatpush1.msra.mxu0 0.0
    %2612 = vmatprep.mubr.f32.mxu0 0.0
    %2613 = vmatmul.mubr.f32.gmra.mrb[0].mxu0 %v1517
    %v2614 = vpop.f32.mrb[0].mxu0
    %v2615 = vadd.f32 0.0, %v2614
    %v2616 = vpop.f32.mrb[0].mxu0
    %2617 = vmatprep.mubr.f32.mxu0 0.0
    %2618 = vmatmul.mubr.f32.gmra.mrb[0].mxu0 %v1520
    %v2619 = vpop.f32.mrb[0].mxu0
    %v2620 = vadd.f32 0.0, %v2619
    %v2621 = vpop.f32.mrb[0].mxu0
    %2622 = vmatprep.mubr.f32.mxu0 0.0
    %2623 = vmatmul.mubr.f32.gmra.mrb[0].mxu0 %v1523
    %v2624 = vpop.f32.mrb[0].mxu0
    %v2625 = vadd.f32 0.0, %v2624
    %v2626 = vpop.f32.mrb[0].mxu0
    %2627 = vmatprep.mubr.f32.mxu0 0.0
    %2628 = vmatmul.mubr.f32.gmra.mrb[0].mxu0 %v1526
    %v2629 = vpop.f32.mrb[0].mxu0
    %v2630 = vadd.f32 0.0, %v2629
    %v2631 = vpop.f32.mrb[0].mxu0
    %2632 = vdwg.mxu0
    %2633 = vmatprep.subr.mxu0 0.0
    %2634 = vmatpush1.msra.mxu0 %v1184
    %2635 = vmatprep.subr.mxu0 0.0
    %2636 = vmatpush1.msra.mxu0 %v1189
    %2637 = vmatprep.subr.mxu0 0.0
    %2638 = vmatpush1.msra.mxu0 0.0
    %2639 = vmatprep.subr.mxu0 0.0
    %2640 = vmatpush1.msra.mxu0 0.0
    %2641 = vmatprep.subr.mxu0 0.0
    %2642 = vmatpush1.msra.mxu0 0.0
    %2643 = vmatprep.subr.mxu0 0.0
    %2644 = vmatpush1.msra.mxu0 0.0
    %2645 = vmatprep.subr.mxu0 0.0
    %2646 = vmatpush1.msra.mxu0 0.0
    %2647 = vmatprep.subr.mxu0 0.0
    %2648 = vmatpush1.msra.mxu0 0.0
    %2649 = vmatprep.subr.mxu0 0.0
    %2650 = vmatpush1.msra.mxu0 0.0
    %2651 = vmatprep.subr.mxu0 0.0
    %2652 = vmatpush1.msra.mxu0 0.0
    %2653 = vmatprep.subr.mxu0 0.0
    %2654 = vmatpush1.msra.mxu0 0.0
    %2655 = vmatprep.subr.mxu0 0.0
    %2656 = vmatpush1.msra.mxu0 0.0
    %2657 = vmatprep.subr.mxu0 0.0
    %2658 = vmatpush1.msra.mxu0 0.0
    %2659 = vmatprep.subr.mxu0 0.0
    %2660 = vmatpush1.msra.mxu0 0.0
    %2661 = vmatprep.subr.mxu0 0.0
    %2662 = vmatpush1.msra.mxu0 0.0
    %2663 = vmatprep.subr.mxu0 0.0
    %2664 = vmatpush1.msra.mxu0 0.0
    %2665 = vmatprep.subr.mxu0 0.0
    %2666 = vmatpush1.msra.mxu0 0.0
    %2667 = vmatprep.subr.mxu0 0.0
    %2668 = vmatpush1.msra.mxu0 0.0
    %2669 = vmatprep.subr.mxu0 0.0
    %2670 = vmatpush1.msra.mxu0 0.0
    %2671 = vmatprep.subr.mxu0 0.0
    %2672 = vmatpush1.msra.mxu0 0.0
    %2673 = vmatprep.subr.mxu0 0.0
    %2674 = vmatpush1.msra.mxu0 0.0
    %2675 = vmatprep.subr.mxu0 0.0
    %2676 = vmatpush1.msra.mxu0 0.0
    %2677 = vmatprep.subr.mxu0 0.0
    %2678 = vmatpush1.msra.mxu0 0.0
    %2679 = vmatprep.subr.mxu0 0.0
    %2680 = vmatpush1.msra.mxu0 0.0
    %2681 = vmatprep.subr.mxu0 0.0
    %2682 = vmatpush1.msra.mxu0 0.0
    %2683 = vmatprep.subr.mxu0 0.0
    %2684 = vmatpush1.msra.mxu0 0.0
    %2685 = vmatprep.subr.mxu0 0.0
    %2686 = vmatpush1.msra.mxu0 0.0
    %2687 = vmatprep.subr.mxu0 0.0
    %2688 = vmatpush1.msra.mxu0 0.0
    %2689 = vmatprep.subr.mxu0 0.0
    %2690 = vmatpush1.msra.mxu0 0.0
    %2691 = vmatprep.subr.mxu0 0.0
    %2692 = vmatpush1.msra.mxu0 0.0
    %2693 = vmatprep.subr.mxu0 0.0
    %2694 = vmatpush1.msra.mxu0 0.0
    %2695 = vmatprep.subr.mxu0 0.0
    %2696 = vmatpush1.msra.mxu0 0.0
    %2697 = vmatprep.mubr.f32.mxu0 0.0
    %2698 = vmatmul.mubr.f32.gmra.mrb[0].mxu0 %v1517
    %v2699 = vpop.f32.mrb[0].mxu0
    %v2700 = vadd.f32 0.0, %v2699
    %v2701 = vpop.f32.mrb[0].mxu0
    %2702 = vmatprep.mubr.f32.mxu0 0.0
    %2703 = vmatmul.mubr.f32.gmra.mrb[0].mxu0 %v1520
    %v2704 = vpop.f32.mrb[0].mxu0
    %v2705 = vadd.f32 0.0, %v2704
    %v2706 = vpop.f32.mrb[0].mxu0
    %2707 = vmatprep.mubr.f32.mxu0 0.0
    %2708 = vmatmul.mubr.f32.gmra.mrb[0].mxu0 %v1523
    %v2709 = vpop.f32.mrb[0].mxu0
    %v2710 = vadd.f32 0.0, %v2709
    %v2711 = vpop.f32.mrb[0].mxu0
    %2712 = vmatprep.mubr.f32.mxu0 0.0
    %2713 = vmatmul.mubr.f32.gmra.mrb[0].mxu0 %v1526
    %v2714 = vpop.f32.mrb[0].mxu0
    %v2715 = vadd.f32 0.0, %v2714
    %v2716 = vpop.f32.mrb[0].mxu0
    %2717 = vdwg.mxu0
    %2718 = vmatprep.subr.mxu0 0.0
    %2719 = vmatpush1.msra.mxu0 %v1265
    %2720 = vmatprep.subr.mxu0 0.0
    %2721 = vmatpush1.msra.mxu0 %v1270
    %2722 = vmatprep.subr.mxu0 0.0
    %2723 = vmatpush1.msra.mxu0 0.0
    %2724 = vmatprep.subr.mxu0 0.0
    %2725 = vmatpush1.msra.mxu0 0.0
    %2726 = vmatprep.subr.mxu0 0.0
    %2727 = vmatpush1.msra.mxu0 0.0
    %2728 = vmatprep.subr.mxu0 0.0
    %2729 = vmatpush1.msra.mxu0 0.0
    %2730 = vmatprep.subr.mxu0 0.0
    %2731 = vmatpush1.msra.mxu0 0.0
    %2732 = vmatprep.subr.mxu0 0.0
    %2733 = vmatpush1.msra.mxu0 0.0
    %2734 = vmatprep.subr.mxu0 0.0
    %2735 = vmatpush1.msra.mxu0 0.0
    %2736 = vmatprep.subr.mxu0 0.0
    %2737 = vmatpush1.msra.mxu0 0.0
    %2738 = vmatprep.subr.mxu0 0.0
    %2739 = vmatpush1.msra.mxu0 0.0
    %2740 = vmatprep.subr.mxu0 0.0
    %2741 = vmatpush1.msra.mxu0 0.0
    %2742 = vmatprep.subr.mxu0 0.0
    %2743 = vmatpush1.msra.mxu0 0.0
    %2744 = vmatprep.subr.mxu0 0.0
    %2745 = vmatpush1.msra.mxu0 0.0
    %2746 = vmatprep.subr.mxu0 0.0
    %2747 = vmatpush1.msra.mxu0 0.0
    %2748 = vmatprep.subr.mxu0 0.0
    %2749 = vmatpush1.msra.mxu0 0.0
    %2750 = vmatprep.subr.mxu0 0.0
    %2751 = vmatpush1.msra.mxu0 0.0
    %2752 = vmatprep.subr.mxu0 0.0
    %2753 = vmatpush1.msra.mxu0 0.0
    %2754 = vmatprep.subr.mxu0 0.0
    %2755 = vmatpush1.msra.mxu0 0.0
    %2756 = vmatprep.subr.mxu0 0.0
    %2757 = vmatpush1.msra.mxu0 0.0
    %2758 = vmatprep.subr.mxu0 0.0
    %2759 = vmatpush1.msra.mxu0 0.0
    %2760 = vmatprep.subr.mxu0 0.0
    %2761 = vmatpush1.msra.mxu0 0.0
    %2762 = vmatprep.subr.mxu0 0.0
    %2763 = vmatpush1.msra.mxu0 0.0
    %2764 = vmatprep.subr.mxu0 0.0
    %2765 = vmatpush1.msra.mxu0 0.0
    %2766 = vmatprep.subr.mxu0 0.0
    %2767 = vmatpush1.msra.mxu0 0.0
    %2768 = vmatprep.subr.mxu0 0.0
    %2769 = vmatpush1.msra.mxu0 0.0
    %2770 = vmatprep.subr.mxu0 0.0
    %2771 = vmatpush1.msra.mxu0 0.0
    %2772 = vmatprep.subr.mxu0 0.0
    %2773 = vmatpush1.msra.mxu0 0.0
    %2774 = vmatprep.subr.mxu0 0.0
    %2775 = vmatpush1.msra.mxu0 0.0
    %2776 = vmatprep.subr.mxu0 0.0
    %2777 = vmatpush1.msra.mxu0 0.0
    %2778 = vmatprep.subr.mxu0 0.0
    %2779 = vmatpush1.msra.mxu0 0.0
    %2780 = vmatprep.subr.mxu0 0.0
    %2781 = vmatpush1.msra.mxu0 0.0
    %2782 = vmatprep.mubr.f32.mxu0 0.0
    %2783 = vmatmul.mubr.f32.gmra.mrb[0].mxu0 %v1517
    %v2784 = vpop.f32.mrb[0].mxu0
    %v2785 = vadd.f32 0.0, %v2784
    %v2786 = vpop.f32.mrb[0].mxu0
    %2787 = vmatprep.mubr.f32.mxu0 0.0
    %2788 = vmatmul.mubr.f32.gmra.mrb[0].mxu0 %v1520
    %v2789 = vpop.f32.mrb[0].mxu0
    %v2790 = vadd.f32 0.0, %v2789
    %v2791 = vpop.f32.mrb[0].mxu0
    %2792 = vmatprep.mubr.f32.mxu0 0.0
    %2793 = vmatmul.mubr.f32.gmra.mrb[0].mxu0 %v1523
    %v2794 = vpop.f32.mrb[0].mxu0
    %v2795 = vadd.f32 0.0, %v2794
    %v2796 = vpop.f32.mrb[0].mxu0
    %2797 = vmatprep.mubr.f32.mxu0 0.0
    %2798 = vmatmul.mubr.f32.gmra.mrb[0].mxu0 %v1526
    %v2799 = vpop.f32.mrb[0].mxu0
    %v2800 = vadd.f32 0.0, %v2799
    %v2801 = vpop.f32.mrb[0].mxu0
    %2802 = vdwg.mxu0
    %2803 = vmatprep.subr.mxu0 0.0
    %2804 = vmatpush1.msra.mxu0 %v1346
    %2805 = vmatprep.subr.mxu0 0.0
    %2806 = vmatpush1.msra.mxu0 %v1351
    %2807 = vmatprep.subr.mxu0 0.0
    %2808 = vmatpush1.msra.mxu0 0.0
    %2809 = vmatprep.subr.mxu0 0.0
    %2810 = vmatpush1.msra.mxu0 0.0
    %2811 = vmatprep.subr.mxu0 0.0
    %2812 = vmatpush1.msra.mxu0 0.0
    %2813 = vmatprep.subr.mxu0 0.0
    %2814 = vmatpush1.msra.mxu0 0.0
    %2815 = vmatprep.subr.mxu0 0.0
    %2816 = vmatpush1.msra.mxu0 0.0
    %2817 = vmatprep.subr.mxu0 0.0
    %2818 = vmatpush1.msra.mxu0 0.0
    %2819 = vmatprep.subr.mxu0 0.0
    %2820 = vmatpush1.msra.mxu0 0.0
    %2821 = vmatprep.subr.mxu0 0.0
    %2822 = vmatpush1.msra.mxu0 0.0
    %2823 = vmatprep.subr.mxu0 0.0
    %2824 = vmatpush1.msra.mxu0 0.0
    %2825 = vmatprep.subr.mxu0 0.0
    %2826 = vmatpush1.msra.mxu0 0.0
    %2827 = vmatprep.subr.mxu0 0.0
    %2828 = vmatpush1.msra.mxu0 0.0
    %2829 = vmatprep.subr.mxu0 0.0
    %2830 = vmatpush1.msra.mxu0 0.0
    %2831 = vmatprep.subr.mxu0 0.0
    %2832 = vmatpush1.msra.mxu0 0.0
    %2833 = vmatprep.subr.mxu0 0.0
    %2834 = vmatpush1.msra.mxu0 0.0
    %2835 = vmatprep.subr.mxu0 0.0
    %2836 = vmatpush1.msra.mxu0 0.0
    %2837 = vmatprep.subr.mxu0 0.0
    %2838 = vmatpush1.msra.mxu0 0.0
    %2839 = vmatprep.subr.mxu0 0.0
    %2840 = vmatpush1.msra.mxu0 0.0
    %2841 = vmatprep.subr.mxu0 0.0
    %2842 = vmatpush1.msra.mxu0 0.0
    %2843 = vmatprep.subr.mxu0 0.0
    %2844 = vmatpush1.msra.mxu0 0.0
    %2845 = vmatprep.subr.mxu0 0.0
    %2846 = vmatpush1.msra.mxu0 0.0
    %2847 = vmatprep.subr.mxu0 0.0
    %2848 = vmatpush1.msra.mxu0 0.0
    %2849 = vmatprep.subr.mxu0 0.0
    %2850 = vmatpush1.msra.mxu0 0.0
    %2851 = vmatprep.subr.mxu0 0.0
    %2852 = vmatpush1.msra.mxu0 0.0
    %2853 = vmatprep.subr.mxu0 0.0
    %2854 = vmatpush1.msra.mxu0 0.0
    %2855 = vmatprep.subr.mxu0 0.0
    %2856 = vmatpush1.msra.mxu0 0.0
    %2857 = vmatprep.subr.mxu0 0.0
    %2858 = vmatpush1.msra.mxu0 0.0
    %2859 = vmatprep.subr.mxu0 0.0
    %2860 = vmatpush1.msra.mxu0 0.0
    %2861 = vmatprep.subr.mxu0 0.0
    %2862 = vmatpush1.msra.mxu0 0.0
    %2863 = vmatprep.subr.mxu0 0.0
    %2864 = vmatpush1.msra.mxu0 0.0
    %2865 = vmatprep.subr.mxu0 0.0
    %2866 = vmatpush1.msra.mxu0 0.0
    %2867 = vmatprep.mubr.f32.mxu0 0.0
    %2868 = vmatmul.mubr.f32.gmra.mrb[0].mxu0 %v1517
    %v2869 = vpop.f32.mrb[0].mxu0
    %v2870 = vadd.f32 0.0, %v2869
    %v2871 = vpop.f32.mrb[0].mxu0
    %2872 = vmatprep.mubr.f32.mxu0 0.0
    %2873 = vmatmul.mubr.f32.gmra.mrb[0].mxu0 %v1520
    %v2874 = vpop.f32.mrb[0].mxu0
    %v2875 = vadd.f32 0.0, %v2874
    %v2876 = vpop.f32.mrb[0].mxu0
    %2877 = vmatprep.mubr.f32.mxu0 0.0
    %2878 = vmatmul.mubr.f32.gmra.mrb[0].mxu0 %v1523
    %v2879 = vpop.f32.mrb[0].mxu0
    %v2880 = vadd.f32 0.0, %v2879
    %v2881 = vpop.f32.mrb[0].mxu0
    %2882 = vmatprep.mubr.f32.mxu0 0.0
    %2883 = vmatmul.mubr.f32.gmra.mrb[0].mxu0 %v1526
    %v2884 = vpop.f32.mrb[0].mxu0
    %v2885 = vadd.f32 0.0, %v2884
    %v2886 = vpop.f32.mrb[0].mxu0
    %2887 = vdwg.mxu0
    %2888 = vmatprep.subr.mxu0 0.0
    %2889 = vmatpush1.msra.mxu0 %v1427
    %2890 = vmatprep.subr.mxu0 0.0
    %2891 = vmatpush1.msra.mxu0 %v1432
    %2892 = vmatprep.subr.mxu0 0.0
    %2893 = vmatpush1.msra.mxu0 0.0
    %2894 = vmatprep.subr.mxu0 0.0
    %2895 = vmatpush1.msra.mxu0 0.0
    %2896 = vmatprep.subr.mxu0 0.0
    %2897 = vmatpush1.msra.mxu0 0.0
    %2898 = vmatprep.subr.mxu0 0.0
    %2899 = vmatpush1.msra.mxu0 0.0
    %2900 = vmatprep.subr.mxu0 0.0
    %2901 = vmatpush1.msra.mxu0 0.0
    %2902 = vmatprep.subr.mxu0 0.0
    %2903 = vmatpush1.msra.mxu0 0.0
    %2904 = vmatprep.subr.mxu0 0.0
    %2905 = vmatpush1.msra.mxu0 0.0
    %2906 = vmatprep.subr.mxu0 0.0
    %2907 = vmatpush1.msra.mxu0 0.0
    %2908 = vmatprep.subr.mxu0 0.0
    %2909 = vmatpush1.msra.mxu0 0.0
    %2910 = vmatprep.subr.mxu0 0.0
    %2911 = vmatpush1.msra.mxu0 0.0
    %2912 = vmatprep.subr.mxu0 0.0
    %2913 = vmatpush1.msra.mxu0 0.0
    %2914 = vmatprep.subr.mxu0 0.0
    %2915 = vmatpush1.msra.mxu0 0.0
    %2916 = vmatprep.subr.mxu0 0.0
    %2917 = vmatpush1.msra.mxu0 0.0
    %2918 = vmatprep.subr.mxu0 0.0
    %2919 = vmatpush1.msra.mxu0 0.0
    %2920 = vmatprep.subr.mxu0 0.0
    %2921 = vmatpush1.msra.mxu0 0.0
    %2922 = vmatprep.subr.mxu0 0.0
    %2923 = vmatpush1.msra.mxu0 0.0
    %2924 = vmatprep.subr.mxu0 0.0
    %2925 = vmatpush1.msra.mxu0 0.0
    %2926 = vmatprep.subr.mxu0 0.0
    %2927 = vmatpush1.msra.mxu0 0.0
    %2928 = vmatprep.subr.mxu0 0.0
    %2929 = vmatpush1.msra.mxu0 0.0
    %2930 = vmatprep.subr.mxu0 0.0
    %2931 = vmatpush1.msra.mxu0 0.0
    %2932 = vmatprep.subr.mxu0 0.0
    %2933 = vmatpush1.msra.mxu0 0.0
    %2934 = vmatprep.subr.mxu0 0.0
    %2935 = vmatpush1.msra.mxu0 0.0
    %2936 = vmatprep.subr.mxu0 0.0
    %2937 = vmatpush1.msra.mxu0 0.0
    %2938 = vmatprep.subr.mxu0 0.0
    %2939 = vmatpush1.msra.mxu0 0.0
    %2940 = vmatprep.subr.mxu0 0.0
    %2941 = vmatpush1.msra.mxu0 0.0
    %2942 = vmatprep.subr.mxu0 0.0
    %2943 = vmatpush1.msra.mxu0 0.0
    %2944 = vmatprep.subr.mxu0 0.0
    %2945 = vmatpush1.msra.mxu0 0.0
    %2946 = vmatprep.subr.mxu0 0.0
    %2947 = vmatpush1.msra.mxu0 0.0
    %2948 = vmatprep.subr.mxu0 0.0
    %2949 = vmatpush1.msra.mxu0 0.0
    %2950 = vmatprep.subr.mxu0 0.0
    %2951 = vmatpush1.msra.mxu0 0.0
    %2952 = vmatprep.mubr.f32.mxu0 0.0
    %2953 = vmatmul.mubr.f32.gmra.mrb[0].mxu0 %v1517
    %v2954 = vpop.f32.mrb[0].mxu0
    %v2955 = vadd.f32 0.0, %v2954
    %v2956 = vpop.f32.mrb[0].mxu0
    %2957 = vmatprep.mubr.f32.mxu0 0.0
    %2958 = vmatmul.mubr.f32.gmra.mrb[0].mxu0 %v1520
    %v2959 = vpop.f32.mrb[0].mxu0
    %v2960 = vadd.f32 0.0, %v2959
    %v2961 = vpop.f32.mrb[0].mxu0
    %2962 = vmatprep.mubr.f32.mxu0 0.0
    %2963 = vmatmul.mubr.f32.gmra.mrb[0].mxu0 %v1523
    %v2964 = vpop.f32.mrb[0].mxu0
    %v2965 = vadd.f32 0.0, %v2964
    %v2966 = vpop.f32.mrb[0].mxu0
    %2967 = vmatprep.mubr.f32.mxu0 0.0
    %2968 = vmatmul.mubr.f32.gmra.mrb[0].mxu0 %v1526
    %v2969 = vpop.f32.mrb[0].mxu0
    %v2970 = vadd.f32 0.0, %v2969
    %v2971 = vpop.f32.mrb[0].mxu0
    %2972 = vdwg.mxu0
    %2973 = vmatprep.subr.mxu0 0.0
    %2974 = vmatpush1.msra.mxu0 %v1508
    %2975 = vmatprep.subr.mxu0 0.0
    %2976 = vmatpush1.msra.mxu0 %v1513
    %2977 = vmatprep.subr.mxu0 0.0
    %2978 = vmatpush1.msra.mxu0 0.0
    %2979 = vmatprep.subr.mxu0 0.0
    %2980 = vmatpush1.msra.mxu0 0.0
    %2981 = vmatprep.subr.mxu0 0.0
    %2982 = vmatpush1.msra.mxu0 0.0
    %2983 = vmatprep.subr.mxu0 0.0
    %2984 = vmatpush1.msra.mxu0 0.0
    %2985 = vmatprep.subr.mxu0 0.0
    %2986 = vmatpush1.msra.mxu0 0.0
    %2987 = vmatprep.subr.mxu0 0.0
    %2988 = vmatpush1.msra.mxu0 0.0
    %2989 = vmatprep.subr.mxu0 0.0
    %2990 = vmatpush1.msra.mxu0 0.0
    %2991 = vmatprep.subr.mxu0 0.0
    %2992 = vmatpush1.msra.mxu0 0.0
    %2993 = vmatprep.subr.mxu0 0.0
    %2994 = vmatpush1.msra.mxu0 0.0
    %2995 = vmatprep.subr.mxu0 0.0
    %2996 = vmatpush1.msra.mxu0 0.0
    %2997 = vmatprep.subr.mxu0 0.0
    %2998 = vmatpush1.msra.mxu0 0.0
    %2999 = vmatprep.subr.mxu0 0.0
    %3000 = vmatpush1.msra.mxu0 0.0
    %3001 = vmatprep.subr.mxu0 0.0
    %3002 = vmatpush1.msra.mxu0 0.0
    %3003 = vmatprep.subr.mxu0 0.0
    %3004 = vmatpush1.msra.mxu0 0.0
    %3005 = vmatprep.subr.mxu0 0.0
    %3006 = vmatpush1.msra.mxu0 0.0
    %3007 = vmatprep.subr.mxu0 0.0
    %3008 = vmatpush1.msra.mxu0 0.0
    %3009 = vmatprep.subr.mxu0 0.0
    %3010 = vmatpush1.msra.mxu0 0.0
    %3011 = vmatprep.subr.mxu0 0.0
    %3012 = vmatpush1.msra.mxu0 0.0
    %3013 = vmatprep.subr.mxu0 0.0
    %3014 = vmatpush1.msra.mxu0 0.0
    %3015 = vmatprep.subr.mxu0 0.0
    %3016 = vmatpush1.msra.mxu0 0.0
    %3017 = vmatprep.subr.mxu0 0.0
    %3018 = vmatpush1.msra.mxu0 0.0
    %3019 = vmatprep.subr.mxu0 0.0
    %3020 = vmatpush1.msra.mxu0 0.0
    %3021 = vmatprep.subr.mxu0 0.0
    %3022 = vmatpush1.msra.mxu0 0.0
    %3023 = vmatprep.subr.mxu0 0.0
    %3024 = vmatpush1.msra.mxu0 0.0
    %3025 = vmatprep.subr.mxu0 0.0
    %3026 = vmatpush1.msra.mxu0 0.0
    %3027 = vmatprep.subr.mxu0 0.0
    %3028 = vmatpush1.msra.mxu0 0.0
    %3029 = vmatprep.subr.mxu0 0.0
    %3030 = vmatpush1.msra.mxu0 0.0
    %3031 = vmatprep.subr.mxu0 0.0
    %3032 = vmatpush1.msra.mxu0 0.0
    %3033 = vmatprep.subr.mxu0 0.0
    %3034 = vmatpush1.msra.mxu0 0.0
    %3035 = vmatprep.subr.mxu0 0.0
    %3036 = vmatpush1.msra.mxu0 0.0
    %3037 = vmatprep.mubr.f32.mxu0 0.0
    %3038 = vmatmul.mubr.f32.gmra.mrb[0].mxu0 %v1517
    %v3039 = vpop.f32.mrb[0].mxu0
    %v3040 = vadd.f32 0.0, %v3039
    %v3041 = vpop.f32.mrb[0].mxu0
    %3042 = vmatprep.mubr.f32.mxu0 0.0
    %3043 = vmatmul.mubr.f32.gmra.mrb[0].mxu0 %v1520
    %v3044 = vpop.f32.mrb[0].mxu0
    %v3045 = vadd.f32 0.0, %v3044
    %v3046 = vpop.f32.mrb[0].mxu0
    %3047 = vmatprep.mubr.f32.mxu0 0.0
    %3048 = vmatmul.mubr.f32.gmra.mrb[0].mxu0 %v1523
    %v3049 = vpop.f32.mrb[0].mxu0
    %v3050 = vadd.f32 0.0, %v3049
    %v3051 = vpop.f32.mrb[0].mxu0
    %3052 = vmatprep.mubr.f32.mxu0 0.0
    %3053 = vmatmul.mubr.f32.gmra.mrb[0].mxu0 %v1526
    %v3054 = vpop.f32.mrb[0].mxu0
    %v3055 = vadd.f32 0.0, %v3054
    %v3056 = vpop.f32.mrb[0].mxu0
    %3057 = vdwg.mxu0
    %v3058 = vmax.f32 %v1595, 0.0
    %v3059 = vmax.f32 %v1600, 0.0
    %v3060 = vmax.f32 %v1605, 0.0
    %v3061 = vmax.f32 %v1610, 0.0
    %v3062 = vmax.f32 %v1680, 0.0
    %v3063 = vmax.f32 %v1685, 0.0
    %v3064 = vmax.f32 %v1690, 0.0
    %v3065 = vmax.f32 %v1695, 0.0
    %v3066 = vmax.f32 %v1765, 0.0
    %v3067 = vmax.f32 %v1770, 0.0
    %v3068 = vmax.f32 %v1775, 0.0
    %v3069 = vmax.f32 %v1780, 0.0
    %v3070 = vmax.f32 %v1850, 0.0
    %v3071 = vmax.f32 %v1855, 0.0
    %v3072 = vmax.f32 %v1860, 0.0
    %v3073 = vmax.f32 %v1865, 0.0
    %v3074 = vmax.f32 %v1935, 0.0
    %v3075 = vmax.f32 %v1940, 0.0
    %v3076 = vmax.f32 %v1945, 0.0
    %v3077 = vmax.f32 %v1950, 0.0
    %v3078 = vmax.f32 %v2020, 0.0
    %v3079 = vmax.f32 %v2025, 0.0
    %v3080 = vmax.f32 %v2030, 0.0
    %v3081 = vmax.f32 %v2035, 0.0
    %v3082 = vmax.f32 %v2105, 0.0
    %v3083 = vmax.f32 %v2110, 0.0
    %v3084 = vmax.f32 %v2115, 0.0
    %v3085 = vmax.f32 %v2120, 0.0
    %v3086 = vmax.f32 %v2190, 0.0
    %v3087 = vmax.f32 %v2195, 0.0
    %v3088 = vmax.f32 %v2200, 0.0
    %v3089 = vmax.f32 %v2205, 0.0
    %v3090 = vmax.f32 %v2275, 0.0
    %v3091 = vmax.f32 %v2280, 0.0
    %v3092 = vmax.f32 %v2285, 0.0
    %v3093 = vmax.f32 %v2290, 0.0
    %v3094 = vmax.f32 %v2360, 0.0
    %v3095 = vmax.f32 %v2365, 0.0
    %v3096 = vmax.f32 %v2370, 0.0
    %v3097 = vmax.f32 %v2375, 0.0
    %v3098 = vmax.f32 %v2445, 0.0
    %v3099 = vmax.f32 %v2450, 0.0
    %v3100 = vmax.f32 %v2455, 0.0
    %v3101 = vmax.f32 %v2460, 0.0
    %v3102 = vmax.f32 %v2530, 0.0
    %v3103 = vmax.f32 %v2535, 0.0
    %v3104 = vmax.f32 %v2540, 0.0
    %v3105 = vmax.f32 %v2545, 0.0
    %v3106 = vmax.f32 %v2615, 0.0
    %v3107 = vmax.f32 %v2620, 0.0
    %v3108 = vmax.f32 %v2625, 0.0
    %v3109 = vmax.f32 %v2630, 0.0
    %v3110 = vmax.f32 %v2700, 0.0
    %v3111 = vmax.f32 %v2705, 0.0
    %v3112 = vmax.f32 %v2710, 0.0
    %v3113 = vmax.f32 %v2715, 0.0
    %v3114 = vmax.f32 %v2785, 0.0
    %v3115 = vmax.f32 %v2790, 0.0
    %v3116 = vmax.f32 %v2795, 0.0
    %v3117 = vmax.f32 %v2800, 0.0
    %v3118 = vmax.f32 %v2870, 0.0
    %v3119 = vmax.f32 %v2875, 0.0
    %v3120 = vmax.f32 %v2880, 0.0
    %v3121 = vmax.f32 %v2885, 0.0
    %v3122 = vmax.f32 %v2955, 0.0
    %v3123 = vmax.f32 %v2960, 0.0
    %v3124 = vmax.f32 %v2965, 0.0
    %v3125 = vmax.f32 %v2970, 0.0
    %v3126 = vmax.f32 %v3040, 0.0
    %v3127 = vmax.f32 %v3045, 0.0
    %v3128 = vmax.f32 %v3050, 0.0
    %v3129 = vmax.f32 %v3055, 0.0
    %v3130 = vmin.f32 %v3058, 1.0
    %v3131 = vmin.f32 %v3059, 1.0
    %v3132 = vmin.f32 %v3060, 1.0
    %v3133 = vmin.f32 %v3061, 1.0
    %v3134 = vmin.f32 %v3062, 1.0
    %v3135 = vmin.f32 %v3063, 1.0
    %v3136 = vmin.f32 %v3064, 1.0
    %v3137 = vmin.f32 %v3065, 1.0
    %v3138 = vmin.f32 %v3066, 1.0
    %v3139 = vmin.f32 %v3067, 1.0
    %v3140 = vmin.f32 %v3068, 1.0
    %v3141 = vmin.f32 %v3069, 1.0
    %v3142 = vmin.f32 %v3070, 1.0
    %v3143 = vmin.f32 %v3071, 1.0
    %v3144 = vmin.f32 %v3072, 1.0
    %v3145 = vmin.f32 %v3073, 1.0
    %v3146 = vmin.f32 %v3074, 1.0
    %v3147 = vmin.f32 %v3075, 1.0
    %v3148 = vmin.f32 %v3076, 1.0
    %v3149 = vmin.f32 %v3077, 1.0
    %v3150 = vmin.f32 %v3078, 1.0
    %v3151 = vmin.f32 %v3079, 1.0
    %v3152 = vmin.f32 %v3080, 1.0
    %v3153 = vmin.f32 %v3081, 1.0
    %v3154 = vmin.f32 %v3082, 1.0
    %v3155 = vmin.f32 %v3083, 1.0
    %v3156 = vmin.f32 %v3084, 1.0
    %v3157 = vmin.f32 %v3085, 1.0
    %v3158 = vmin.f32 %v3086, 1.0
    %v3159 = vmin.f32 %v3087, 1.0
    %v3160 = vmin.f32 %v3088, 1.0
    %v3161 = vmin.f32 %v3089, 1.0
    %v3162 = vmin.f32 %v3090, 1.0
    %v3163 = vmin.f32 %v3091, 1.0
    %v3164 = vmin.f32 %v3092, 1.0
    %v3165 = vmin.f32 %v3093, 1.0
    %v3166 = vmin.f32 %v3094, 1.0
    %v3167 = vmin.f32 %v3095, 1.0
    %v3168 = vmin.f32 %v3096, 1.0
    %v3169 = vmin.f32 %v3097, 1.0
    %v3170 = vmin.f32 %v3098, 1.0
    %v3171 = vmin.f32 %v3099, 1.0
    %v3172 = vmin.f32 %v3100, 1.0
    %v3173 = vmin.f32 %v3101, 1.0
    %v3174 = vmin.f32 %v3102, 1.0
    %v3175 = vmin.f32 %v3103, 1.0
    %v3176 = vmin.f32 %v3104, 1.0
    %v3177 = vmin.f32 %v3105, 1.0
    %v3178 = vmin.f32 %v3106, 1.0
    %v3179 = vmin.f32 %v3107, 1.0
    %v3180 = vmin.f32 %v3108, 1.0
    %v3181 = vmin.f32 %v3109, 1.0
    %v3182 = vmin.f32 %v3110, 1.0
    %v3183 = vmin.f32 %v3111, 1.0
    %v3184 = vmin.f32 %v3112, 1.0
    %v3185 = vmin.f32 %v3113, 1.0
    %v3186 = vmin.f32 %v3114, 1.0
    %v3187 = vmin.f32 %v3115, 1.0
    %v3188 = vmin.f32 %v3116, 1.0
    %v3189 = vmin.f32 %v3117, 1.0
    %v3190 = vmin.f32 %v3118, 1.0
    %v3191 = vmin.f32 %v3119, 1.0
    %v3192 = vmin.f32 %v3120, 1.0
    %v3193 = vmin.f32 %v3121, 1.0
    %v3194 = vmin.f32 %v3122, 1.0
    %v3195 = vmin.f32 %v3123, 1.0
    %v3196 = vmin.f32 %v3124, 1.0
    %v3197 = vmin.f32 %v3125, 1.0
    %v3198 = vmin.f32 %v3126, 1.0
    %v3199 = vmin.f32 %v3127, 1.0
    %v3200 = vmin.f32 %v3128, 1.0
    %v3201 = vmin.f32 %v3129, 1.0
    %vm3202 = vcmask 261120
    %3203 = vst.msk [vmem:[#allocation2] sm:$0xff] %vm3202, %v3130
    %3204 = vst.msk [vmem:[#allocation2 + $0x8] sm:$0xff] %vm3202, %v3131
    %3205 = vst.msk [vmem:[#allocation2 + $0x10] sm:$0xff] %vm3202, %v3132
    %3206 = vst.msk [vmem:[#allocation2 + $0x18] sm:$0xff] %vm3202, %v3133
    %3207 = vst.msk [vmem:[#allocation2 + $0x20] sm:$0xff] %vm3202, %v3134
    %3208 = vst.msk [vmem:[#allocation2 + $0x28] sm:$0xff] %vm3202, %v3135
    %3209 = vst.msk [vmem:[#allocation2 + $0x30] sm:$0xff] %vm3202, %v3136
    %3210 = vst.msk [vmem:[#allocation2 + $0x38] sm:$0xff] %vm3202, %v3137
    %3211 = vst.msk [vmem:[#allocation2 + $0x40] sm:$0xff] %vm3202, %v3138
    %3212 = vst.msk [vmem:[#allocation2 + $0x48] sm:$0xff] %vm3202, %v3139
    %3213 = vst.msk [vmem:[#allocation2 + $0x50] sm:$0xff] %vm3202, %v3140
    %3214 = vst.msk [vmem:[#allocation2 + $0x58] sm:$0xff] %vm3202, %v3141
    %3215 = vst.msk [vmem:[#allocation2 + $0x60] sm:$0xff] %vm3202, %v3142
    %3216 = vst.msk [vmem:[#allocation2 + $0x68] sm:$0xff] %vm3202, %v3143
    %3217 = vst.msk [vmem:[#allocation2 + $0x70] sm:$0xff] %vm3202, %v3144
    %3218 = vst.msk [vmem:[#allocation2 + $0x78] sm:$0xff] %vm3202, %v3145
    %3219 = vst.msk [vmem:[#allocation2 + $0x80] sm:$0xff] %vm3202, %v3146
    %3220 = vst.msk [vmem:[#allocation2 + $0x88] sm:$0xff] %vm3202, %v3147
    %3221 = vst.msk [vmem:[#allocation2 + $0x90] sm:$0xff] %vm3202, %v3148
    %3222 = vst.msk [vmem:[#allocation2 + $0x98] sm:$0xff] %vm3202, %v3149
    %3223 = vst.msk [vmem:[#allocation2 + $0xa0] sm:$0xff] %vm3202, %v3150
    %3224 = vst.msk [vmem:[#allocation2 + $0xa8] sm:$0xff] %vm3202, %v3151
    %3225 = vst.msk [vmem:[#allocation2 + $0xb0] sm:$0xff] %vm3202, %v3152
    %3226 = vst.msk [vmem:[#allocation2 + $0xb8] sm:$0xff] %vm3202, %v3153
    %3227 = vst.msk [vmem:[#allocation2 + $0xc0] sm:$0xff] %vm3202, %v3154
    %3228 = vst.msk [vmem:[#allocation2 + $0xc8] sm:$0xff] %vm3202, %v3155
    %3229 = vst.msk [vmem:[#allocation2 + $0xd0] sm:$0xff] %vm3202, %v3156
    %3230 = vst.msk [vmem:[#allocation2 + $0xd8] sm:$0xff] %vm3202, %v3157
    %3231 = vst.msk [vmem:[#allocation2 + $0xe0] sm:$0xff] %vm3202, %v3158
    %3232 = vst.msk [vmem:[#allocation2 + $0xe8] sm:$0xff] %vm3202, %v3159
    %3233 = vst.msk [vmem:[#allocation2 + $0xf0] sm:$0xff] %vm3202, %v3160
    %3234 = vst.msk [vmem:[#allocation2 + $0xf8] sm:$0xff] %vm3202, %v3161
    %3235 = vst.msk [vmem:[#allocation2 + $0x100] sm:$0xff] %vm3202, %v3162
    %3236 = vst.msk [vmem:[#allocation2 + $0x108] sm:$0xff] %vm3202, %v3163
    %3237 = vst.msk [vmem:[#allocation2 + $0x110] sm:$0xff] %vm3202, %v3164
    %3238 = vst.msk [vmem:[#allocation2 + $0x118] sm:$0xff] %vm3202, %v3165
    %3239 = vst.msk [vmem:[#allocation2 + $0x120] sm:$0xff] %vm3202, %v3166
    %3240 = vst.msk [vmem:[#allocation2 + $0x128] sm:$0xff] %vm3202, %v3167
    %3241 = vst.msk [vmem:[#allocation2 + $0x130] sm:$0xff] %vm3202, %v3168
    %3242 = vst.msk [vmem:[#allocation2 + $0x138] sm:$0xff] %vm3202, %v3169
    %3243 = vst.msk [vmem:[#allocation2 + $0x140] sm:$0xff] %vm3202, %v3170
    %3244 = vst.msk [vmem:[#allocation2 + $0x148] sm:$0xff] %vm3202, %v3171
    %3245 = vst.msk [vmem:[#allocation2 + $0x150] sm:$0xff] %vm3202, %v3172
    %3246 = vst.msk [vmem:[#allocation2 + $0x158] sm:$0xff] %vm3202, %v3173
    %3247 = vst.msk [vmem:[#allocation2 + $0x160] sm:$0xff] %vm3202, %v3174
    %3248 = vst.msk [vmem:[#allocation2 + $0x168] sm:$0xff] %vm3202, %v3175
    %3249 = vst.msk [vmem:[#allocation2 + $0x170] sm:$0xff] %vm3202, %v3176
    %3250 = vst.msk [vmem:[#allocation2 + $0x178] sm:$0xff] %vm3202, %v3177
    %3251 = vst.msk [vmem:[#allocation2 + $0x180] sm:$0xff] %vm3202, %v3178
    %3252 = vst.msk [vmem:[#allocation2 + $0x188] sm:$0xff] %vm3202, %v3179
    %3253 = vst.msk [vmem:[#allocation2 + $0x190] sm:$0xff] %vm3202, %v3180
    %3254 = vst.msk [vmem:[#allocation2 + $0x198] sm:$0xff] %vm3202, %v3181
    %3255 = vst.msk [vmem:[#allocation2 + $0x1a0] sm:$0xff] %vm3202, %v3182
    %3256 = vst.msk [vmem:[#allocation2 + $0x1a8] sm:$0xff] %vm3202, %v3183
    %3257 = vst.msk [vmem:[#allocation2 + $0x1b0] sm:$0xff] %vm3202, %v3184
    %3258 = vst.msk [vmem:[#allocation2 + $0x1b8] sm:$0xff] %vm3202, %v3185
    %3259 = vst.msk [vmem:[#allocation2 + $0x1c0] sm:$0xff] %vm3202, %v3186
    %3260 = vst.msk [vmem:[#allocation2 + $0x1c8] sm:$0xff] %vm3202, %v3187
    %3261 = vst.msk [vmem:[#allocation2 + $0x1d0] sm:$0xff] %vm3202, %v3188
    %3262 = vst.msk [vmem:[#allocation2 + $0x1d8] sm:$0xff] %vm3202, %v3189
    %3263 = vst.msk [vmem:[#allocation2 + $0x1e0] sm:$0xff] %vm3202, %v3190
    %3264 = vst.msk [vmem:[#allocation2 + $0x1e8] sm:$0xff] %vm3202, %v3191
    %3265 = vst.msk [vmem:[#allocation2 + $0x1f0] sm:$0xff] %vm3202, %v3192
    %3266 = vst.msk [vmem:[#allocation2 + $0x1f8] sm:$0xff] %vm3202, %v3193
    %3267 = vst.msk [vmem:[#allocation2 + $0x200] sm:$0xff] %vm3202, %v3194
    %3268 = vst.msk [vmem:[#allocation2 + $0x208] sm:$0xff] %vm3202, %v3195
    %3269 = vst.msk [vmem:[#allocation2 + $0x210] sm:$0xff] %vm3202, %v3196
    %3270 = vst.msk [vmem:[#allocation2 + $0x218] sm:$0xff] %vm3202, %v3197
    %3271 = vst.msk [vmem:[#allocation2 + $0x220] sm:$0xff] %vm3202, %v3198
    %3272 = vst.msk [vmem:[#allocation2 + $0x228] sm:$0xff] %vm3202, %v3199
    %3273 = vst.msk [vmem:[#allocation2 + $0x230] sm:$0xff] %vm3202, %v3200
    %3274 = vst.msk [vmem:[#allocation2 + $0x238] sm:$0xff] %vm3202, %v3201
    // Predicated region
    $region14: #{tpu_custom_call.1} parent=1 // pred_check
      _
    $region15: #{tpu_custom_call.1} parent=1 // pred_check_branch
      %3276 = sbr.rel (0) target = $region17
    $region16: #{tpu_custom_call.1} parent=1 // pred_region
      %s3278 = ssub.s32 9216, 9216
      %3279 = vsyncadd [#allocation3], %s3278
      %s3280 = sshll.u32 [#allocation2], 4
      %s3281 = int_to_ptr.vmem [resolvable:$true] %s3280
      %3286 = dma.vmem_to_hbm [thread:$0]  %s3281, 9216, %s3, [#allocation3], 128, 128, 8
    $region17: #{tpu_custom_call.1} parent=1 // pred_fallthru
      _
    // Predicated region
    $region18: #{tpu_custom_call.1} parent=1 // pred_check
      _
    $region19: #{tpu_custom_call.1} parent=1 // pred_check_branch
      %3288 = sbr.rel (0) target = $region21
    $region20: #{tpu_custom_call.1} parent=1 // pred_region
      %3289 = dma.done [#allocation3], 9216
    $region21: #{tpu_custom_call.1} parent=1 // pred_fallthru
      _
    %3290 = vsyncpa [#allocation3], 1

</llo_original>
